<compile_context>
chip_gen: v6e
topology: v6e:2x2x1
jax: 0.10.0
libtpu: 0.0.40
codegen_flags: <defaults>
</compile_context>

<pallas_src>
import functools

import jax
import jax.numpy as jnp
from jax.experimental import pallas as pl
from jax.experimental.pallas import tpu as pltpu


def _round_up(x, m):
    return (x + m - 1) // m * m


def _resblock_kernel(xm_ref, xh_ref, w1_ref, b1_ref, w2_ref, b2_ref, o_ref,
                     col_ref, mid_ref, *, th, H, W, Wc, C):
    """One (batch, H-strip) tile of the fused residual block.

    xm_ref : (th,  W+2, C)   main rows of the zero-padded input strip (window rows [0, th))
    xh_ref : (4,   W+2, C)   4-row halo below (window rows [th, th+4))
    w*_ref : (9*C, C)        im2col weights, row = 3*(3*ky+kx... ) i.e. k*C + ci, col = co
    b*_ref : (1, C)          f32 biases
    o_ref  : (th, W, C)      output strip
    col_ref: (th+2, Wc, 9C)  im2col scratch (shared by conv1 and conv2), MXU operand dtype
    mid_ref: (th+2, W+2, C)  ReLU(conv1) with conv2's zero padding built in
    """
    i = pl.program_id(1)          # H-strip index
    cdt = col_ref.dtype
    K = 9 * C

    # ---------------- conv1: pack all 9 taps into the MXU K dimension ----------------
    # col[t, x, k*C:(k+1)*C] = x_pad[window_row t+dy, padded_col x+dx, :]
    # for t in [0, th+2), x in [0, W); the rows are taken straight from the two blocked
    # refs (no assembled contiguous strip copy).
    for k in range(9):
        dy, dx = divmod(k, 3)
        col_ref[0:th - dy, 0:W, k * C:(k + 1) * C] = (
            xm_ref[dy:th, dx:dx + W, :].astype(cdt))
        col_ref[th - dy:th + 2, 0:W, k * C:(k + 1) * C] = (
            xh_ref[0:dy + 2, dx:dx + W, :].astype(cdt))

    a1 = jnp.dot(col_ref[...].reshape((th + 2) * Wc, K), w1_ref[...],
                 preferred_element_type=jnp.float32).reshape(th + 2, Wc, C)
    act = jnp.maximum(a1[:, 0:W, :] + b1_ref[...].reshape(1, 1, C), 0.0)

    # mid = ReLU(conv1) with conv2's own zero padding:
    #   * columns 0 and W+1 are always zero,
    #   * row 0 is zero only on the top strip (global row -1),
    #   * rows past the true image height are zero only on the last valid strip.
    mid_ref[:, 1:W + 1, :] = act.astype(cdt)
    mid_ref[:, 0:1, :] = jnp.zeros((th + 2, 1, C), cdt)
    mid_ref[:, W + 1:W + 2, :] = jnp.zeros((th + 2, 1, C), cdt)

    @pl.when(i == 0)
    def _():
        mid_ref[0:1] = jnp.zeros((1, W + 2, C), cdt)

    last = (H - 1) // th           # strip holding the last valid image row (static)
    tail = H + 1 - last * th       # number of valid mid rows on that strip (static, <= th+1)

    @pl.when(i == last)
    def _():
        mid_ref[tail:th + 2] = jnp.zeros((th + 2 - tail, W + 2, C), cdt)

    # ---------------- conv2: im2col from mid (reuses the same col scratch) ----------------
    for k in range(9):
        dy, dx = divmod(k, 3)
        col_ref[0:th, 0:W, k * C:(k + 1) * C] = mid_ref[dy:dy + th, dx:dx + W, :]

    a2 = jnp.dot(col_ref[0:th].reshape(th * Wc, K), w2_ref[...],
                 preferred_element_type=jnp.float32).reshape(th, Wc, C)
    res = a2[:, 0:W, :] + b2_ref[...].reshape(1, 1, C)

    # Identity add in f32; the strip's input rows straddle the main and halo blocks
    # (window rows [2, th+2)), so the output is written in two row ranges.
    o_ref[0:th - 2] = (xm_ref[2:th, 1:W + 1, :].astype(jnp.float32)
                       + res[0:th - 2]).astype(o_ref.dtype)
    o_ref[th - 2:th] = (xh_ref[0:2, 1:W + 1, :].astype(jnp.float32)
                        + res[th - 2:th]).astype(o_ref.dtype)


def _choose_tile_rows(B, H, W, C, dt, cdt, budget_bytes):
    """Largest multiple-of-8 strip height whose per-step VMEM footprint fits the budget
    (lane padding of the C / 9C last dims to 128 is included)."""
    isz = jnp.dtype(dt).itemsize
    csz = jnp.dtype(cdt).itemsize
    cpad = _round_up(C, 128)
    kpad = _round_up(9 * C, 128)
    wp = _round_up(W + 2, 8)          # padded-input / mid sublane extent
    wc = _round_up(W, 8)              # im2col / output sublane extent
    per_row = (2 * wp * cpad * isz    # main input block (double-buffered)
               + 2 * wc * cpad * isz  # output block (double-buffered)
               + wc * kpad * csz      # im2col scratch
               + wp * cpad * csz)     # conv1-activation scratch
    fixed = (2 * 4 * wp * cpad * isz            # 4-row halo block (double-buffered)
             + 2 * (wc * kpad + wp * cpad) * csz  # the "+2" rows of col / mid
             + 2 * 9 * C * cpad * csz           # weights
             + (4 << 20))                       # headroom
    th = (budget_bytes - fixed) // per_row
    th = int(max(8, min(th, 256, _round_up(H, 8))) // 8 * 8)
    if B == 1 and H > 8:
        # keep at least two "parallel" grid steps so both v7x TensorCores get work
        th = min(th, _round_up(pl.cdiv(H, 2), 8))
    return max(8, th)


def residual_block_nobn_nhwc(x, params, *, tile_rows=None):
    """Fused ResidualBlock_noBN forward on an NHWC input (channels on lanes)."""
    w1, b1, w2, b2 = params
    B, H, W, C = x.shape
    dt = x.dtype
    cdt = jnp.bfloat16 if dt == jnp.float32 else dt   # MXU operand dtype (f32 accumulate)

    try:
        vmem_cap = pltpu.get_tpu_info().vmem_capacity_bytes
    except Exception:
        vmem_cap = 64 * 1024 * 1024
    vmem_limit = min(int(vmem_cap) * 3 // 4, 112 * 1024 * 1024)

    if tile_rows is None:
        th = _choose_tile_rows(B, H, W, C, dt, cdt, vmem_limit)
    else:
        th = max(8, _round_up(min(tile_rows, _round_up(H, 8)), 8))
    h_pad = _round_up(H, th)
    n_strips = h_pad // th
    wc = _round_up(W, 8)          # im2col width (pad cols are computed but never stored)

    # 2-row top halo, 1-col left/right halo; the bottom pad covers the halo plus the
    # ragged rows that round H up to a whole number of strips (cropped after the kernel).
    xp = jnp.pad(x, ((0, 0), (2, h_pad - H + 2), (1, 1), (0, 0)))

    # (9, C_in, C_out) -> (9*C_in, C_out); row index k*C + ci matches the im2col lane order.
    w1q = jnp.asarray(w1, cdt).reshape(9 * C, C)
    w2q = jnp.asarray(w2, cdt).reshape(9 * C, C)
    b1f = jnp.asarray(b1, jnp.float32).reshape(1, C)
    b2f = jnp.asarray(b2, jnp.float32).reshape(1, C)

    kernel = functools.partial(_resblock_kernel, th=th, H=H, W=W, Wc=wc, C=C)

    out = pl.pallas_call(
        kernel,
        out_shape=jax.ShapeDtypeStruct((B, h_pad, W, C), dt),
        grid_spec=pltpu.PrefetchScalarGridSpec(
            num_scalar_prefetch=0,
            grid=(B, n_strips),
            in_specs=[
                # main th rows of the padded strip (window rows [0, th))
                pl.BlockSpec((None, th, W + 2, C), lambda b, i: (b, i, 0, 0)),
                # 4-row halo directly below (window rows [th, th+4)); th % 8 == 0 so the
                # block index is integral
                pl.BlockSpec((None, 4, W + 2, C),
                             lambda b, i: (b, (i + 1) * (th // 4), 0, 0)),
                pl.BlockSpec((9 * C, C), lambda b, i: (0, 0)),
                pl.BlockSpec((1, C), lambda b, i: (0, 0)),
                pl.BlockSpec((9 * C, C), lambda b, i: (0, 0)),
                pl.BlockSpec((1, C), lambda b, i: (0, 0)),
            ],
            out_specs=pl.BlockSpec((None, th, W, C), lambda b, i: (b, i, 0, 0)),
            scratch_shapes=[
                pltpu.VMEM((th + 2, wc, 9 * C), cdt),   # im2col (shared by both convs)
                pltpu.VMEM((th + 2, W + 2, C), cdt),    # ReLU(conv1) with conv2 padding
            ],
        ),
        compiler_params=pltpu.CompilerParams(
            dimension_semantics=("parallel", "parallel"),
            vmem_limit_bytes=vmem_limit),
    )(xp, xp, w1q, b1f, w2q, b2f)

    return out[:, :H]                                    # crop ragged-H padding


def residual_block_nobn(x_nchw, params, *, tile_rows=None):
    """PyTorch-compatible NCHW entry point.  If the surrounding model already runs NHWC,
    call residual_block_nobn_nhwc directly and save two full-image HBM transposes."""
    x = jnp.transpose(x_nchw, (0, 2, 3, 1))              # NCHW -> NHWC
    out = residual_block_nobn_nhwc(x, params, tile_rows=tile_rows)
    return jnp.transpose(out, (0, 3, 1, 2))              # NHWC -> NCHW


def init_params(key, nf):
    """Kaiming-normal (fan_in, a=0) * 0.1, zero bias — matches initialize_weights(scale=0.1)."""
    k1, k2 = jax.random.split(key)
    fan_in = nf * 3 * 3
    std = (2.0 / fan_in) ** 0.5

    # PyTorch layout (C_out, C_in, kh, kw) -> (kh, kw, C_in, C_out) -> (9, C_in, C_out)
    def make_w(k):
        w_torch = jax.random.normal(k, (nf, nf, 3, 3), jnp.float32) * std * 0.1
        return jnp.transpose(w_torch, (2, 3, 1, 0)).reshape(9, nf, nf)

    return (make_w(k1), jnp.zeros((nf,), jnp.float32),
            make_w(k2), jnp.zeros((nf,), jnp.float32))


def _reference(x_nchw, params):
    """Pure-JAX reference using lax conv (NCHW, like PyTorch)."""
    w1, b1, w2, b2 = params

    def conv(x, w9, b):
        w = jnp.transpose(w9.reshape(3, 3, w9.shape[1], w9.shape[2]), (3, 2, 0, 1))
        y = jax.lax.conv_general_dilated(
            x, w, window_strides=(1, 1), padding=((1, 1), (1, 1)),
            dimension_numbers=("NCHW", "OIHW", "NCHW"))
        return y + b.reshape(1, -1, 1, 1)

    out = jax.nn.relu(conv(x_nchw, w1, b1))
    out = conv(out, w2, b2)
    return x_nchw + out


if __name__ == "__main__":
    key = jax.random.PRNGKey(0)
    kx, kp = jax.random.split(key)

    # Main test: B=2, C=4, H=W=16, two row strips per image (exercises halo + boundary masks).
    B, C, H, W = 2, 4, 16, 16
    x = jax.random.normal(kx, (B, C, H, W), jnp.float32)
    params = init_params(kp, C)

    out = jax.block_until_ready(residual_block_nobn(x, params, tile_rows=8))
    ref = _reference(x, params)
    assert out.shape == (B, C, H, W)
    assert jnp.allclose(out, ref, atol=2e-3, rtol=2e-3), \
        float(jnp.max(jnp.abs(out - ref)))

    # Auto tiling path (single strip, top and bottom masks fire on the same strip).
    out_auto = jax.block_until_ready(residual_block_nobn(x, params))
    assert jnp.allclose(out_auto, ref, atol=2e-3, rtol=2e-3), \
        float(jnp.max(jnp.abs(out_auto - ref)))

    # Ragged H (not a multiple of the strip) and W (not a multiple of 8): crop + pad-col path.
    x2 = jax.random.normal(jax.random.PRNGKey(1), (1, 8, 12, 20), jnp.float32)
    params2 = init_params(jax.random.PRNGKey(2), 8)
    out2 = jax.block_until_ready(residual_block_nobn(x2, params2, tile_rows=8))
    ref2 = _reference(x2, params2)
    assert jnp.allclose(out2, ref2, atol=2e-3, rtol=2e-3), \
        float(jnp.max(jnp.abs(out2 - ref2)))

    print("KERNEL_OK")
</pallas_src>

<mosaic_0001>
module attributes {stable_mosaic.version = 11 : i64} {
  func.func @_resblock_kernel(%arg0: i32, %arg1: i32, %arg2: memref<1x8x18x4xf32, #tpu.memory_space<vmem>>, %arg3: memref<1x4x18x4xf32, #tpu.memory_space<vmem>>, %arg4: memref<36x4xbf16, #tpu.memory_space<vmem>>, %arg5: memref<1x4xf32, #tpu.memory_space<vmem>>, %arg6: memref<36x4xbf16, #tpu.memory_space<vmem>>, %arg7: memref<1x4xf32, #tpu.memory_space<vmem>>, %arg8: memref<1x8x16x4xf32, #tpu.memory_space<vmem>>, %arg9: memref<10x16x36xbf16, #tpu.memory_space<vmem>>, %arg10: memref<10x18x4xbf16, #tpu.memory_space<vmem>>) attributes {dimension_semantics = [#tpu.dimension_semantics<parallel>, #tpu.dimension_semantics<parallel>], iteration_bounds = array<i64: 2, 2>, scalar_prefetch = 0 : i64, scratch_operands = 2 : i64, tpu.core_type = #tpu.core_type<tc>, window_params = [{transform_indices = @transform_0, window_bounds = array<i64: 1, 8, 18, 4>}, {transform_indices = @transform_1, window_bounds = array<i64: 1, 4, 18, 4>}, {pipeline_mode = #tpu.pipeline_mode<synchronous>, transform_indices = @transform_2, window_bounds = array<i64: 36, 4>}, {pipeline_mode = #tpu.pipeline_mode<synchronous>, transform_indices = @transform_3, window_bounds = array<i64: 1, 4>}, {pipeline_mode = #tpu.pipeline_mode<synchronous>, transform_indices = @transform_4, window_bounds = array<i64: 36, 4>}, {pipeline_mode = #tpu.pipeline_mode<synchronous>, transform_indices = @transform_5, window_bounds = array<i64: 1, 4>}, {transform_indices = @transform_6, window_bounds = array<i64: 1, 8, 16, 4>}]} {
    %c0 = arith.constant 0 : index
    %c0_0 = arith.constant 0 : index
    %c0_1 = arith.constant 0 : index
    %c0_2 = arith.constant 0 : index
    %0 = vector.load %arg2[%c0, %c0_0, %c0_1, %c0_2] : memref<1x8x18x4xf32, #tpu.memory_space<vmem>>, vector<1x8x16x4xf32>
    %1 = vector.shape_cast %0 : vector<1x8x16x4xf32> to vector<8x16x4xf32>
    %2 = arith.truncf %1 : vector<8x16x4xf32> to vector<8x16x4xbf16>
    %c0_3 = arith.constant 0 : index
    %c0_4 = arith.constant 0 : index
    %c0_5 = arith.constant 0 : index
    %3 = vector.load %arg9[%c0_3, %c0_4, %c0_5] : memref<10x16x36xbf16, #tpu.memory_space<vmem>>, vector<8x16x4xbf16>
    tpu.vector_store %arg9[%c0_3, %c0_4, %c0_5], %2 {strides = array<i32>} : memref<10x16x36xbf16, #tpu.memory_space<vmem>>, vector<8x16x4xbf16>,
    %c0_6 = arith.constant 0 : index
    %c0_7 = arith.constant 0 : index
    %c0_8 = arith.constant 0 : index
    %c0_9 = arith.constant 0 : index
    %4 = vector.load %arg3[%c0_6, %c0_7, %c0_8, %c0_9] : memref<1x4x18x4xf32, #tpu.memory_space<vmem>>, vector<1x2x16x4xf32>
    %5 = vector.shape_cast %4 : vector<1x2x16x4xf32> to vector<2x16x4xf32>
    %6 = arith.truncf %5 : vector<2x16x4xf32> to vector<2x16x4xbf16>
    %c8 = arith.constant 8 : index
    %c0_10 = arith.constant 0 : index
    %c0_11 = arith.constant 0 : index
    %7 = vector.load %arg9[%c8, %c0_10, %c0_11] : memref<10x16x36xbf16, #tpu.memory_space<vmem>>, vector<2x16x4xbf16>
    tpu.vector_store %arg9[%c8, %c0_10, %c0_11], %6 {strides = array<i32>} : memref<10x16x36xbf16, #tpu.memory_space<vmem>>, vector<2x16x4xbf16>,
    %c0_12 = arith.constant 0 : index
    %c0_13 = arith.constant 0 : index
    %c1 = arith.constant 1 : index
    %c0_14 = arith.constant 0 : index
    %8 = vector.load %arg2[%c0_12, %c0_13, %c1, %c0_14] : memref<1x8x18x4xf32, #tpu.memory_space<vmem>>, vector<1x8x16x4xf32>
    %9 = vector.shape_cast %8 : vector<1x8x16x4xf32> to vector<8x16x4xf32>
    %10 = arith.truncf %9 : vector<8x16x4xf32> to vector<8x16x4xbf16>
    %c0_15 = arith.constant 0 : index
    %c0_16 = arith.constant 0 : index
    %c4 = arith.constant 4 : index
    %11 = vector.load %arg9[%c0_15, %c0_16, %c4] : memref<10x16x36xbf16, #tpu.memory_space<vmem>>, vector<8x16x4xbf16>
    tpu.vector_store %arg9[%c0_15, %c0_16, %c4], %10 {strides = array<i32>} : memref<10x16x36xbf16, #tpu.memory_space<vmem>>, vector<8x16x4xbf16>,
    %c0_17 = arith.constant 0 : index
    %c0_18 = arith.constant 0 : index
    %c1_19 = arith.constant 1 : index
    %c0_20 = arith.constant 0 : index
    %12 = vector.load %arg3[%c0_17, %c0_18, %c1_19, %c0_20] : memref<1x4x18x4xf32, #tpu.memory_space<vmem>>, vector<1x2x16x4xf32>
    %13 = vector.shape_cast %12 : vector<1x2x16x4xf32> to vector<2x16x4xf32>
    %14 = arith.truncf %13 : vector<2x16x4xf32> to vector<2x16x4xbf16>
    %c8_21 = arith.constant 8 : index
    %c0_22 = arith.constant 0 : index
    %c4_23 = arith.constant 4 : index
    %15 = vector.load %arg9[%c8_21, %c0_22, %c4_23] : memref<10x16x36xbf16, #tpu.memory_space<vmem>>, vector<2x16x4xbf16>
    tpu.vector_store %arg9[%c8_21, %c0_22, %c4_23], %14 {strides = array<i32>} : memref<10x16x36xbf16, #tpu.memory_space<vmem>>, vector<2x16x4xbf16>,
    %c0_24 = arith.constant 0 : index
    %c0_25 = arith.constant 0 : index
    %c2 = arith.constant 2 : index
    %c0_26 = arith.constant 0 : index
    %16 = vector.load %arg2[%c0_24, %c0_25, %c2, %c0_26] : memref<1x8x18x4xf32, #tpu.memory_space<vmem>>, vector<1x8x16x4xf32>
    %17 = vector.shape_cast %16 : vector<1x8x16x4xf32> to vector<8x16x4xf32>
    %18 = arith.truncf %17 : vector<8x16x4xf32> to vector<8x16x4xbf16>
    %c0_27 = arith.constant 0 : index
    %c0_28 = arith.constant 0 : index
    %c8_29 = arith.constant 8 : index
    %19 = vector.load %arg9[%c0_27, %c0_28, %c8_29] : memref<10x16x36xbf16, #tpu.memory_space<vmem>>, vector<8x16x4xbf16>
    tpu.vector_store %arg9[%c0_27, %c0_28, %c8_29], %18 {strides = array<i32>} : memref<10x16x36xbf16, #tpu.memory_space<vmem>>, vector<8x16x4xbf16>,
    %c0_30 = arith.constant 0 : index
    %c0_31 = arith.constant 0 : index
    %c2_32 = arith.constant 2 : index
    %c0_33 = arith.constant 0 : index
    %20 = vector.load %arg3[%c0_30, %c0_31, %c2_32, %c0_33] : memref<1x4x18x4xf32, #tpu.memory_space<vmem>>, vector<1x2x16x4xf32>
    %21 = vector.shape_cast %20 : vector<1x2x16x4xf32> to vector<2x16x4xf32>
    %22 = arith.truncf %21 : vector<2x16x4xf32> to vector<2x16x4xbf16>
    %c8_34 = arith.constant 8 : index
    %c0_35 = arith.constant 0 : index
    %c8_36 = arith.constant 8 : index
    %23 = vector.load %arg9[%c8_34, %c0_35, %c8_36] : memref<10x16x36xbf16, #tpu.memory_space<vmem>>, vector<2x16x4xbf16>
    tpu.vector_store %arg9[%c8_34, %c0_35, %c8_36], %22 {strides = array<i32>} : memref<10x16x36xbf16, #tpu.memory_space<vmem>>, vector<2x16x4xbf16>,
    %c0_37 = arith.constant 0 : index
    %c1_38 = arith.constant 1 : index
    %c0_39 = arith.constant 0 : index
    %c0_40 = arith.constant 0 : index
    %24 = vector.load %arg2[%c0_37, %c1_38, %c0_39, %c0_40] : memref<1x8x18x4xf32, #tpu.memory_space<vmem>>, vector<1x7x16x4xf32>
    %25 = vector.shape_cast %24 : vector<1x7x16x4xf32> to vector<7x16x4xf32>
    %26 = arith.truncf %25 : vector<7x16x4xf32> to vector<7x16x4xbf16>
    %c0_41 = arith.constant 0 : index
    %c0_42 = arith.constant 0 : index
    %c12 = arith.constant 12 : index
    %27 = vector.load %arg9[%c0_41, %c0_42, %c12] : memref<10x16x36xbf16, #tpu.memory_space<vmem>>, vector<7x16x4xbf16>
    tpu.vector_store %arg9[%c0_41, %c0_42, %c12], %26 {strides = array<i32>} : memref<10x16x36xbf16, #tpu.memory_space<vmem>>, vector<7x16x4xbf16>,
    %c0_43 = arith.constant 0 : index
    %c0_44 = arith.constant 0 : index
    %c0_45 = arith.constant 0 : index
    %c0_46 = arith.constant 0 : index
    %28 = vector.load %arg3[%c0_43, %c0_44, %c0_45, %c0_46] : memref<1x4x18x4xf32, #tpu.memory_space<vmem>>, vector<1x3x16x4xf32>
    %29 = vector.shape_cast %28 : vector<1x3x16x4xf32> to vector<3x16x4xf32>
    %30 = arith.truncf %29 : vector<3x16x4xf32> to vector<3x16x4xbf16>
    %c7 = arith.constant 7 : index
    %c0_47 = arith.constant 0 : index
    %c12_48 = arith.constant 12 : index
    %31 = vector.load %arg9[%c7, %c0_47, %c12_48] : memref<10x16x36xbf16, #tpu.memory_space<vmem>>, vector<3x16x4xbf16>
    tpu.vector_store %arg9[%c7, %c0_47, %c12_48], %30 {strides = array<i32>} : memref<10x16x36xbf16, #tpu.memory_space<vmem>>, vector<3x16x4xbf16>,
    %c0_49 = arith.constant 0 : index
    %c1_50 = arith.constant 1 : index
    %c1_51 = arith.constant 1 : index
    %c0_52 = arith.constant 0 : index
    %32 = vector.load %arg2[%c0_49, %c1_50, %c1_51, %c0_52] : memref<1x8x18x4xf32, #tpu.memory_space<vmem>>, vector<1x7x16x4xf32>
    %33 = vector.shape_cast %32 : vector<1x7x16x4xf32> to vector<7x16x4xf32>
    %34 = arith.truncf %33 : vector<7x16x4xf32> to vector<7x16x4xbf16>
    %c0_53 = arith.constant 0 : index
    %c0_54 = arith.constant 0 : index
    %c16 = arith.constant 16 : index
    %35 = vector.load %arg9[%c0_53, %c0_54, %c16] : memref<10x16x36xbf16, #tpu.memory_space<vmem>>, vector<7x16x4xbf16>
    tpu.vector_store %arg9[%c0_53, %c0_54, %c16], %34 {strides = array<i32>} : memref<10x16x36xbf16, #tpu.memory_space<vmem>>, vector<7x16x4xbf16>,
    %c0_55 = arith.constant 0 : index
    %c0_56 = arith.constant 0 : index
    %c1_57 = arith.constant 1 : index
    %c0_58 = arith.constant 0 : index
    %36 = vector.load %arg3[%c0_55, %c0_56, %c1_57, %c0_58] : memref<1x4x18x4xf32, #tpu.memory_space<vmem>>, vector<1x3x16x4xf32>
    %37 = vector.shape_cast %36 : vector<1x3x16x4xf32> to vector<3x16x4xf32>
    %38 = arith.truncf %37 : vector<3x16x4xf32> to vector<3x16x4xbf16>
    %c7_59 = arith.constant 7 : index
    %c0_60 = arith.constant 0 : index
    %c16_61 = arith.constant 16 : index
    %39 = vector.load %arg9[%c7_59, %c0_60, %c16_61] : memref<10x16x36xbf16, #tpu.memory_space<vmem>>, vector<3x16x4xbf16>
    tpu.vector_store %arg9[%c7_59, %c0_60, %c16_61], %38 {strides = array<i32>} : memref<10x16x36xbf16, #tpu.memory_space<vmem>>, vector<3x16x4xbf16>,
    %c0_62 = arith.constant 0 : index
    %c1_63 = arith.constant 1 : index
    %c2_64 = arith.constant 2 : index
    %c0_65 = arith.constant 0 : index
    %40 = vector.load %arg2[%c0_62, %c1_63, %c2_64, %c0_65] : memref<1x8x18x4xf32, #tpu.memory_space<vmem>>, vector<1x7x16x4xf32>
    %41 = vector.shape_cast %40 : vector<1x7x16x4xf32> to vector<7x16x4xf32>
    %42 = arith.truncf %41 : vector<7x16x4xf32> to vector<7x16x4xbf16>
    %c0_66 = arith.constant 0 : index
    %c0_67 = arith.constant 0 : index
    %c20 = arith.constant 20 : index
    %43 = vector.load %arg9[%c0_66, %c0_67, %c20] : memref<10x16x36xbf16, #tpu.memory_space<vmem>>, vector<7x16x4xbf16>
    tpu.vector_store %arg9[%c0_66, %c0_67, %c20], %42 {strides = array<i32>} : memref<10x16x36xbf16, #tpu.memory_space<vmem>>, vector<7x16x4xbf16>,
    %c0_68 = arith.constant 0 : index
    %c0_69 = arith.constant 0 : index
    %c2_70 = arith.constant 2 : index
    %c0_71 = arith.constant 0 : index
    %44 = vector.load %arg3[%c0_68, %c0_69, %c2_70, %c0_71] : memref<1x4x18x4xf32, #tpu.memory_space<vmem>>, vector<1x3x16x4xf32>
    %45 = vector.shape_cast %44 : vector<1x3x16x4xf32> to vector<3x16x4xf32>
    %46 = arith.truncf %45 : vector<3x16x4xf32> to vector<3x16x4xbf16>
    %c7_72 = arith.constant 7 : index
    %c0_73 = arith.constant 0 : index
    %c20_74 = arith.constant 20 : index
    %47 = vector.load %arg9[%c7_72, %c0_73, %c20_74] : memref<10x16x36xbf16, #tpu.memory_space<vmem>>, vector<3x16x4xbf16>
    tpu.vector_store %arg9[%c7_72, %c0_73, %c20_74], %46 {strides = array<i32>} : memref<10x16x36xbf16, #tpu.memory_space<vmem>>, vector<3x16x4xbf16>,
    %c0_75 = arith.constant 0 : index
    %c2_76 = arith.constant 2 : index
    %c0_77 = arith.constant 0 : index
    %c0_78 = arith.constant 0 : index
    %48 = vector.load %arg2[%c0_75, %c2_76, %c0_77, %c0_78] : memref<1x8x18x4xf32, #tpu.memory_space<vmem>>, vector<1x6x16x4xf32>
    %49 = vector.shape_cast %48 : vector<1x6x16x4xf32> to vector<6x16x4xf32>
    %50 = arith.truncf %49 : vector<6x16x4xf32> to vector<6x16x4xbf16>
    %c0_79 = arith.constant 0 : index
    %c0_80 = arith.constant 0 : index
    %c24 = arith.constant 24 : index
    %51 = vector.load %arg9[%c0_79, %c0_80, %c24] : memref<10x16x36xbf16, #tpu.memory_space<vmem>>, vector<6x16x4xbf16>
    tpu.vector_store %arg9[%c0_79, %c0_80, %c24], %50 {strides = array<i32>} : memref<10x16x36xbf16, #tpu.memory_space<vmem>>, vector<6x16x4xbf16>,
    %c0_81 = arith.constant 0 : index
    %c0_82 = arith.constant 0 : index
    %c0_83 = arith.constant 0 : index
    %c0_84 = arith.constant 0 : index
    %52 = vector.load %arg3[%c0_81, %c0_82, %c0_83, %c0_84] : memref<1x4x18x4xf32, #tpu.memory_space<vmem>>, vector<1x4x16x4xf32>
    %53 = vector.shape_cast %52 : vector<1x4x16x4xf32> to vector<4x16x4xf32>
    %54 = arith.truncf %53 : vector<4x16x4xf32> to vector<4x16x4xbf16>
    %c6 = arith.constant 6 : index
    %c0_85 = arith.constant 0 : index
    %c24_86 = arith.constant 24 : index
    %55 = vector.load %arg9[%c6, %c0_85, %c24_86] : memref<10x16x36xbf16, #tpu.memory_space<vmem>>, vector<4x16x4xbf16>
    tpu.vector_store %arg9[%c6, %c0_85, %c24_86], %54 {strides = array<i32>} : memref<10x16x36xbf16, #tpu.memory_space<vmem>>, vector<4x16x4xbf16>,
    %c0_87 = arith.constant 0 : index
    %c2_88 = arith.constant 2 : index
    %c1_89 = arith.constant 1 : index
    %c0_90 = arith.constant 0 : index
    %56 = vector.load %arg2[%c0_87, %c2_88, %c1_89, %c0_90] : memref<1x8x18x4xf32, #tpu.memory_space<vmem>>, vector<1x6x16x4xf32>
    %57 = vector.shape_cast %56 : vector<1x6x16x4xf32> to vector<6x16x4xf32>
    %58 = arith.truncf %57 : vector<6x16x4xf32> to vector<6x16x4xbf16>
    %c0_91 = arith.constant 0 : index
    %c0_92 = arith.constant 0 : index
    %c28 = arith.constant 28 : index
    %59 = vector.load %arg9[%c0_91, %c0_92, %c28] : memref<10x16x36xbf16, #tpu.memory_space<vmem>>, vector<6x16x4xbf16>
    tpu.vector_store %arg9[%c0_91, %c0_92, %c28], %58 {strides = array<i32>} : memref<10x16x36xbf16, #tpu.memory_space<vmem>>, vector<6x16x4xbf16>,
    %c0_93 = arith.constant 0 : index
    %c0_94 = arith.constant 0 : index
    %c1_95 = arith.constant 1 : index
    %c0_96 = arith.constant 0 : index
    %60 = vector.load %arg3[%c0_93, %c0_94, %c1_95, %c0_96] : memref<1x4x18x4xf32, #tpu.memory_space<vmem>>, vector<1x4x16x4xf32>
    %61 = vector.shape_cast %60 : vector<1x4x16x4xf32> to vector<4x16x4xf32>
    %62 = arith.truncf %61 : vector<4x16x4xf32> to vector<4x16x4xbf16>
    %c6_97 = arith.constant 6 : index
    %c0_98 = arith.constant 0 : index
    %c28_99 = arith.constant 28 : index
    %63 = vector.load %arg9[%c6_97, %c0_98, %c28_99] : memref<10x16x36xbf16, #tpu.memory_space<vmem>>, vector<4x16x4xbf16>
    tpu.vector_store %arg9[%c6_97, %c0_98, %c28_99], %62 {strides = array<i32>} : memref<10x16x36xbf16, #tpu.memory_space<vmem>>, vector<4x16x4xbf16>,
    %c0_100 = arith.constant 0 : index
    %c2_101 = arith.constant 2 : index
    %c2_102 = arith.constant 2 : index
    %c0_103 = arith.constant 0 : index
    %64 = vector.load %arg2[%c0_100, %c2_101, %c2_102, %c0_103] : memref<1x8x18x4xf32, #tpu.memory_space<vmem>>, vector<1x6x16x4xf32>
    %65 = vector.shape_cast %64 : vector<1x6x16x4xf32> to vector<6x16x4xf32>
    %66 = arith.truncf %65 : vector<6x16x4xf32> to vector<6x16x4xbf16>
    %c0_104 = arith.constant 0 : index
    %c0_105 = arith.constant 0 : index
    %c32 = arith.constant 32 : index
    %67 = vector.load %arg9[%c0_104, %c0_105, %c32] : memref<10x16x36xbf16, #tpu.memory_space<vmem>>, vector<6x16x4xbf16>
    tpu.vector_store %arg9[%c0_104, %c0_105, %c32], %66 {strides = array<i32>} : memref<10x16x36xbf16, #tpu.memory_space<vmem>>, vector<6x16x4xbf16>,
    %c0_106 = arith.constant 0 : index
    %c0_107 = arith.constant 0 : index
    %c2_108 = arith.constant 2 : index
    %c0_109 = arith.constant 0 : index
    %68 = vector.load %arg3[%c0_106, %c0_107, %c2_108, %c0_109] : memref<1x4x18x4xf32, #tpu.memory_space<vmem>>, vector<1x4x16x4xf32>
    %69 = vector.shape_cast %68 : vector<1x4x16x4xf32> to vector<4x16x4xf32>
    %70 = arith.truncf %69 : vector<4x16x4xf32> to vector<4x16x4xbf16>
    %c6_110 = arith.constant 6 : index
    %c0_111 = arith.constant 0 : index
    %c32_112 = arith.constant 32 : index
    %71 = vector.load %arg9[%c6_110, %c0_111, %c32_112] : memref<10x16x36xbf16, #tpu.memory_space<vmem>>, vector<4x16x4xbf16>
    tpu.vector_store %arg9[%c6_110, %c0_111, %c32_112], %70 {strides = array<i32>} : memref<10x16x36xbf16, #tpu.memory_space<vmem>>, vector<4x16x4xbf16>,
    %c0_113 = arith.constant 0 : index
    %c0_114 = arith.constant 0 : index
    %c0_115 = arith.constant 0 : index
    %72 = vector.load %arg9[%c0_113, %c0_114, %c0_115] : memref<10x16x36xbf16, #tpu.memory_space<vmem>>, vector<10x16x36xbf16>
    %73 = vector.shape_cast %72 : vector<10x16x36xbf16> to vector<160x36xbf16>
    %c0_116 = arith.constant 0 : index
    %c0_117 = arith.constant 0 : index
    %74 = vector.load %arg4[%c0_116, %c0_117] : memref<36x4xbf16, #tpu.memory_space<vmem>>, vector<36x4xbf16>
    %cst = arith.constant dense<0.000000e+00> : vector<160x4xf32>
    %75 = tpu.matmul %73, %74, %cst {dimension_numbers = #tpu.dot_dimension_numbers<[1], [0], [0], [1], [0, 0, 1, 1], [], []>} : vector<160x36xbf16>, vector<36x4xbf16>, vector<160x4xf32> -> vector<160x4xf32>
    %76 = vector.shape_cast %75 : vector<160x4xf32> to vector<10x16x4xf32>
    %c0_118 = arith.constant 0 : index
    %c0_119 = arith.constant 0 : index
    %77 = vector.load %arg5[%c0_118, %c0_119] : memref<1x4xf32, #tpu.memory_space<vmem>>, vector<1x4xf32>
    %78 = vector.shape_cast %77 : vector<1x4xf32> to vector<1x1x4xf32>
    %79 = vector.broadcast %78 : vector<1x1x4xf32> to vector<10x16x4xf32>
    %80 = arith.addf %76, %79 : vector<10x16x4xf32>
    %cst_120 = arith.constant 0.000000e+00 : f32
    %81 = vector.broadcast %cst_120 : f32 to vector<10x16x4xf32>
    %82 = arith.maximumf %80, %81 : vector<10x16x4xf32>
    %83 = arith.truncf %82 : vector<10x16x4xf32> to vector<10x16x4xbf16>
    %c0_121 = arith.constant 0 : index
    %c1_122 = arith.constant 1 : index
    %c0_123 = arith.constant 0 : index
    %84 = vector.load %arg10[%c0_121, %c1_122, %c0_123] : memref<10x18x4xbf16, #tpu.memory_space<vmem>>, vector<10x16x4xbf16>
    tpu.vector_store %arg10[%c0_121, %c1_122, %c0_123], %83 {strides = array<i32>} : memref<10x18x4xbf16, #tpu.memory_space<vmem>>, vector<10x16x4xbf16>,
    %cst_124 = arith.constant 0.000000e+00 : bf16
    %85 = vector.broadcast %cst_124 : bf16 to vector<10x1x4xbf16>
    %c0_125 = arith.constant 0 : index
    %c0_126 = arith.constant 0 : index
    %c0_127 = arith.constant 0 : index
    %86 = vector.load %arg10[%c0_125, %c0_126, %c0_127] : memref<10x18x4xbf16, #tpu.memory_space<vmem>>, vector<10x1x4xbf16>
    tpu.vector_store %arg10[%c0_125, %c0_126, %c0_127], %85 {strides = array<i32>} : memref<10x18x4xbf16, #tpu.memory_space<vmem>>, vector<10x1x4xbf16>,
    %cst_128 = arith.constant 0.000000e+00 : bf16
    %87 = vector.broadcast %cst_128 : bf16 to vector<10x1x4xbf16>
    %c0_129 = arith.constant 0 : index
    %c17 = arith.constant 17 : index
    %c0_130 = arith.constant 0 : index
    %88 = vector.load %arg10[%c0_129, %c17, %c0_130] : memref<10x18x4xbf16, #tpu.memory_space<vmem>>, vector<10x1x4xbf16>
    tpu.vector_store %arg10[%c0_129, %c17, %c0_130], %87 {strides = array<i32>} : memref<10x18x4xbf16, #tpu.memory_space<vmem>>, vector<10x1x4xbf16>,
    %c0_i32 = arith.constant 0 : i32
    %89 = arith.cmpi eq, %arg1, %c0_i32 : i32
    %90 = arith.extui %89 : i1 to i32
    %c0_i32_131 = arith.constant 0 : i32
    %91 = arith.cmpi ne, %90, %c0_i32_131 : i32
    scf.if %91 {
      %cst_211 = arith.constant 0.000000e+00 : bf16
      %136 = vector.broadcast %cst_211 : bf16 to vector<1x18x4xbf16>
      %c0_212 = arith.constant 0 : index
      %c0_213 = arith.constant 0 : index
      %c0_214 = arith.constant 0 : index
      %137 = vector.load %arg10[%c0_212, %c0_213, %c0_214] : memref<10x18x4xbf16, #tpu.memory_space<vmem>>, vector<1x18x4xbf16>
      tpu.vector_store %arg10[%c0_212, %c0_213, %c0_214], %136 {strides = array<i32>} : memref<10x18x4xbf16, #tpu.memory_space<vmem>>, vector<1x18x4xbf16>,
    } else {
    }
    %c1_i32 = arith.constant 1 : i32
    %92 = arith.cmpi eq, %arg1, %c1_i32 : i32
    %93 = arith.extui %92 : i1 to i32
    %c0_i32_132 = arith.constant 0 : i32
    %94 = arith.cmpi ne, %93, %c0_i32_132 : i32
    scf.if %94 {
      %cst_211 = arith.constant 0.000000e+00 : bf16
      %136 = vector.broadcast %cst_211 : bf16 to vector<1x18x4xbf16>
      %c9 = arith.constant 9 : index
      %c0_212 = arith.constant 0 : index
      %c0_213 = arith.constant 0 : index
      %137 = vector.load %arg10[%c9, %c0_212, %c0_213] : memref<10x18x4xbf16, #tpu.memory_space<vmem>>, vector<1x18x4xbf16>
      tpu.vector_store %arg10[%c9, %c0_212, %c0_213], %136 {strides = array<i32>} : memref<10x18x4xbf16, #tpu.memory_space<vmem>>, vector<1x18x4xbf16>,
    } else {
    }
    %c0_133 = arith.constant 0 : index
    %c0_134 = arith.constant 0 : index
    %c0_135 = arith.constant 0 : index
    %95 = vector.load %arg10[%c0_133, %c0_134, %c0_135] : memref<10x18x4xbf16, #tpu.memory_space<vmem>>, vector<8x16x4xbf16>
    %c0_136 = arith.constant 0 : index
    %c0_137 = arith.constant 0 : index
    %c0_138 = arith.constant 0 : index
    %96 = vector.load %arg9[%c0_136, %c0_137, %c0_138] : memref<10x16x36xbf16, #tpu.memory_space<vmem>>, vector<8x16x4xbf16>
    tpu.vector_store %arg9[%c0_136, %c0_137, %c0_138], %95 {strides = array<i32>} : memref<10x16x36xbf16, #tpu.memory_space<vmem>>, vector<8x16x4xbf16>,
    %c0_139 = arith.constant 0 : index
    %c1_140 = arith.constant 1 : index
    %c0_141 = arith.constant 0 : index
    %97 = vector.load %arg10[%c0_139, %c1_140, %c0_141] : memref<10x18x4xbf16, #tpu.memory_space<vmem>>, vector<8x16x4xbf16>
    %c0_142 = arith.constant 0 : index
    %c0_143 = arith.constant 0 : index
    %c4_144 = arith.constant 4 : index
    %98 = vector.load %arg9[%c0_142, %c0_143, %c4_144] : memref<10x16x36xbf16, #tpu.memory_space<vmem>>, vector<8x16x4xbf16>
    tpu.vector_store %arg9[%c0_142, %c0_143, %c4_144], %97 {strides = array<i32>} : memref<10x16x36xbf16, #tpu.memory_space<vmem>>, vector<8x16x4xbf16>,
    %c0_145 = arith.constant 0 : index
    %c2_146 = arith.constant 2 : index
    %c0_147 = arith.constant 0 : index
    %99 = vector.load %arg10[%c0_145, %c2_146, %c0_147] : memref<10x18x4xbf16, #tpu.memory_space<vmem>>, vector<8x16x4xbf16>
    %c0_148 = arith.constant 0 : index
    %c0_149 = arith.constant 0 : index
    %c8_150 = arith.constant 8 : index
    %100 = vector.load %arg9[%c0_148, %c0_149, %c8_150] : memref<10x16x36xbf16, #tpu.memory_space<vmem>>, vector<8x16x4xbf16>
    tpu.vector_store %arg9[%c0_148, %c0_149, %c8_150], %99 {strides = array<i32>} : memref<10x16x36xbf16, #tpu.memory_space<vmem>>, vector<8x16x4xbf16>,
    %c1_151 = arith.constant 1 : index
    %c0_152 = arith.constant 0 : index
    %c0_153 = arith.constant 0 : index
    %101 = vector.load %arg10[%c1_151, %c0_152, %c0_153] : memref<10x18x4xbf16, #tpu.memory_space<vmem>>, vector<8x16x4xbf16>
    %c0_154 = arith.constant 0 : index
    %c0_155 = arith.constant 0 : index
    %c12_156 = arith.constant 12 : index
    %102 = vector.load %arg9[%c0_154, %c0_155, %c12_156] : memref<10x16x36xbf16, #tpu.memory_space<vmem>>, vector<8x16x4xbf16>
    tpu.vector_store %arg9[%c0_154, %c0_155, %c12_156], %101 {strides = array<i32>} : memref<10x16x36xbf16, #tpu.memory_space<vmem>>, vector<8x16x4xbf16>,
    %c1_157 = arith.constant 1 : index
    %c1_158 = arith.constant 1 : index
    %c0_159 = arith.constant 0 : index
    %103 = vector.load %arg10[%c1_157, %c1_158, %c0_159] : memref<10x18x4xbf16, #tpu.memory_space<vmem>>, vector<8x16x4xbf16>
    %c0_160 = arith.constant 0 : index
    %c0_161 = arith.constant 0 : index
    %c16_162 = arith.constant 16 : index
    %104 = vector.load %arg9[%c0_160, %c0_161, %c16_162] : memref<10x16x36xbf16, #tpu.memory_space<vmem>>, vector<8x16x4xbf16>
    tpu.vector_store %arg9[%c0_160, %c0_161, %c16_162], %103 {strides = array<i32>} : memref<10x16x36xbf16, #tpu.memory_space<vmem>>, vector<8x16x4xbf16>,
    %c1_163 = arith.constant 1 : index
    %c2_164 = arith.constant 2 : index
    %c0_165 = arith.constant 0 : index
    %105 = vector.load %arg10[%c1_163, %c2_164, %c0_165] : memref<10x18x4xbf16, #tpu.memory_space<vmem>>, vector<8x16x4xbf16>
    %c0_166 = arith.constant 0 : index
    %c0_167 = arith.constant 0 : index
    %c20_168 = arith.constant 20 : index
    %106 = vector.load %arg9[%c0_166, %c0_167, %c20_168] : memref<10x16x36xbf16, #tpu.memory_space<vmem>>, vector<8x16x4xbf16>
    tpu.vector_store %arg9[%c0_166, %c0_167, %c20_168], %105 {strides = array<i32>} : memref<10x16x36xbf16, #tpu.memory_space<vmem>>, vector<8x16x4xbf16>,
    %c2_169 = arith.constant 2 : index
    %c0_170 = arith.constant 0 : index
    %c0_171 = arith.constant 0 : index
    %107 = vector.load %arg10[%c2_169, %c0_170, %c0_171] : memref<10x18x4xbf16, #tpu.memory_space<vmem>>, vector<8x16x4xbf16>
    %c0_172 = arith.constant 0 : index
    %c0_173 = arith.constant 0 : index
    %c24_174 = arith.constant 24 : index
    %108 = vector.load %arg9[%c0_172, %c0_173, %c24_174] : memref<10x16x36xbf16, #tpu.memory_space<vmem>>, vector<8x16x4xbf16>
    tpu.vector_store %arg9[%c0_172, %c0_173, %c24_174], %107 {strides = array<i32>} : memref<10x16x36xbf16, #tpu.memory_space<vmem>>, vector<8x16x4xbf16>,
    %c2_175 = arith.constant 2 : index
    %c1_176 = arith.constant 1 : index
    %c0_177 = arith.constant 0 : index
    %109 = vector.load %arg10[%c2_175, %c1_176, %c0_177] : memref<10x18x4xbf16, #tpu.memory_space<vmem>>, vector<8x16x4xbf16>
    %c0_178 = arith.constant 0 : index
    %c0_179 = arith.constant 0 : index
    %c28_180 = arith.constant 28 : index
    %110 = vector.load %arg9[%c0_178, %c0_179, %c28_180] : memref<10x16x36xbf16, #tpu.memory_space<vmem>>, vector<8x16x4xbf16>
    tpu.vector_store %arg9[%c0_178, %c0_179, %c28_180], %109 {strides = array<i32>} : memref<10x16x36xbf16, #tpu.memory_space<vmem>>, vector<8x16x4xbf16>,
    %c2_181 = arith.constant 2 : index
    %c2_182 = arith.constant 2 : index
    %c0_183 = arith.constant 0 : index
    %111 = vector.load %arg10[%c2_181, %c2_182, %c0_183] : memref<10x18x4xbf16, #tpu.memory_space<vmem>>, vector<8x16x4xbf16>
    %c0_184 = arith.constant 0 : index
    %c0_185 = arith.constant 0 : index
    %c32_186 = arith.constant 32 : index
    %112 = vector.load %arg9[%c0_184, %c0_185, %c32_186] : memref<10x16x36xbf16, #tpu.memory_space<vmem>>, vector<8x16x4xbf16>
    tpu.vector_store %arg9[%c0_184, %c0_185, %c32_186], %111 {strides = array<i32>} : memref<10x16x36xbf16, #tpu.memory_space<vmem>>, vector<8x16x4xbf16>,
    %c0_187 = arith.constant 0 : index
    %c0_188 = arith.constant 0 : index
    %c0_189 = arith.constant 0 : index
    %113 = vector.load %arg9[%c0_187, %c0_188, %c0_189] : memref<10x16x36xbf16, #tpu.memory_space<vmem>>, vector<8x16x36xbf16>
    %114 = vector.shape_cast %113 : vector<8x16x36xbf16> to vector<128x36xbf16>
    %c0_190 = arith.constant 0 : index
    %c0_191 = arith.constant 0 : index
    %115 = vector.load %arg6[%c0_190, %c0_191] : memref<36x4xbf16, #tpu.memory_space<vmem>>, vector<36x4xbf16>
    %cst_192 = arith.constant dense<0.000000e+00> : vector<128x4xf32>
    %116 = tpu.matmul %114, %115, %cst_192 {dimension_numbers = #tpu.dot_dimension_numbers<[1], [0], [0], [1], [0, 0, 1, 1], [], []>} : vector<128x36xbf16>, vector<36x4xbf16>, vector<128x4xf32> -> vector<128x4xf32>
    %117 = vector.shape_cast %116 : vector<128x4xf32> to vector<8x16x4xf32>
    %c0_193 = arith.constant 0 : index
    %c0_194 = arith.constant 0 : index
    %118 = vector.load %arg7[%c0_193, %c0_194] : memref<1x4xf32, #tpu.memory_space<vmem>>, vector<1x4xf32>
    %119 = vector.shape_cast %118 : vector<1x4xf32> to vector<1x1x4xf32>
    %120 = vector.broadcast %119 : vector<1x1x4xf32> to vector<8x16x4xf32>
    %121 = arith.addf %117, %120 : vector<8x16x4xf32>
    %c0_195 = arith.constant 0 : index
    %c2_196 = arith.constant 2 : index
    %c1_197 = arith.constant 1 : index
    %c0_198 = arith.constant 0 : index
    %122 = vector.load %arg2[%c0_195, %c2_196, %c1_197, %c0_198] : memref<1x8x18x4xf32, #tpu.memory_space<vmem>>, vector<1x6x16x4xf32>
    %123 = vector.shape_cast %122 : vector<1x6x16x4xf32> to vector<6x16x4xf32>
    %124 = vector.extract_strided_slice %121 {offsets = [0, 0, 0], sizes = [6, 16, 4], strides = [1, 1, 1]} : vector<8x16x4xf32> to vector<6x16x4xf32>
    %125 = arith.addf %123, %124 : vector<6x16x4xf32>
    %c0_199 = arith.constant 0 : index
    %c0_200 = arith.constant 0 : index
    %c0_201 = arith.constant 0 : index
    %c0_202 = arith.constant 0 : index
    %126 = vector.load %arg8[%c0_199, %c0_200, %c0_201, %c0_202] : memref<1x8x16x4xf32, #tpu.memory_space<vmem>>, vector<1x6x16x4xf32>
    %127 = vector.shape_cast %126 : vector<1x6x16x4xf32> to vector<6x16x4xf32>
    %128 = vector.shape_cast %125 : vector<6x16x4xf32> to vector<1x6x16x4xf32>
    tpu.vector_store %arg8[%c0_199, %c0_200, %c0_201, %c0_202], %128 {strides = array<i32>} : memref<1x8x16x4xf32, #tpu.memory_space<vmem>>, vector<1x6x16x4xf32>,
    %c0_203 = arith.constant 0 : index
    %c0_204 = arith.constant 0 : index
    %c1_205 = arith.constant 1 : index
    %c0_206 = arith.constant 0 : index
    %129 = vector.load %arg3[%c0_203, %c0_204, %c1_205, %c0_206] : memref<1x4x18x4xf32, #tpu.memory_space<vmem>>, vector<1x2x16x4xf32>
    %130 = vector.shape_cast %129 : vector<1x2x16x4xf32> to vector<2x16x4xf32>
    %131 = vector.extract_strided_slice %121 {offsets = [6, 0, 0], sizes = [2, 16, 4], strides = [1, 1, 1]} : vector<8x16x4xf32> to vector<2x16x4xf32>
    %132 = arith.addf %130, %131 : vector<2x16x4xf32>
    %c0_207 = arith.constant 0 : index
    %c6_208 = arith.constant 6 : index
    %c0_209 = arith.constant 0 : index
    %c0_210 = arith.constant 0 : index
    %133 = vector.load %arg8[%c0_207, %c6_208, %c0_209, %c0_210] : memref<1x8x16x4xf32, #tpu.memory_space<vmem>>, vector<1x2x16x4xf32>
    %134 = vector.shape_cast %133 : vector<1x2x16x4xf32> to vector<2x16x4xf32>
    %135 = vector.shape_cast %132 : vector<2x16x4xf32> to vector<1x2x16x4xf32>
    tpu.vector_store %arg8[%c0_207, %c6_208, %c0_209, %c0_210], %135 {strides = array<i32>} : memref<1x8x16x4xf32, #tpu.memory_space<vmem>>, vector<1x2x16x4xf32>,
    return
  }
  func.func @transform_0(%arg0: i32, %arg1: i32) -> (i32, i32, i32, i32) {
    %c0_i32 = arith.constant 0 : i32
    %c0_i32_0 = arith.constant 0 : i32
    %c0_i32_1 = arith.constant 0 : i32
    return %arg0, %arg1, %c0_i32, %c0_i32_0 : i32, i32, i32, i32
  }
  func.func @transform_1(%arg0: i32, %arg1: i32) -> (i32, i32, i32, i32) {
    %c1_i32 = arith.constant 1 : i32
    %0 = arith.addi %arg1, %c1_i32 : i32
    %c2_i32 = arith.constant 2 : i32
    %1 = arith.muli %0, %c2_i32 : i32
    %c0_i32 = arith.constant 0 : i32
    %c0_i32_0 = arith.constant 0 : i32
    %c0_i32_1 = arith.constant 0 : i32
    return %arg0, %1, %c0_i32, %c0_i32_0 : i32, i32, i32, i32
  }
  func.func @transform_2(%arg0: i32, %arg1: i32) -> (i32, i32) {
    %c0_i32 = arith.constant 0 : i32
    %c0_i32_0 = arith.constant 0 : i32
    %c0_i32_1 = arith.constant 0 : i32
    return %c0_i32, %c0_i32_0 : i32, i32
  }
  func.func @transform_3(%arg0: i32, %arg1: i32) -> (i32, i32) {
    %c0_i32 = arith.constant 0 : i32
    %c0_i32_0 = arith.constant 0 : i32
    %c0_i32_1 = arith.constant 0 : i32
    return %c0_i32, %c0_i32_0 : i32, i32
  }
  func.func @transform_4(%arg0: i32, %arg1: i32) -> (i32, i32) {
    %c0_i32 = arith.constant 0 : i32
    %c0_i32_0 = arith.constant 0 : i32
    %c0_i32_1 = arith.constant 0 : i32
    return %c0_i32, %c0_i32_0 : i32, i32
  }
  func.func @transform_5(%arg0: i32, %arg1: i32) -> (i32, i32) {
    %c0_i32 = arith.constant 0 : i32
    %c0_i32_0 = arith.constant 0 : i32
    %c0_i32_1 = arith.constant 0 : i32
    return %c0_i32, %c0_i32_0 : i32, i32
  }
  func.func @transform_6(%arg0: i32, %arg1: i32) -> (i32, i32, i32, i32) {
    %c0_i32 = arith.constant 0 : i32
    %c0_i32_0 = arith.constant 0 : i32
    %c0_i32_1 = arith.constant 0 : i32
    return %arg0, %arg1, %c0_i32, %c0_i32_0 : i32, i32, i32, i32
  }
}

</mosaic_0001>

<llo_original>
// kernel: tpu_custom_call.1
$region0: #{tpu_custom_call.1}
  #allocation0 [shape = 'u32[]', space=smem, size = 0x4, offset = 0x4, fixed_abs, tag = 'smem constant byte address 0x4 - core index']
  #allocation1 [shape = 'u32[144,128]{1,0:T(1,128)}', space=vmem, size = 0x12000, scoped, tag = 'internal scratch']
  #allocation2 [shape = 'bf16[10,16,36]{2,1,0:T(8,128)(2,1)}', space=vmem, size = 0xa000, scoped, tag = 'scratch operand']
  #allocation3 [shape = 'bf16[10,18,4]{2,1,0:T(8,128)(2,1)}', space=vmem, size = 0xf000, scoped, tag = 'scratch operand']
  %s0 = inlined_call_operand.vmem [shape: f32[2,20,18,4], index: 0, kind: input, shape index: {}]
  %s1 = inlined_call_operand.vmem [shape: f32[2,20,18,4], index: 1, kind: input, shape index: {}]
  %s2 = inlined_call_operand.vmem [shape: bf16[36,4], index: 2, kind: input, shape index: {}]
  %s3 = inlined_call_operand.vmem [shape: f32[1,4], index: 3, kind: input, shape index: {}]
  %s4 = inlined_call_operand.vmem [shape: bf16[36,4], index: 4, kind: input, shape index: {}]
  %s5 = inlined_call_operand.vmem [shape: f32[1,4], index: 5, kind: input, shape index: {}]
  %s6 = inlined_call_operand.vmem [shape: f32[2,16,16,4], index: 6, kind: output, shape index: {}]
  %s7 = sld [smem:[#allocation0]]
  $region65: #{tpu_custom_call.1} parent=0
    _
  %s9 = ssub.s32 1, %s7
  %s10 = scalar_select 0, %s9, %s7
  loop: start=0, step=1, limit=6
  $region2: #{tpu_custom_call.1} parent=0 // loop_pre_header
    _
  $region3: #{tpu_custom_call.1} parent=0 // loop_header
    %s12 = sphi 0, %s16
    %p13 = scmp.ge.s32.totalorder %s12, 6
    %s19 = sphi 0, %s31
    %s20 = sphi 0, %s27
    %s21 = sphi 0, %s19
    %s22 = sphi 0, %s20
    %s23 = sphi 0, %s21
    %s24 = sphi 0, %s22
    %s36 = sphi 0, %s38
    %s39 = sphi 0, %s36
    %s40 = sphi 0, %s39
    %s56 = sphi 0, %s40
    %s68 = sphi 0, %s70
    %s71 = sphi 0, %s68
    %s72 = sphi 0, %s71
    %s88 = sphi 0, %s72
    %s92 = sphi 0, %s92
    %s94 = sphi 0, %s92
    %s95 = sphi 0, %s94
    %s109 = sphi 0, %s95
    %s113 = sphi 0, %s113
    %s115 = sphi 0, %s113
    %s116 = sphi 0, %s115
    %s130 = sphi 0, %s116
    %s134 = sphi 0, %s134
    %s136 = sphi 0, %s134
    %s137 = sphi 0, %s136
    %s151 = sphi 0, %s137
    %s155 = sphi 0, %s155
    %s157 = sphi 0, %s155
    %s158 = sphi 0, %s157
    %s172 = sphi 0, %s158
    %s180 = sphi 0, %s182
    %s183 = sphi 0, %s180
    %s184 = sphi 0, %s183
    %s200 = sphi 0, %s184
  $region4: #{tpu_custom_call.1} parent=0 // loop_header_branch
    %15 = sbr.rel (%p13) target = $region8
  $region5: #{tpu_custom_call.1} parent=0 // loop_body
    %s17 = ssub.s32 %s12, 1
    %s18 = ssub.s32 %s12, 2
    %s25 = sadd.s32 1, %s20
    %p26 = scmp.ge.s32.totalorder %s25, 2
    %s27 = scalar_select %p26, 0, %s25
    %s28 = sadd.s32 1, %s19
    %s29 = scalar_select %p26, %s28, %s19
    %p30 = scmp.ge.s32.totalorder %s29, 2
    %s31 = scalar_select %p30, 0, %s29
    %s32 = ssub.s32 %s19, %s31
    %s33 = ssub.s32 %s20, %s27
    %s34 = sor.u32 %s32, %s33
    %p35 = scmp.eq.s32.totalorder %s34, 0
    %s37 = sadd.s32 %s36, 1
    %s38 = scalar_select %p35, %s36, %s37
    %p41 = pneg %p35
    %p42 = scmp.eq.s32.totalorder %s12, 3
    %p43 = por %p41, %p42
    %p44 = scmp.ne.s32.totalorder %s36, %s39
    %p45 = scmp.eq.s32.totalorder %s12, 0
    %p46 = por %p44, %p45
    %p47 = scmp.ne.s32.totalorder %s36, %s39
    %p48 = scmp.eq.s32.totalorder %s17, 3
    %p49 = por %p47, %p48
    %p50 = scmp.ne.s32.totalorder %s39, %s40
    %p51 = scmp.eq.s32.totalorder %s17, 0
    %p52 = por %p50, %p51
    %p53 = scmp.ne.s32.totalorder %s39, %s40
    %p54 = scmp.eq.s32.totalorder %s18, 3
    %p55 = por %p53, %p54
    %p57 = scmp.ne.s32.totalorder %s40, %s56
    %p58 = scmp.eq.s32.totalorder %s18, 0
    %p59 = por %p57, %p58
    %s60 = sadd.s32 %s20, 1
    %s61 = smul.u32 %s60, 2
    %s62 = sadd.s32 %s27, 1
    %s63 = smul.u32 %s62, 2
    %s64 = ssub.s32 %s19, %s31
    %s65 = ssub.s32 %s61, %s63
    %s66 = sor.u32 %s64, %s65
    %p67 = scmp.eq.s32.totalorder %s66, 0
    %s69 = sadd.s32 %s68, 1
    %s70 = scalar_select %p67, %s68, %s69
    %p73 = pneg %p67
    %p74 = scmp.eq.s32.totalorder %s12, 3
    %p75 = por %p73, %p74
    %p76 = scmp.ne.s32.totalorder %s68, %s71
    %p77 = scmp.eq.s32.totalorder %s12, 0
    %p78 = por %p76, %p77
    %p79 = scmp.ne.s32.totalorder %s68, %s71
    %p80 = scmp.eq.s32.totalorder %s17, 3
    %p81 = por %p79, %p80
    %p82 = scmp.ne.s32.totalorder %s71, %s72
    %p83 = scmp.eq.s32.totalorder %s17, 0
    %p84 = por %p82, %p83
    %p85 = scmp.ne.s32.totalorder %s71, %s72
    %p86 = scmp.eq.s32.totalorder %s18, 3
    %p87 = por %p85, %p86
    %p89 = scmp.ne.s32.totalorder %s72, %s88
    %p90 = scmp.eq.s32.totalorder %s18, 0
    %p91 = por %p89, %p90
    %s93 = sadd.s32 %s92, 1
    %p96 = scmp.eq.s32.totalorder %s12, 3
    %p97 = scmp.ne.s32.totalorder %s92, %s94
    %p98 = scmp.eq.s32.totalorder %s12, 0
    %p99 = por %p97, %p98
    %p100 = scmp.ne.s32.totalorder %s92, %s94
    %p101 = scmp.eq.s32.totalorder %s17, 3
    %p102 = por %p100, %p101
    %p103 = scmp.ne.s32.totalorder %s94, %s95
    %p104 = scmp.eq.s32.totalorder %s17, 0
    %p105 = por %p103, %p104
    %p106 = scmp.ne.s32.totalorder %s94, %s95
    %p107 = scmp.eq.s32.totalorder %s18, 3
    %p108 = por %p106, %p107
    %p110 = scmp.ne.s32.totalorder %s95, %s109
    %p111 = scmp.eq.s32.totalorder %s18, 0
    %p112 = por %p110, %p111
    %s114 = sadd.s32 %s113, 1
    %p117 = scmp.eq.s32.totalorder %s12, 3
    %p118 = scmp.ne.s32.totalorder %s113, %s115
    %p119 = scmp.eq.s32.totalorder %s12, 0
    %p120 = por %p118, %p119
    %p121 = scmp.ne.s32.totalorder %s113, %s115
    %p122 = scmp.eq.s32.totalorder %s17, 3
    %p123 = por %p121, %p122
    %p124 = scmp.ne.s32.totalorder %s115, %s116
    %p125 = scmp.eq.s32.totalorder %s17, 0
    %p126 = por %p124, %p125
    %p127 = scmp.ne.s32.totalorder %s115, %s116
    %p128 = scmp.eq.s32.totalorder %s18, 3
    %p129 = por %p127, %p128
    %p131 = scmp.ne.s32.totalorder %s116, %s130
    %p132 = scmp.eq.s32.totalorder %s18, 0
    %p133 = por %p131, %p132
    %s135 = sadd.s32 %s134, 1
    %p138 = scmp.eq.s32.totalorder %s12, 3
    %p139 = scmp.ne.s32.totalorder %s134, %s136
    %p140 = scmp.eq.s32.totalorder %s12, 0
    %p141 = por %p139, %p140
    %p142 = scmp.ne.s32.totalorder %s134, %s136
    %p143 = scmp.eq.s32.totalorder %s17, 3
    %p144 = por %p142, %p143
    %p145 = scmp.ne.s32.totalorder %s136, %s137
    %p146 = scmp.eq.s32.totalorder %s17, 0
    %p147 = por %p145, %p146
    %p148 = scmp.ne.s32.totalorder %s136, %s137
    %p149 = scmp.eq.s32.totalorder %s18, 3
    %p150 = por %p148, %p149
    %p152 = scmp.ne.s32.totalorder %s137, %s151
    %p153 = scmp.eq.s32.totalorder %s18, 0
    %p154 = por %p152, %p153
    %s156 = sadd.s32 %s155, 1
    %p159 = scmp.eq.s32.totalorder %s12, 3
    %p160 = scmp.ne.s32.totalorder %s155, %s157
    %p161 = scmp.eq.s32.totalorder %s12, 0
    %p162 = por %p160, %p161
    %p163 = scmp.ne.s32.totalorder %s155, %s157
    %p164 = scmp.eq.s32.totalorder %s17, 3
    %p165 = por %p163, %p164
    %p166 = scmp.ne.s32.totalorder %s157, %s158
    %p167 = scmp.eq.s32.totalorder %s17, 0
    %p168 = por %p166, %p167
    %p169 = scmp.ne.s32.totalorder %s157, %s158
    %p170 = scmp.eq.s32.totalorder %s18, 3
    %p171 = por %p169, %p170
    %p173 = scmp.ne.s32.totalorder %s158, %s172
    %p174 = scmp.eq.s32.totalorder %s18, 0
    %p175 = por %p173, %p174
    %s176 = ssub.s32 %s19, %s31
    %s177 = ssub.s32 %s20, %s27
    %s178 = sor.u32 %s176, %s177
    %p179 = scmp.eq.s32.totalorder %s178, 0
    %s181 = sadd.s32 %s180, 1
    %s182 = scalar_select %p179, %s180, %s181
    %p185 = pneg %p179
    %p186 = scmp.eq.s32.totalorder %s12, 3
    %p187 = por %p185, %p186
    %p188 = scmp.ne.s32.totalorder %s180, %s183
    %p189 = scmp.eq.s32.totalorder %s12, 0
    %p190 = por %p188, %p189
    %p191 = scmp.ne.s32.totalorder %s180, %s183
    %p192 = scmp.eq.s32.totalorder %s17, 3
    %p193 = por %p191, %p192
    %p194 = scmp.ne.s32.totalorder %s183, %s184
    %p195 = scmp.eq.s32.totalorder %s17, 0
    %p196 = por %p194, %p195
    %p197 = scmp.ne.s32.totalorder %s183, %s184
    %p198 = scmp.eq.s32.totalorder %s18, 3
    %p199 = por %p197, %p198
    %p201 = scmp.ne.s32.totalorder %s184, %s200
    %p202 = scmp.eq.s32.totalorder %s18, 0
    %p203 = por %p201, %p202
    %p204 = scmp.le.s32.totalorder 1, %s12
    %p205 = scmp.lt.s32.totalorder %s12, 5
    %p206 = pnand %p204, %p205
    %p207 = pneg %p206
    // Predicated region
    $region9: #{tpu_custom_call.1} parent=5 // pred_check
      _
    $region10: #{tpu_custom_call.1} parent=5 // pred_check_branch
      %209 = sbr.rel (%p206) target = $region12
    $region11: #{tpu_custom_call.1} parent=5 // pred_region
      %s210 = ssub.s32 %s12, 1
      // Predicated region
      $region13: #{tpu_custom_call.1} parent=11 // pred_check
        %p211 = pneg %p105
      $region14: #{tpu_custom_call.1} parent=11 // pred_check_branch
        %213 = sbr.rel (%p211) target = $region16
      $region15: #{tpu_custom_call.1} parent=11 // pred_region
        _
      $region16: #{tpu_custom_call.1} parent=11 // pred_fallthru
        _
      // Predicated region
      $region17: #{tpu_custom_call.1} parent=11 // pred_check
        %p214 = pneg %p126
      $region18: #{tpu_custom_call.1} parent=11 // pred_check_branch
        %216 = sbr.rel (%p214) target = $region20
      $region19: #{tpu_custom_call.1} parent=11 // pred_region
        _
      $region20: #{tpu_custom_call.1} parent=11 // pred_fallthru
        _
      // Predicated region
      $region21: #{tpu_custom_call.1} parent=11 // pred_check
        %p217 = pneg %p147
      $region22: #{tpu_custom_call.1} parent=11 // pred_check_branch
        %219 = sbr.rel (%p217) target = $region24
      $region23: #{tpu_custom_call.1} parent=11 // pred_region
        _
      $region24: #{tpu_custom_call.1} parent=11 // pred_fallthru
        _
      // Predicated region
      $region25: #{tpu_custom_call.1} parent=11 // pred_check
        %p220 = pneg %p168
      $region26: #{tpu_custom_call.1} parent=11 // pred_check_branch
        %222 = sbr.rel (%p220) target = $region28
      $region27: #{tpu_custom_call.1} parent=11 // pred_region
        _
      $region28: #{tpu_custom_call.1} parent=11 // pred_fallthru
        _
    $region12: #{tpu_custom_call.1} parent=5 // pred_fallthru
      _
    %p223 = scmp.lt.s32.totalorder %s12, 4
    // Predicated region
    $region29: #{tpu_custom_call.1} parent=5 // pred_check
      %p224 = pneg %p223
    $region30: #{tpu_custom_call.1} parent=5 // pred_check_branch
      %226 = sbr.rel (%p224) target = $region32
    $region31: #{tpu_custom_call.1} parent=5 // pred_region
      // Predicated region
      $region33: #{tpu_custom_call.1} parent=31 // pred_check
        %p227 = pneg %p46
      $region34: #{tpu_custom_call.1} parent=31 // pred_check_branch
        %229 = sbr.rel (%p227) target = $region36
      $region35: #{tpu_custom_call.1} parent=31 // pred_region
        %s230 = smul.u32 8, %s20
        %s231 = ssub.s32 20, %s230
        %p232 = scmp.lt.s32.totalorder %s231, 8
        %s233 = scalar_select %p232, %s231, 8
        %s234 = smul.u32 128, %s233
        %s235 = smul.u32 %s234, 3
        %p236 = scmp.lt.s32.totalorder %s19, 1
        %s237 = scalar_select %p236, %s19, 1
        %p238 = scmp.lt.s32.totalorder %s230, 19
        %s239 = scalar_select %p238, %s230, 19
        %s240 = smul.addr %s239, 3
        %s241 = smul.addr %s237, 60
        %s242 = sadd.s32 %s240, %s241
        %s243 = smul.addr %s242, 8
        %s244 = scalar_lea.vmem %s0, %s243
        %s245 = smul.u32 8, %s20
        %s246 = ssub.s32 20, %s245
        %p247 = scmp.lt.s32.totalorder %s246, 8
        %s248 = scalar_select %p247, %s246, 8
        %s249 = smul.u32 128, %s248
        %s250 = smul.u32 %s249, 3
      $region36: #{tpu_custom_call.1} parent=31 // pred_fallthru
        _
      // Predicated region
      $region37: #{tpu_custom_call.1} parent=31 // pred_check
        %p251 = pneg %p78
      $region38: #{tpu_custom_call.1} parent=31 // pred_check_branch
        %253 = sbr.rel (%p251) target = $region40
      $region39: #{tpu_custom_call.1} parent=31 // pred_region
        %s254 = sadd.s32 %s20, 1
        %s255 = smul.u32 %s254, 2
        %s256 = smul.u32 4, %s255
        %p257 = scmp.lt.s32.totalorder %s19, 1
        %s258 = scalar_select %p257, %s19, 1
        %p259 = scmp.lt.s32.totalorder %s256, 19
        %s260 = scalar_select %p259, %s256, 19
        %s261 = smul.addr %s260, 3
        %s262 = smul.addr %s258, 60
        %s263 = sadd.s32 %s261, %s262
        %s264 = smul.addr %s263, 8
        %s265 = scalar_lea.vmem %s1, %s264
        %s266 = sadd.s32 %s20, 1
        %s267 = smul.u32 %s266, 2
        %s268 = smul.u32 4, %s267
      $region40: #{tpu_custom_call.1} parent=31 // pred_fallthru
        _
    $region32: #{tpu_custom_call.1} parent=5 // pred_fallthru
      _
    %p269 = scmp.le.s32.totalorder 1, %s12
    %p270 = scmp.lt.s32.totalorder %s12, 5
    %p271 = pnand %p269, %p270
    %p272 = pneg %p271
    // Predicated region
    $region41: #{tpu_custom_call.1} parent=5 // pred_check
      _
    $region42: #{tpu_custom_call.1} parent=5 // pred_check_branch
      %274 = sbr.rel (%p271) target = $region44
    $region43: #{tpu_custom_call.1} parent=5 // pred_region
      %s275 = ssub.s32 %s12, 1
      %s276 = smul.u32 8, %s22
      %s277 = ssub.s32 20, %s276
      %p278 = scmp.lt.s32.totalorder %s277, 8
      %s279 = scalar_select %p278, %s277, 8
      %s280 = smul.u32 128, %s279
      %s281 = smul.u32 %s280, 3
      %p282 = scmp.lt.s32.totalorder %s21, 1
      %s283 = scalar_select %p282, %s21, 1
      %p284 = scmp.lt.s32.totalorder %s276, 19
      %s285 = scalar_select %p284, %s276, 19
      %s286 = smul.addr %s285, 3
      %s287 = smul.addr %s283, 60
      %s288 = sadd.s32 %s286, %s287
      %s289 = smul.addr %s288, 8
      %s290 = scalar_lea.vmem %s0, %s289
      %p291 = pneg %p52
      %p292 = pneg %p49
      %s293 = sadd.s32 %s22, 1
      %s294 = smul.u32 %s293, 2
      %s295 = smul.u32 4, %s294
      %p296 = scmp.lt.s32.totalorder %s21, 1
      %s297 = scalar_select %p296, %s21, 1
      %p298 = scmp.lt.s32.totalorder %s295, 19
      %s299 = scalar_select %p298, %s295, 19
      %s300 = smul.addr %s299, 3
      %s301 = smul.addr %s297, 60
      %s302 = sadd.s32 %s300, %s301
      %s303 = smul.addr %s302, 8
      %s304 = scalar_lea.vmem %s1, %s303
      %p305 = pneg %p84
      %p306 = pneg %p81
      %p307 = pneg %p105
      %p308 = pneg %p102
      %p309 = pneg %p126
      %p310 = pneg %p123
      %p311 = pneg %p147
      %p312 = pneg %p144
      %p313 = pneg %p168
      %p314 = pneg %p165
      %p315 = pneg %p196
      %p316 = pneg %p193
      %s317 = smul.u32 8, %s22
      %p318 = scmp.lt.s32.totalorder %s21, 1
      %s319 = scalar_select %p318, %s21, 1
      %p320 = scmp.lt.s32.totalorder %s317, 15
      %s321 = scalar_select %p320, %s317, 15
      %s322 = smul.addr %s321, 2
      %s323 = smul.addr %s319, 32
      %s324 = sadd.s32 %s322, %s323
      %s325 = smul.addr %s324, 8
      %s326 = scalar_lea.vmem %s6, %s325
      %s327 = smul.u32 8, %s22
      %s328 = ssub.s32 20, %s327
      %p329 = scmp.lt.s32.totalorder %s328, 8
      %s330 = scalar_select %p329, %s328, 8
      %s331 = smul.u32 128, %s330
      %s332 = smul.u32 %s331, 3
      %p333 = scmp.lt.s32.totalorder %s21, 1
      %s334 = scalar_select %p333, %s21, 1
      %p335 = scmp.lt.s32.totalorder %s327, 19
      %s336 = scalar_select %p335, %s327, 19
      %s337 = smul.addr %s336, 3
      %s338 = smul.addr %s334, 60
      %s339 = sadd.s32 %s337, %s338
      %s340 = smul.addr %s339, 8
      %s341 = scalar_lea.vmem %s0, %s340
      %s342 = smul.u32 8, %s22
      %s343 = ssub.s32 20, %s342
      %p344 = scmp.lt.s32.totalorder %s343, 8
      %s345 = scalar_select %p344, %s343, 8
      %s346 = smul.u32 128, %s345
      %s347 = smul.u32 %s346, 3
      %s348 = sadd.s32 %s22, 1
      %s349 = smul.u32 %s348, 2
      %s350 = smul.u32 4, %s349
      %p351 = scmp.lt.s32.totalorder %s21, 1
      %s352 = scalar_select %p351, %s21, 1
      %p353 = scmp.lt.s32.totalorder %s350, 19
      %s354 = scalar_select %p353, %s350, 19
      %s355 = smul.addr %s354, 3
      %s356 = smul.addr %s352, 60
      %s357 = sadd.s32 %s355, %s356
      %s358 = smul.addr %s357, 8
      %s359 = scalar_lea.vmem %s1, %s358
      %s360 = sadd.s32 %s22, 1
      %s361 = smul.u32 %s360, 2
      %s362 = smul.u32 4, %s361
      %s363 = smul.u32 8, %s22
      %p364 = scmp.lt.s32.totalorder %s21, 1
      %s365 = scalar_select %p364, %s21, 1
      %p366 = scmp.lt.s32.totalorder %s363, 15
      %s367 = scalar_select %p366, %s363, 15
      %s368 = smul.addr %s367, 2
      %s369 = smul.addr %s365, 32
      %s370 = sadd.s32 %s368, %s369
      %s371 = smul.addr %s370, 8
      %s372 = scalar_lea.vmem %s6, %s371
      %s373 = smul.u32 8, %s22
      %v375 = vld [vmem:[%s341] sm:$0xff]
      %v376 = vld [vmem:[%s341 + $0x8] sm:$0xff]
      %v377 = vld [vmem:[%s341 + $0x18] sm:$0xff]
      %v378 = vld [vmem:[%s341 + $0x20] sm:$0xff]
      %v379 = vld [vmem:[%s341 + $0x30] sm:$0xff]
      %v380 = vld [vmem:[%s341 + $0x38] sm:$0xff]
      %v381 = vld [vmem:[%s341 + $0x48] sm:$0xff]
      %v382 = vld [vmem:[%s341 + $0x50] sm:$0xff]
      %v383 = vld [vmem:[%s341 + $0x60] sm:$0xff]
      %v384 = vld [vmem:[%s341 + $0x68] sm:$0xff]
      %v385 = vld [vmem:[%s341 + $0x78] sm:$0xff]
      %v386 = vld [vmem:[%s341 + $0x80] sm:$0xff]
      %v387 = vld [vmem:[%s341 + $0x90] sm:$0xff]
      %v388 = vld [vmem:[%s341 + $0x98] sm:$0xff]
      %v389 = vld [vmem:[%s341 + $0xa8] sm:$0xff]
      %v390 = vld [vmem:[%s341 + $0xb0] sm:$0xff]
      %v391 = vpack.c.bf16 %v376, %v375
      %v392 = vpack.c.bf16 %v378, %v377
      %v393 = vpack.c.bf16 %v380, %v379
      %v394 = vpack.c.bf16 %v382, %v381
      %v395 = vpack.c.bf16 %v384, %v383
      %v396 = vpack.c.bf16 %v386, %v385
      %v397 = vpack.c.bf16 %v388, %v387
      %v398 = vpack.c.bf16 %v390, %v389
      %v407 = vunpack.c.l.b16 %v391
      %v408 = vunpack.c.h.b16 %v391
      %v409 = vunpack.c.l.b16 %v392
      %v410 = vunpack.c.h.b16 %v392
      %v411 = vunpack.c.l.b16 %v393
      %v412 = vunpack.c.h.b16 %v393
      %v413 = vunpack.c.l.b16 %v394
      %v414 = vunpack.c.h.b16 %v394
      %v415 = vunpack.c.l.b16 %v395
      %v416 = vunpack.c.h.b16 %v395
      %v417 = vunpack.c.l.b16 %v396
      %v418 = vunpack.c.h.b16 %v396
      %v419 = vunpack.c.l.b16 %v397
      %v420 = vunpack.c.h.b16 %v397
      %v421 = vunpack.c.l.b16 %v398
      %v422 = vunpack.c.h.b16 %v398
      %v423 = vpack.c.b16 %v407, %v407
      %v424 = vpack.c.b16 %v408, %v408
      %v425 = vpack.c.b16 %v409, %v409
      %v426 = vpack.c.b16 %v410, %v410
      %v427 = vpack.c.b16 %v411, %v411
      %v428 = vpack.c.b16 %v412, %v412
      %v429 = vpack.c.b16 %v413, %v413
      %v430 = vpack.c.b16 %v414, %v414
      %v431 = vpack.c.b16 %v415, %v415
      %v432 = vpack.c.b16 %v416, %v416
      %v433 = vpack.c.b16 %v417, %v417
      %v434 = vpack.c.b16 %v418, %v418
      %v435 = vpack.c.b16 %v419, %v419
      %v436 = vpack.c.b16 %v420, %v420
      %v437 = vpack.c.b16 %v421, %v421
      %v438 = vpack.c.b16 %v422, %v422
      %vm455 = vcmask 27648
      %456 = vst.msk [vmem:[#allocation2] sm:$0xf] %vm455, %v423
      %457 = vst.msk [vmem:[#allocation2 + $0x4] sm:$0xf] %vm455, %v424
      %458 = vst.msk [vmem:[#allocation2 + $0x8] sm:$0xf] %vm455, %v425
      %459 = vst.msk [vmem:[#allocation2 + $0xc] sm:$0xf] %vm455, %v426
      %460 = vst.msk [vmem:[#allocation2 + $0x10] sm:$0xf] %vm455, %v427
      %461 = vst.msk [vmem:[#allocation2 + $0x14] sm:$0xf] %vm455, %v428
      %462 = vst.msk [vmem:[#allocation2 + $0x18] sm:$0xf] %vm455, %v429
      %463 = vst.msk [vmem:[#allocation2 + $0x1c] sm:$0xf] %vm455, %v430
      %464 = vst.msk [vmem:[#allocation2 + $0x20] sm:$0xf] %vm455, %v431
      %465 = vst.msk [vmem:[#allocation2 + $0x24] sm:$0xf] %vm455, %v432
      %466 = vst.msk [vmem:[#allocation2 + $0x28] sm:$0xf] %vm455, %v433
      %467 = vst.msk [vmem:[#allocation2 + $0x2c] sm:$0xf] %vm455, %v434
      %468 = vst.msk [vmem:[#allocation2 + $0x30] sm:$0xf] %vm455, %v435
      %469 = vst.msk [vmem:[#allocation2 + $0x34] sm:$0xf] %vm455, %v436
      %470 = vst.msk [vmem:[#allocation2 + $0x38] sm:$0xf] %vm455, %v437
      %471 = vst.msk [vmem:[#allocation2 + $0x3c] sm:$0xf] %vm455, %v438
      %v472 = vld [vmem:[%s359] sm:$0xff]
      %v473 = vld [vmem:[%s359 + $0x8] sm:$0xff]
      %v474 = vld [vmem:[%s359 + $0x18] sm:$0xff]
      %v475 = vld [vmem:[%s359 + $0x20] sm:$0xff]
      %v476 = vpack.c.bf16 %v473, %v472
      %v477 = vpack.c.bf16 %v475, %v474
      %v480 = vunpack.c.l.b16 %v476
      %v481 = vunpack.c.h.b16 %v476
      %v482 = vunpack.c.l.b16 %v477
      %v483 = vunpack.c.h.b16 %v477
      %v484 = vpack.c.b16 %v480, %v480
      %v485 = vpack.c.b16 %v481, %v481
      %v486 = vpack.c.b16 %v482, %v482
      %v487 = vpack.c.b16 %v483, %v483
      %s492 = scalar_lea.vmem [#allocation2], 64
      %493 = vst.msk [vmem:[%s492] sm:$0xf] %vm455, %v484
      %494 = vst.msk [vmem:[%s492 + $0x4] sm:$0xf] %vm455, %v485
      %495 = vst.msk [vmem:[%s492 + $0x8] sm:$0xf] %vm455, %v486
      %496 = vst.msk [vmem:[%s492 + $0xc] sm:$0xf] %vm455, %v487
      %v497 = vld [vmem:[%s341 + $0x1] sm:$0xff]
      %v498 = vld [vmem:[%s341 + $0x9] sm:$0xff]
      %v499 = vld [vmem:[%s341 + $0x19] sm:$0xff]
      %v500 = vld [vmem:[%s341 + $0x21] sm:$0xff]
      %v501 = vld [vmem:[%s341 + $0x31] sm:$0xff]
      %v502 = vld [vmem:[%s341 + $0x39] sm:$0xff]
      %v503 = vld [vmem:[%s341 + $0x49] sm:$0xff]
      %v504 = vld [vmem:[%s341 + $0x51] sm:$0xff]
      %v505 = vld [vmem:[%s341 + $0x61] sm:$0xff]
      %v506 = vld [vmem:[%s341 + $0x69] sm:$0xff]
      %v507 = vld [vmem:[%s341 + $0x79] sm:$0xff]
      %v508 = vld [vmem:[%s341 + $0x81] sm:$0xff]
      %v509 = vld [vmem:[%s341 + $0x91] sm:$0xff]
      %v510 = vld [vmem:[%s341 + $0x99] sm:$0xff]
      %v511 = vld [vmem:[%s341 + $0xa9] sm:$0xff]
      %v512 = vld [vmem:[%s341 + $0xb1] sm:$0xff]
      %v513 = vpack.c.bf16 %v498, %v497
      %v514 = vpack.c.bf16 %v500, %v499
      %v515 = vpack.c.bf16 %v502, %v501
      %v516 = vpack.c.bf16 %v504, %v503
      %v517 = vpack.c.bf16 %v506, %v505
      %v518 = vpack.c.bf16 %v508, %v507
      %v519 = vpack.c.bf16 %v510, %v509
      %v520 = vpack.c.bf16 %v512, %v511
      %v529 = vunpack.c.l.b16 %v513
      %v530 = vunpack.c.h.b16 %v513
      %v531 = vunpack.c.l.b16 %v514
      %v532 = vunpack.c.h.b16 %v514
      %v533 = vunpack.c.l.b16 %v515
      %v534 = vunpack.c.h.b16 %v515
      %v535 = vunpack.c.l.b16 %v516
      %v536 = vunpack.c.h.b16 %v516
      %v537 = vunpack.c.l.b16 %v517
      %v538 = vunpack.c.h.b16 %v517
      %v539 = vunpack.c.l.b16 %v518
      %v540 = vunpack.c.h.b16 %v518
      %v541 = vunpack.c.l.b16 %v519
      %v542 = vunpack.c.h.b16 %v519
      %v543 = vunpack.c.l.b16 %v520
      %v544 = vunpack.c.h.b16 %v520
      %v545 = vpack.c.b16 %v529, %v529
      %v546 = vpack.c.b16 %v530, %v530
      %v547 = vpack.c.b16 %v531, %v531
      %v548 = vpack.c.b16 %v532, %v532
      %v549 = vpack.c.b16 %v533, %v533
      %v550 = vpack.c.b16 %v534, %v534
      %v551 = vpack.c.b16 %v535, %v535
      %v552 = vpack.c.b16 %v536, %v536
      %v553 = vpack.c.b16 %v537, %v537
      %v554 = vpack.c.b16 %v538, %v538
      %v555 = vpack.c.b16 %v539, %v539
      %v556 = vpack.c.b16 %v540, %v540
      %v557 = vpack.c.b16 %v541, %v541
      %v558 = vpack.c.b16 %v542, %v542
      %v559 = vpack.c.b16 %v543, %v543
      %v560 = vpack.c.b16 %v544, %v544
      %561 = vrot.lane.b32.xlu0 %v545, 4
      %v562 = vpop.permute.xlu0 %561
      %563 = vrot.lane.b32.xlu0 %v546, 4
      %v564 = vpop.permute.xlu0 %563
      %565 = vrot.lane.b32.xlu0 %v547, 4
      %v566 = vpop.permute.xlu0 %565
      %567 = vrot.lane.b32.xlu0 %v548, 4
      %v568 = vpop.permute.xlu0 %567
      %569 = vrot.lane.b32.xlu0 %v549, 4
      %v570 = vpop.permute.xlu0 %569
      %571 = vrot.lane.b32.xlu0 %v550, 4
      %v572 = vpop.permute.xlu0 %571
      %573 = vrot.lane.b32.xlu0 %v551, 4
      %v574 = vpop.permute.xlu0 %573
      %575 = vrot.lane.b32.xlu0 %v552, 4
      %v576 = vpop.permute.xlu0 %575
      %577 = vrot.lane.b32.xlu0 %v553, 4
      %v578 = vpop.permute.xlu0 %577
      %579 = vrot.lane.b32.xlu0 %v554, 4
      %v580 = vpop.permute.xlu0 %579
      %581 = vrot.lane.b32.xlu0 %v555, 4
      %v582 = vpop.permute.xlu0 %581
      %583 = vrot.lane.b32.xlu0 %v556, 4
      %v584 = vpop.permute.xlu0 %583
      %585 = vrot.lane.b32.xlu0 %v557, 4
      %v586 = vpop.permute.xlu0 %585
      %587 = vrot.lane.b32.xlu0 %v558, 4
      %v588 = vpop.permute.xlu0 %587
      %589 = vrot.lane.b32.xlu0 %v559, 4
      %v590 = vpop.permute.xlu0 %589
      %591 = vrot.lane.b32.xlu0 %v560, 4
      %v592 = vpop.permute.xlu0 %591
      %vm609 = vcmask 60448
      %610 = vst.msk [vmem:[#allocation2] sm:$0xf] %vm609, %v562
      %611 = vst.msk [vmem:[#allocation2 + $0x4] sm:$0xf] %vm609, %v564
      %612 = vst.msk [vmem:[#allocation2 + $0x8] sm:$0xf] %vm609, %v566
      %613 = vst.msk [vmem:[#allocation2 + $0xc] sm:$0xf] %vm609, %v568
      %614 = vst.msk [vmem:[#allocation2 + $0x10] sm:$0xf] %vm609, %v570
      %615 = vst.msk [vmem:[#allocation2 + $0x14] sm:$0xf] %vm609, %v572
      %616 = vst.msk [vmem:[#allocation2 + $0x18] sm:$0xf] %vm609, %v574
      %617 = vst.msk [vmem:[#allocation2 + $0x1c] sm:$0xf] %vm609, %v576
      %618 = vst.msk [vmem:[#allocation2 + $0x20] sm:$0xf] %vm609, %v578
      %619 = vst.msk [vmem:[#allocation2 + $0x24] sm:$0xf] %vm609, %v580
      %620 = vst.msk [vmem:[#allocation2 + $0x28] sm:$0xf] %vm609, %v582
      %621 = vst.msk [vmem:[#allocation2 + $0x2c] sm:$0xf] %vm609, %v584
      %622 = vst.msk [vmem:[#allocation2 + $0x30] sm:$0xf] %vm609, %v586
      %623 = vst.msk [vmem:[#allocation2 + $0x34] sm:$0xf] %vm609, %v588
      %624 = vst.msk [vmem:[#allocation2 + $0x38] sm:$0xf] %vm609, %v590
      %625 = vst.msk [vmem:[#allocation2 + $0x3c] sm:$0xf] %vm609, %v592
      %v626 = vld [vmem:[%s359 + $0x1] sm:$0xff]
      %v627 = vld [vmem:[%s359 + $0x9] sm:$0xff]
      %v628 = vld [vmem:[%s359 + $0x19] sm:$0xff]
      %v629 = vld [vmem:[%s359 + $0x21] sm:$0xff]
      %v630 = vpack.c.bf16 %v627, %v626
      %v631 = vpack.c.bf16 %v629, %v628
      %v634 = vunpack.c.l.b16 %v630
      %v635 = vunpack.c.h.b16 %v630
      %v636 = vunpack.c.l.b16 %v631
      %v637 = vunpack.c.h.b16 %v631
      %v638 = vpack.c.b16 %v634, %v634
      %v639 = vpack.c.b16 %v635, %v635
      %v640 = vpack.c.b16 %v636, %v636
      %v641 = vpack.c.b16 %v637, %v637
      %642 = vrot.lane.b32.xlu0 %v638, 4
      %v643 = vpop.permute.xlu0 %642
      %644 = vrot.lane.b32.xlu0 %v639, 4
      %v645 = vpop.permute.xlu0 %644
      %646 = vrot.lane.b32.xlu0 %v640, 4
      %v647 = vpop.permute.xlu0 %646
      %648 = vrot.lane.b32.xlu0 %v641, 4
      %v649 = vpop.permute.xlu0 %648
      %654 = vst.msk [vmem:[%s492] sm:$0xf] %vm609, %v643
      %655 = vst.msk [vmem:[%s492 + $0x4] sm:$0xf] %vm609, %v645
      %656 = vst.msk [vmem:[%s492 + $0x8] sm:$0xf] %vm609, %v647
      %657 = vst.msk [vmem:[%s492 + $0xc] sm:$0xf] %vm609, %v649
      %v658 = vld [vmem:[%s341 + $0x2] sm:$0xff]
      %v659 = vld [vmem:[%s341 + $0xa] sm:$0xff]
      %v660 = vld [vmem:[%s341 + $0x1a] sm:$0xff]
      %v661 = vld [vmem:[%s341 + $0x22] sm:$0xff]
      %v662 = vld [vmem:[%s341 + $0x32] sm:$0xff]
      %v663 = vld [vmem:[%s341 + $0x3a] sm:$0xff]
      %v664 = vld [vmem:[%s341 + $0x4a] sm:$0xff]
      %v665 = vld [vmem:[%s341 + $0x52] sm:$0xff]
      %v666 = vld [vmem:[%s341 + $0x62] sm:$0xff]
      %v667 = vld [vmem:[%s341 + $0x6a] sm:$0xff]
      %v668 = vld [vmem:[%s341 + $0x7a] sm:$0xff]
      %v669 = vld [vmem:[%s341 + $0x82] sm:$0xff]
      %v670 = vld [vmem:[%s341 + $0x92] sm:$0xff]
      %v671 = vld [vmem:[%s341 + $0x9a] sm:$0xff]
      %v672 = vld [vmem:[%s341 + $0xaa] sm:$0xff]
      %v673 = vld [vmem:[%s341 + $0xb2] sm:$0xff]
      %v674 = vpack.c.bf16 %v659, %v658
      %v675 = vpack.c.bf16 %v661, %v660
      %v676 = vpack.c.bf16 %v663, %v662
      %v677 = vpack.c.bf16 %v665, %v664
      %v678 = vpack.c.bf16 %v667, %v666
      %v679 = vpack.c.bf16 %v669, %v668
      %v680 = vpack.c.bf16 %v671, %v670
      %v681 = vpack.c.bf16 %v673, %v672
      %v690 = vunpack.c.l.b16 %v674
      %v691 = vunpack.c.h.b16 %v674
      %v692 = vunpack.c.l.b16 %v675
      %v693 = vunpack.c.h.b16 %v675
      %v694 = vunpack.c.l.b16 %v676
      %v695 = vunpack.c.h.b16 %v676
      %v696 = vunpack.c.l.b16 %v677
      %v697 = vunpack.c.h.b16 %v677
      %v698 = vunpack.c.l.b16 %v678
      %v699 = vunpack.c.h.b16 %v678
      %v700 = vunpack.c.l.b16 %v679
      %v701 = vunpack.c.h.b16 %v679
      %v702 = vunpack.c.l.b16 %v680
      %v703 = vunpack.c.h.b16 %v680
      %v704 = vunpack.c.l.b16 %v681
      %v705 = vunpack.c.h.b16 %v681
      %v706 = vpack.c.b16 %v690, %v690
      %v707 = vpack.c.b16 %v691, %v691
      %v708 = vpack.c.b16 %v692, %v692
      %v709 = vpack.c.b16 %v693, %v693
      %v710 = vpack.c.b16 %v694, %v694
      %v711 = vpack.c.b16 %v695, %v695
      %v712 = vpack.c.b16 %v696, %v696
      %v713 = vpack.c.b16 %v697, %v697
      %v714 = vpack.c.b16 %v698, %v698
      %v715 = vpack.c.b16 %v699, %v699
      %v716 = vpack.c.b16 %v700, %v700
      %v717 = vpack.c.b16 %v701, %v701
      %v718 = vpack.c.b16 %v702, %v702
      %v719 = vpack.c.b16 %v703, %v703
      %v720 = vpack.c.b16 %v704, %v704
      %v721 = vpack.c.b16 %v705, %v705
      %722 = vrot.lane.b32.xlu0 %v706, 8
      %v723 = vpop.permute.xlu0 %722
      %724 = vrot.lane.b32.xlu0 %v707, 8
      %v725 = vpop.permute.xlu0 %724
      %726 = vrot.lane.b32.xlu0 %v708, 8
      %v727 = vpop.permute.xlu0 %726
      %728 = vrot.lane.b32.xlu0 %v709, 8
      %v729 = vpop.permute.xlu0 %728
      %730 = vrot.lane.b32.xlu0 %v710, 8
      %v731 = vpop.permute.xlu0 %730
      %732 = vrot.lane.b32.xlu0 %v711, 8
      %v733 = vpop.permute.xlu0 %732
      %734 = vrot.lane.b32.xlu0 %v712, 8
      %v735 = vpop.permute.xlu0 %734
      %736 = vrot.lane.b32.xlu0 %v713, 8
      %v737 = vpop.permute.xlu0 %736
      %738 = vrot.lane.b32.xlu0 %v714, 8
      %v739 = vpop.permute.xlu0 %738
      %740 = vrot.lane.b32.xlu0 %v715, 8
      %v741 = vpop.permute.xlu0 %740
      %742 = vrot.lane.b32.xlu0 %v716, 8
      %v743 = vpop.permute.xlu0 %742
      %744 = vrot.lane.b32.xlu0 %v717, 8
      %v745 = vpop.permute.xlu0 %744
      %746 = vrot.lane.b32.xlu0 %v718, 8
      %v747 = vpop.permute.xlu0 %746
      %748 = vrot.lane.b32.xlu0 %v719, 8
      %v749 = vpop.permute.xlu0 %748
      %750 = vrot.lane.b32.xlu0 %v720, 8
      %v751 = vpop.permute.xlu0 %750
      %752 = vrot.lane.b32.xlu0 %v721, 8
      %v753 = vpop.permute.xlu0 %752
      %vm770 = vcmask 93248
      %771 = vst.msk [vmem:[#allocation2] sm:$0xf] %vm770, %v723
      %772 = vst.msk [vmem:[#allocation2 + $0x4] sm:$0xf] %vm770, %v725
      %773 = vst.msk [vmem:[#allocation2 + $0x8] sm:$0xf] %vm770, %v727
      %774 = vst.msk [vmem:[#allocation2 + $0xc] sm:$0xf] %vm770, %v729
      %775 = vst.msk [vmem:[#allocation2 + $0x10] sm:$0xf] %vm770, %v731
      %776 = vst.msk [vmem:[#allocation2 + $0x14] sm:$0xf] %vm770, %v733
      %777 = vst.msk [vmem:[#allocation2 + $0x18] sm:$0xf] %vm770, %v735
      %778 = vst.msk [vmem:[#allocation2 + $0x1c] sm:$0xf] %vm770, %v737
      %779 = vst.msk [vmem:[#allocation2 + $0x20] sm:$0xf] %vm770, %v739
      %780 = vst.msk [vmem:[#allocation2 + $0x24] sm:$0xf] %vm770, %v741
      %781 = vst.msk [vmem:[#allocation2 + $0x28] sm:$0xf] %vm770, %v743
      %782 = vst.msk [vmem:[#allocation2 + $0x2c] sm:$0xf] %vm770, %v745
      %783 = vst.msk [vmem:[#allocation2 + $0x30] sm:$0xf] %vm770, %v747
      %784 = vst.msk [vmem:[#allocation2 + $0x34] sm:$0xf] %vm770, %v749
      %785 = vst.msk [vmem:[#allocation2 + $0x38] sm:$0xf] %vm770, %v751
      %786 = vst.msk [vmem:[#allocation2 + $0x3c] sm:$0xf] %vm770, %v753
      %v787 = vld [vmem:[%s359 + $0x2] sm:$0xff]
      %v788 = vld [vmem:[%s359 + $0xa] sm:$0xff]
      %v789 = vld [vmem:[%s359 + $0x1a] sm:$0xff]
      %v790 = vld [vmem:[%s359 + $0x22] sm:$0xff]
      %v791 = vpack.c.bf16 %v788, %v787
      %v792 = vpack.c.bf16 %v790, %v789
      %v795 = vunpack.c.l.b16 %v791
      %v796 = vunpack.c.h.b16 %v791
      %v797 = vunpack.c.l.b16 %v792
      %v798 = vunpack.c.h.b16 %v792
      %v799 = vpack.c.b16 %v795, %v795
      %v800 = vpack.c.b16 %v796, %v796
      %v801 = vpack.c.b16 %v797, %v797
      %v802 = vpack.c.b16 %v798, %v798
      %803 = vrot.lane.b32.xlu0 %v799, 8
      %v804 = vpop.permute.xlu0 %803
      %805 = vrot.lane.b32.xlu0 %v800, 8
      %v806 = vpop.permute.xlu0 %805
      %807 = vrot.lane.b32.xlu0 %v801, 8
      %v808 = vpop.permute.xlu0 %807
      %809 = vrot.lane.b32.xlu0 %v802, 8
      %v810 = vpop.permute.xlu0 %809
      %815 = vst.msk [vmem:[%s492] sm:$0xf] %vm770, %v804
      %816 = vst.msk [vmem:[%s492 + $0x4] sm:$0xf] %vm770, %v806
      %817 = vst.msk [vmem:[%s492 + $0x8] sm:$0xf] %vm770, %v808
      %818 = vst.msk [vmem:[%s492 + $0xc] sm:$0xf] %vm770, %v810
      %s819 = scalar_lea.vmem %s341, 24
      %v820 = vld [vmem:[%s819] sm:$0xff]
      %v821 = vld [vmem:[%s819 + $0x8] sm:$0xff]
      %v822 = vld [vmem:[%s819 + $0x18] sm:$0xff]
      %v823 = vld [vmem:[%s819 + $0x20] sm:$0xff]
      %v824 = vld [vmem:[%s819 + $0x30] sm:$0xff]
      %v825 = vld [vmem:[%s819 + $0x38] sm:$0xff]
      %v826 = vld [vmem:[%s819 + $0x48] sm:$0xff]
      %v827 = vld [vmem:[%s819 + $0x50] sm:$0xff]
      %v828 = vld [vmem:[%s819 + $0x60] sm:$0xff]
      %v829 = vld [vmem:[%s819 + $0x68] sm:$0xff]
      %v830 = vld [vmem:[%s819 + $0x78] sm:$0xff]
      %v831 = vld [vmem:[%s819 + $0x80] sm:$0xff]
      %v832 = vld [vmem:[%s819 + $0x90] sm:$0xff]
      %v833 = vld [vmem:[%s819 + $0x98] sm:$0xff]
      %v834 = vpack.c.bf16 %v821, %v820
      %v835 = vpack.c.bf16 %v823, %v822
      %v836 = vpack.c.bf16 %v825, %v824
      %v837 = vpack.c.bf16 %v827, %v826
      %v838 = vpack.c.bf16 %v829, %v828
      %v839 = vpack.c.bf16 %v831, %v830
      %v840 = vpack.c.bf16 %v833, %v832
      %v848 = vunpack.c.l.b16 %v834
      %v849 = vunpack.c.h.b16 %v834
      %v850 = vunpack.c.l.b16 %v835
      %v851 = vunpack.c.h.b16 %v835
      %v852 = vunpack.c.l.b16 %v836
      %v853 = vunpack.c.h.b16 %v836
      %v854 = vunpack.c.l.b16 %v837
      %v855 = vunpack.c.h.b16 %v837
      %v856 = vunpack.c.l.b16 %v838
      %v857 = vunpack.c.h.b16 %v838
      %v858 = vunpack.c.l.b16 %v839
      %v859 = vunpack.c.h.b16 %v839
      %v860 = vunpack.c.l.b16 %v840
      %v861 = vunpack.c.h.b16 %v840
      %v862 = vpack.c.b16 %v848, %v848
      %v863 = vpack.c.b16 %v849, %v849
      %v864 = vpack.c.b16 %v850, %v850
      %v865 = vpack.c.b16 %v851, %v851
      %v866 = vpack.c.b16 %v852, %v852
      %v867 = vpack.c.b16 %v853, %v853
      %v868 = vpack.c.b16 %v854, %v854
      %v869 = vpack.c.b16 %v855, %v855
      %v870 = vpack.c.b16 %v856, %v856
      %v871 = vpack.c.b16 %v857, %v857
      %v872 = vpack.c.b16 %v858, %v858
      %v873 = vpack.c.b16 %v859, %v859
      %v874 = vpack.c.b16 %v860, %v860
      %v875 = vpack.c.b16 %v861, %v861
      %876 = vrot.lane.b32.xlu0 %v862, 12
      %v877 = vpop.permute.xlu0 %876
      %878 = vrot.lane.b32.xlu0 %v863, 12
      %v879 = vpop.permute.xlu0 %878
      %880 = vrot.lane.b32.xlu0 %v864, 12
      %v881 = vpop.permute.xlu0 %880
      %882 = vrot.lane.b32.xlu0 %v865, 12
      %v883 = vpop.permute.xlu0 %882
      %884 = vrot.lane.b32.xlu0 %v866, 12
      %v885 = vpop.permute.xlu0 %884
      %886 = vrot.lane.b32.xlu0 %v867, 12
      %v887 = vpop.permute.xlu0 %886
      %888 = vrot.lane.b32.xlu0 %v868, 12
      %v889 = vpop.permute.xlu0 %888
      %890 = vrot.lane.b32.xlu0 %v869, 12
      %v891 = vpop.permute.xlu0 %890
      %892 = vrot.lane.b32.xlu0 %v870, 12
      %v893 = vpop.permute.xlu0 %892
      %894 = vrot.lane.b32.xlu0 %v871, 12
      %v895 = vpop.permute.xlu0 %894
      %896 = vrot.lane.b32.xlu0 %v872, 12
      %v897 = vpop.permute.xlu0 %896
      %898 = vrot.lane.b32.xlu0 %v873, 12
      %v899 = vpop.permute.xlu0 %898
      %900 = vrot.lane.b32.xlu0 %v874, 12
      %v901 = vpop.permute.xlu0 %900
      %902 = vrot.lane.b32.xlu0 %v875, 12
      %v903 = vpop.permute.xlu0 %902
      %vm918 = vcmask 126048
      %919 = vst.msk [vmem:[#allocation2] sm:$0xf] %vm918, %v877
      %920 = vst.msk [vmem:[#allocation2 + $0x4] sm:$0xf] %vm918, %v879
      %921 = vst.msk [vmem:[#allocation2 + $0x8] sm:$0xf] %vm918, %v881
      %922 = vst.msk [vmem:[#allocation2 + $0xc] sm:$0xf] %vm918, %v883
      %923 = vst.msk [vmem:[#allocation2 + $0x10] sm:$0xf] %vm918, %v885
      %924 = vst.msk [vmem:[#allocation2 + $0x14] sm:$0xf] %vm918, %v887
      %925 = vst.msk [vmem:[#allocation2 + $0x18] sm:$0xf] %vm918, %v889
      %926 = vst.msk [vmem:[#allocation2 + $0x1c] sm:$0xf] %vm918, %v891
      %927 = vst.msk [vmem:[#allocation2 + $0x20] sm:$0xf] %vm918, %v893
      %928 = vst.msk [vmem:[#allocation2 + $0x24] sm:$0xf] %vm918, %v895
      %929 = vst.msk [vmem:[#allocation2 + $0x28] sm:$0xf] %vm918, %v897
      %930 = vst.msk [vmem:[#allocation2 + $0x2c] sm:$0xf] %vm918, %v899
      %931 = vst.msk [vmem:[#allocation2 + $0x30] sm:$0xf] %vm918, %v901
      %932 = vst.msk [vmem:[#allocation2 + $0x34] sm:$0xf] %vm918, %v903
      %v933 = vld [vmem:[%s359] sm:$0xff]
      %v934 = vld [vmem:[%s359 + $0x8] sm:$0xff]
      %v935 = vld [vmem:[%s359 + $0x18] sm:$0xff]
      %v936 = vld [vmem:[%s359 + $0x20] sm:$0xff]
      %v937 = vld [vmem:[%s359 + $0x30] sm:$0xff]
      %v938 = vld [vmem:[%s359 + $0x38] sm:$0xff]
      %v939 = vpack.c.bf16 %v934, %v933
      %v940 = vpack.c.bf16 %v936, %v935
      %v941 = vpack.c.bf16 %v938, %v937
      %v945 = vunpack.c.l.b16 %v939
      %v946 = vunpack.c.h.b16 %v939
      %v947 = vunpack.c.l.b16 %v940
      %v948 = vunpack.c.h.b16 %v940
      %v949 = vunpack.c.l.b16 %v941
      %v950 = vunpack.c.h.b16 %v941
      %v951 = vpack.c.b16 %v945, %v945
      %v952 = vpack.c.b16 %v946, %v946
      %v953 = vpack.c.b16 %v947, %v947
      %v954 = vpack.c.b16 %v948, %v948
      %v955 = vpack.c.b16 %v949, %v949
      %v956 = vpack.c.b16 %v950, %v950
      %957 = vrot.lane.b32.xlu0 %v951, 12
      %v958 = vpop.permute.xlu0 %957
      %959 = vrot.lane.b32.xlu0 %v952, 12
      %v960 = vpop.permute.xlu0 %959
      %961 = vrot.lane.b32.xlu0 %v953, 12
      %v962 = vpop.permute.xlu0 %961
      %963 = vrot.lane.b32.xlu0 %v954, 12
      %v964 = vpop.permute.xlu0 %963
      %965 = vrot.lane.b32.xlu0 %v955, 12
      %v966 = vpop.permute.xlu0 %965
      %967 = vrot.lane.b32.xlu0 %v956, 12
      %v968 = vpop.permute.xlu0 %967
      %s975 = scalar_lea.vmem [#allocation2], 56
      %976 = vst.msk [vmem:[%s975] sm:$0xf] %vm918, %v958
      %977 = vst.msk [vmem:[%s975 + $0x4] sm:$0xf] %vm918, %v960
      %978 = vst.msk [vmem:[%s975 + $0x8] sm:$0xf] %vm918, %v962
      %979 = vst.msk [vmem:[%s975 + $0xc] sm:$0xf] %vm918, %v964
      %980 = vst.msk [vmem:[%s975 + $0x10] sm:$0xf] %vm918, %v966
      %981 = vst.msk [vmem:[%s975 + $0x14] sm:$0xf] %vm918, %v968
      %v982 = vld [vmem:[%s819 + $0x1] sm:$0xff]
      %v983 = vld [vmem:[%s819 + $0x9] sm:$0xff]
      %v984 = vld [vmem:[%s819 + $0x19] sm:$0xff]
      %v985 = vld [vmem:[%s819 + $0x21] sm:$0xff]
      %v986 = vld [vmem:[%s819 + $0x31] sm:$0xff]
      %v987 = vld [vmem:[%s819 + $0x39] sm:$0xff]
      %v988 = vld [vmem:[%s819 + $0x49] sm:$0xff]
      %v989 = vld [vmem:[%s819 + $0x51] sm:$0xff]
      %v990 = vld [vmem:[%s819 + $0x61] sm:$0xff]
      %v991 = vld [vmem:[%s819 + $0x69] sm:$0xff]
      %v992 = vld [vmem:[%s819 + $0x79] sm:$0xff]
      %v993 = vld [vmem:[%s819 + $0x81] sm:$0xff]
      %v994 = vld [vmem:[%s819 + $0x91] sm:$0xff]
      %v995 = vld [vmem:[%s819 + $0x99] sm:$0xff]
      %v996 = vpack.c.bf16 %v983, %v982
      %v997 = vpack.c.bf16 %v985, %v984
      %v998 = vpack.c.bf16 %v987, %v986
      %v999 = vpack.c.bf16 %v989, %v988
      %v1000 = vpack.c.bf16 %v991, %v990
      %v1001 = vpack.c.bf16 %v993, %v992
      %v1002 = vpack.c.bf16 %v995, %v994
      %v1010 = vunpack.c.l.b16 %v996
      %v1011 = vunpack.c.h.b16 %v996
      %v1012 = vunpack.c.l.b16 %v997
      %v1013 = vunpack.c.h.b16 %v997
      %v1014 = vunpack.c.l.b16 %v998
      %v1015 = vunpack.c.h.b16 %v998
      %v1016 = vunpack.c.l.b16 %v999
      %v1017 = vunpack.c.h.b16 %v999
      %v1018 = vunpack.c.l.b16 %v1000
      %v1019 = vunpack.c.h.b16 %v1000
      %v1020 = vunpack.c.l.b16 %v1001
      %v1021 = vunpack.c.h.b16 %v1001
      %v1022 = vunpack.c.l.b16 %v1002
      %v1023 = vunpack.c.h.b16 %v1002
      %v1024 = vpack.c.b16 %v1010, %v1010
      %v1025 = vpack.c.b16 %v1011, %v1011
      %v1026 = vpack.c.b16 %v1012, %v1012
      %v1027 = vpack.c.b16 %v1013, %v1013
      %v1028 = vpack.c.b16 %v1014, %v1014
      %v1029 = vpack.c.b16 %v1015, %v1015
      %v1030 = vpack.c.b16 %v1016, %v1016
      %v1031 = vpack.c.b16 %v1017, %v1017
      %v1032 = vpack.c.b16 %v1018, %v1018
      %v1033 = vpack.c.b16 %v1019, %v1019
      %v1034 = vpack.c.b16 %v1020, %v1020
      %v1035 = vpack.c.b16 %v1021, %v1021
      %v1036 = vpack.c.b16 %v1022, %v1022
      %v1037 = vpack.c.b16 %v1023, %v1023
      %1038 = vrot.lane.b32.xlu0 %v1024, 16
      %v1039 = vpop.permute.xlu0 %1038
      %1040 = vrot.lane.b32.xlu0 %v1025, 16
      %v1041 = vpop.permute.xlu0 %1040
      %1042 = vrot.lane.b32.xlu0 %v1026, 16
      %v1043 = vpop.permute.xlu0 %1042
      %1044 = vrot.lane.b32.xlu0 %v1027, 16
      %v1045 = vpop.permute.xlu0 %1044
      %1046 = vrot.lane.b32.xlu0 %v1028, 16
      %v1047 = vpop.permute.xlu0 %1046
      %1048 = vrot.lane.b32.xlu0 %v1029, 16
      %v1049 = vpop.permute.xlu0 %1048
      %1050 = vrot.lane.b32.xlu0 %v1030, 16
      %v1051 = vpop.permute.xlu0 %1050
      %1052 = vrot.lane.b32.xlu0 %v1031, 16
      %v1053 = vpop.permute.xlu0 %1052
      %1054 = vrot.lane.b32.xlu0 %v1032, 16
      %v1055 = vpop.permute.xlu0 %1054
      %1056 = vrot.lane.b32.xlu0 %v1033, 16
      %v1057 = vpop.permute.xlu0 %1056
      %1058 = vrot.lane.b32.xlu0 %v1034, 16
      %v1059 = vpop.permute.xlu0 %1058
      %1060 = vrot.lane.b32.xlu0 %v1035, 16
      %v1061 = vpop.permute.xlu0 %1060
      %1062 = vrot.lane.b32.xlu0 %v1036, 16
      %v1063 = vpop.permute.xlu0 %1062
      %1064 = vrot.lane.b32.xlu0 %v1037, 16
      %v1065 = vpop.permute.xlu0 %1064
      %vm1080 = vcmask 158848
      %1081 = vst.msk [vmem:[#allocation2] sm:$0xf] %vm1080, %v1039
      %1082 = vst.msk [vmem:[#allocation2 + $0x4] sm:$0xf] %vm1080, %v1041
      %1083 = vst.msk [vmem:[#allocation2 + $0x8] sm:$0xf] %vm1080, %v1043
      %1084 = vst.msk [vmem:[#allocation2 + $0xc] sm:$0xf] %vm1080, %v1045
      %1085 = vst.msk [vmem:[#allocation2 + $0x10] sm:$0xf] %vm1080, %v1047
      %1086 = vst.msk [vmem:[#allocation2 + $0x14] sm:$0xf] %vm1080, %v1049
      %1087 = vst.msk [vmem:[#allocation2 + $0x18] sm:$0xf] %vm1080, %v1051
      %1088 = vst.msk [vmem:[#allocation2 + $0x1c] sm:$0xf] %vm1080, %v1053
      %1089 = vst.msk [vmem:[#allocation2 + $0x20] sm:$0xf] %vm1080, %v1055
      %1090 = vst.msk [vmem:[#allocation2 + $0x24] sm:$0xf] %vm1080, %v1057
      %1091 = vst.msk [vmem:[#allocation2 + $0x28] sm:$0xf] %vm1080, %v1059
      %1092 = vst.msk [vmem:[#allocation2 + $0x2c] sm:$0xf] %vm1080, %v1061
      %1093 = vst.msk [vmem:[#allocation2 + $0x30] sm:$0xf] %vm1080, %v1063
      %1094 = vst.msk [vmem:[#allocation2 + $0x34] sm:$0xf] %vm1080, %v1065
      %v1095 = vld [vmem:[%s359 + $0x1] sm:$0xff]
      %v1096 = vld [vmem:[%s359 + $0x9] sm:$0xff]
      %v1097 = vld [vmem:[%s359 + $0x19] sm:$0xff]
      %v1098 = vld [vmem:[%s359 + $0x21] sm:$0xff]
      %v1099 = vld [vmem:[%s359 + $0x31] sm:$0xff]
      %v1100 = vld [vmem:[%s359 + $0x39] sm:$0xff]
      %v1101 = vpack.c.bf16 %v1096, %v1095
      %v1102 = vpack.c.bf16 %v1098, %v1097
      %v1103 = vpack.c.bf16 %v1100, %v1099
      %v1107 = vunpack.c.l.b16 %v1101
      %v1108 = vunpack.c.h.b16 %v1101
      %v1109 = vunpack.c.l.b16 %v1102
      %v1110 = vunpack.c.h.b16 %v1102
      %v1111 = vunpack.c.l.b16 %v1103
      %v1112 = vunpack.c.h.b16 %v1103
      %v1113 = vpack.c.b16 %v1107, %v1107
      %v1114 = vpack.c.b16 %v1108, %v1108
      %v1115 = vpack.c.b16 %v1109, %v1109
      %v1116 = vpack.c.b16 %v1110, %v1110
      %v1117 = vpack.c.b16 %v1111, %v1111
      %v1118 = vpack.c.b16 %v1112, %v1112
      %1119 = vrot.lane.b32.xlu0 %v1113, 16
      %v1120 = vpop.permute.xlu0 %1119
      %1121 = vrot.lane.b32.xlu0 %v1114, 16
      %v1122 = vpop.permute.xlu0 %1121
      %1123 = vrot.lane.b32.xlu0 %v1115, 16
      %v1124 = vpop.permute.xlu0 %1123
      %1125 = vrot.lane.b32.xlu0 %v1116, 16
      %v1126 = vpop.permute.xlu0 %1125
      %1127 = vrot.lane.b32.xlu0 %v1117, 16
      %v1128 = vpop.permute.xlu0 %1127
      %1129 = vrot.lane.b32.xlu0 %v1118, 16
      %v1130 = vpop.permute.xlu0 %1129
      %1137 = vst.msk [vmem:[%s975] sm:$0xf] %vm1080, %v1120
      %1138 = vst.msk [vmem:[%s975 + $0x4] sm:$0xf] %vm1080, %v1122
      %1139 = vst.msk [vmem:[%s975 + $0x8] sm:$0xf] %vm1080, %v1124
      %1140 = vst.msk [vmem:[%s975 + $0xc] sm:$0xf] %vm1080, %v1126
      %1141 = vst.msk [vmem:[%s975 + $0x10] sm:$0xf] %vm1080, %v1128
      %1142 = vst.msk [vmem:[%s975 + $0x14] sm:$0xf] %vm1080, %v1130
      %v1143 = vld [vmem:[%s819 + $0x2] sm:$0xff]
      %v1144 = vld [vmem:[%s819 + $0xa] sm:$0xff]
      %v1145 = vld [vmem:[%s819 + $0x1a] sm:$0xff]
      %v1146 = vld [vmem:[%s819 + $0x22] sm:$0xff]
      %v1147 = vld [vmem:[%s819 + $0x32] sm:$0xff]
      %v1148 = vld [vmem:[%s819 + $0x3a] sm:$0xff]
      %v1149 = vld [vmem:[%s819 + $0x4a] sm:$0xff]
      %v1150 = vld [vmem:[%s819 + $0x52] sm:$0xff]
      %v1151 = vld [vmem:[%s819 + $0x62] sm:$0xff]
      %v1152 = vld [vmem:[%s819 + $0x6a] sm:$0xff]
      %v1153 = vld [vmem:[%s819 + $0x7a] sm:$0xff]
      %v1154 = vld [vmem:[%s819 + $0x82] sm:$0xff]
      %v1155 = vld [vmem:[%s819 + $0x92] sm:$0xff]
      %v1156 = vld [vmem:[%s819 + $0x9a] sm:$0xff]
      %v1157 = vpack.c.bf16 %v1144, %v1143
      %v1158 = vpack.c.bf16 %v1146, %v1145
      %v1159 = vpack.c.bf16 %v1148, %v1147
      %v1160 = vpack.c.bf16 %v1150, %v1149
      %v1161 = vpack.c.bf16 %v1152, %v1151
      %v1162 = vpack.c.bf16 %v1154, %v1153
      %v1163 = vpack.c.bf16 %v1156, %v1155
      %v1171 = vunpack.c.l.b16 %v1157
      %v1172 = vunpack.c.h.b16 %v1157
      %v1173 = vunpack.c.l.b16 %v1158
      %v1174 = vunpack.c.h.b16 %v1158
      %v1175 = vunpack.c.l.b16 %v1159
      %v1176 = vunpack.c.h.b16 %v1159
      %v1177 = vunpack.c.l.b16 %v1160
      %v1178 = vunpack.c.h.b16 %v1160
      %v1179 = vunpack.c.l.b16 %v1161
      %v1180 = vunpack.c.h.b16 %v1161
      %v1181 = vunpack.c.l.b16 %v1162
      %v1182 = vunpack.c.h.b16 %v1162
      %v1183 = vunpack.c.l.b16 %v1163
      %v1184 = vunpack.c.h.b16 %v1163
      %v1185 = vpack.c.b16 %v1171, %v1171
      %v1186 = vpack.c.b16 %v1172, %v1172
      %v1187 = vpack.c.b16 %v1173, %v1173
      %v1188 = vpack.c.b16 %v1174, %v1174
      %v1189 = vpack.c.b16 %v1175, %v1175
      %v1190 = vpack.c.b16 %v1176, %v1176
      %v1191 = vpack.c.b16 %v1177, %v1177
      %v1192 = vpack.c.b16 %v1178, %v1178
      %v1193 = vpack.c.b16 %v1179, %v1179
      %v1194 = vpack.c.b16 %v1180, %v1180
      %v1195 = vpack.c.b16 %v1181, %v1181
      %v1196 = vpack.c.b16 %v1182, %v1182
      %v1197 = vpack.c.b16 %v1183, %v1183
      %v1198 = vpack.c.b16 %v1184, %v1184
      %1199 = vrot.lane.b32.xlu0 %v1185, 20
      %v1200 = vpop.permute.xlu0 %1199
      %1201 = vrot.lane.b32.xlu0 %v1186, 20
      %v1202 = vpop.permute.xlu0 %1201
      %1203 = vrot.lane.b32.xlu0 %v1187, 20
      %v1204 = vpop.permute.xlu0 %1203
      %1205 = vrot.lane.b32.xlu0 %v1188, 20
      %v1206 = vpop.permute.xlu0 %1205
      %1207 = vrot.lane.b32.xlu0 %v1189, 20
      %v1208 = vpop.permute.xlu0 %1207
      %1209 = vrot.lane.b32.xlu0 %v1190, 20
      %v1210 = vpop.permute.xlu0 %1209
      %1211 = vrot.lane.b32.xlu0 %v1191, 20
      %v1212 = vpop.permute.xlu0 %1211
      %1213 = vrot.lane.b32.xlu0 %v1192, 20
      %v1214 = vpop.permute.xlu0 %1213
      %1215 = vrot.lane.b32.xlu0 %v1193, 20
      %v1216 = vpop.permute.xlu0 %1215
      %1217 = vrot.lane.b32.xlu0 %v1194, 20
      %v1218 = vpop.permute.xlu0 %1217
      %1219 = vrot.lane.b32.xlu0 %v1195, 20
      %v1220 = vpop.permute.xlu0 %1219
      %1221 = vrot.lane.b32.xlu0 %v1196, 20
      %v1222 = vpop.permute.xlu0 %1221
      %1223 = vrot.lane.b32.xlu0 %v1197, 20
      %v1224 = vpop.permute.xlu0 %1223
      %1225 = vrot.lane.b32.xlu0 %v1198, 20
      %v1226 = vpop.permute.xlu0 %1225
      %vm1241 = vcmask 191648
      %1242 = vst.msk [vmem:[#allocation2] sm:$0xf] %vm1241, %v1200
      %1243 = vst.msk [vmem:[#allocation2 + $0x4] sm:$0xf] %vm1241, %v1202
      %1244 = vst.msk [vmem:[#allocation2 + $0x8] sm:$0xf] %vm1241, %v1204
      %1245 = vst.msk [vmem:[#allocation2 + $0xc] sm:$0xf] %vm1241, %v1206
      %1246 = vst.msk [vmem:[#allocation2 + $0x10] sm:$0xf] %vm1241, %v1208
      %1247 = vst.msk [vmem:[#allocation2 + $0x14] sm:$0xf] %vm1241, %v1210
      %1248 = vst.msk [vmem:[#allocation2 + $0x18] sm:$0xf] %vm1241, %v1212
      %1249 = vst.msk [vmem:[#allocation2 + $0x1c] sm:$0xf] %vm1241, %v1214
      %1250 = vst.msk [vmem:[#allocation2 + $0x20] sm:$0xf] %vm1241, %v1216
      %1251 = vst.msk [vmem:[#allocation2 + $0x24] sm:$0xf] %vm1241, %v1218
      %1252 = vst.msk [vmem:[#allocation2 + $0x28] sm:$0xf] %vm1241, %v1220
      %1253 = vst.msk [vmem:[#allocation2 + $0x2c] sm:$0xf] %vm1241, %v1222
      %1254 = vst.msk [vmem:[#allocation2 + $0x30] sm:$0xf] %vm1241, %v1224
      %1255 = vst.msk [vmem:[#allocation2 + $0x34] sm:$0xf] %vm1241, %v1226
      %v1256 = vld [vmem:[%s359 + $0x2] sm:$0xff]
      %v1257 = vld [vmem:[%s359 + $0xa] sm:$0xff]
      %v1258 = vld [vmem:[%s359 + $0x1a] sm:$0xff]
      %v1259 = vld [vmem:[%s359 + $0x22] sm:$0xff]
      %v1260 = vld [vmem:[%s359 + $0x32] sm:$0xff]
      %v1261 = vld [vmem:[%s359 + $0x3a] sm:$0xff]
      %v1262 = vpack.c.bf16 %v1257, %v1256
      %v1263 = vpack.c.bf16 %v1259, %v1258
      %v1264 = vpack.c.bf16 %v1261, %v1260
      %v1268 = vunpack.c.l.b16 %v1262
      %v1269 = vunpack.c.h.b16 %v1262
      %v1270 = vunpack.c.l.b16 %v1263
      %v1271 = vunpack.c.h.b16 %v1263
      %v1272 = vunpack.c.l.b16 %v1264
      %v1273 = vunpack.c.h.b16 %v1264
      %v1274 = vpack.c.b16 %v1268, %v1268
      %v1275 = vpack.c.b16 %v1269, %v1269
      %v1276 = vpack.c.b16 %v1270, %v1270
      %v1277 = vpack.c.b16 %v1271, %v1271
      %v1278 = vpack.c.b16 %v1272, %v1272
      %v1279 = vpack.c.b16 %v1273, %v1273
      %1280 = vrot.lane.b32.xlu0 %v1274, 20
      %v1281 = vpop.permute.xlu0 %1280
      %1282 = vrot.lane.b32.xlu0 %v1275, 20
      %v1283 = vpop.permute.xlu0 %1282
      %1284 = vrot.lane.b32.xlu0 %v1276, 20
      %v1285 = vpop.permute.xlu0 %1284
      %1286 = vrot.lane.b32.xlu0 %v1277, 20
      %v1287 = vpop.permute.xlu0 %1286
      %1288 = vrot.lane.b32.xlu0 %v1278, 20
      %v1289 = vpop.permute.xlu0 %1288
      %1290 = vrot.lane.b32.xlu0 %v1279, 20
      %v1291 = vpop.permute.xlu0 %1290
      %1298 = vst.msk [vmem:[%s975] sm:$0xf] %vm1241, %v1281
      %1299 = vst.msk [vmem:[%s975 + $0x4] sm:$0xf] %vm1241, %v1283
      %1300 = vst.msk [vmem:[%s975 + $0x8] sm:$0xf] %vm1241, %v1285
      %1301 = vst.msk [vmem:[%s975 + $0xc] sm:$0xf] %vm1241, %v1287
      %1302 = vst.msk [vmem:[%s975 + $0x10] sm:$0xf] %vm1241, %v1289
      %1303 = vst.msk [vmem:[%s975 + $0x14] sm:$0xf] %vm1241, %v1291
      %s1304 = scalar_lea.vmem %s341, 48
      %v1305 = vld [vmem:[%s1304] sm:$0xff]
      %v1306 = vld [vmem:[%s1304 + $0x8] sm:$0xff]
      %v1307 = vld [vmem:[%s1304 + $0x18] sm:$0xff]
      %v1308 = vld [vmem:[%s1304 + $0x20] sm:$0xff]
      %v1309 = vld [vmem:[%s1304 + $0x30] sm:$0xff]
      %v1310 = vld [vmem:[%s1304 + $0x38] sm:$0xff]
      %v1311 = vld [vmem:[%s1304 + $0x48] sm:$0xff]
      %v1312 = vld [vmem:[%s1304 + $0x50] sm:$0xff]
      %v1313 = vld [vmem:[%s1304 + $0x60] sm:$0xff]
      %v1314 = vld [vmem:[%s1304 + $0x68] sm:$0xff]
      %v1315 = vld [vmem:[%s1304 + $0x78] sm:$0xff]
      %v1316 = vld [vmem:[%s1304 + $0x80] sm:$0xff]
      %v1317 = vpack.c.bf16 %v1306, %v1305
      %v1318 = vpack.c.bf16 %v1308, %v1307
      %v1319 = vpack.c.bf16 %v1310, %v1309
      %v1320 = vpack.c.bf16 %v1312, %v1311
      %v1321 = vpack.c.bf16 %v1314, %v1313
      %v1322 = vpack.c.bf16 %v1316, %v1315
      %v1329 = vunpack.c.l.b16 %v1317
      %v1330 = vunpack.c.h.b16 %v1317
      %v1331 = vunpack.c.l.b16 %v1318
      %v1332 = vunpack.c.h.b16 %v1318
      %v1333 = vunpack.c.l.b16 %v1319
      %v1334 = vunpack.c.h.b16 %v1319
      %v1335 = vunpack.c.l.b16 %v1320
      %v1336 = vunpack.c.h.b16 %v1320
      %v1337 = vunpack.c.l.b16 %v1321
      %v1338 = vunpack.c.h.b16 %v1321
      %v1339 = vunpack.c.l.b16 %v1322
      %v1340 = vunpack.c.h.b16 %v1322
      %v1341 = vpack.c.b16 %v1329, %v1329
      %v1342 = vpack.c.b16 %v1330, %v1330
      %v1343 = vpack.c.b16 %v1331, %v1331
      %v1344 = vpack.c.b16 %v1332, %v1332
      %v1345 = vpack.c.b16 %v1333, %v1333
      %v1346 = vpack.c.b16 %v1334, %v1334
      %v1347 = vpack.c.b16 %v1335, %v1335
      %v1348 = vpack.c.b16 %v1336, %v1336
      %v1349 = vpack.c.b16 %v1337, %v1337
      %v1350 = vpack.c.b16 %v1338, %v1338
      %v1351 = vpack.c.b16 %v1339, %v1339
      %v1352 = vpack.c.b16 %v1340, %v1340
      %1353 = vrot.lane.b32.xlu0 %v1341, 24
      %v1354 = vpop.permute.xlu0 %1353
      %1355 = vrot.lane.b32.xlu0 %v1342, 24
      %v1356 = vpop.permute.xlu0 %1355
      %1357 = vrot.lane.b32.xlu0 %v1343, 24
      %v1358 = vpop.permute.xlu0 %1357
      %1359 = vrot.lane.b32.xlu0 %v1344, 24
      %v1360 = vpop.permute.xlu0 %1359
      %1361 = vrot.lane.b32.xlu0 %v1345, 24
      %v1362 = vpop.permute.xlu0 %1361
      %1363 = vrot.lane.b32.xlu0 %v1346, 24
      %v1364 = vpop.permute.xlu0 %1363
      %1365 = vrot.lane.b32.xlu0 %v1347, 24
      %v1366 = vpop.permute.xlu0 %1365
      %1367 = vrot.lane.b32.xlu0 %v1348, 24
      %v1368 = vpop.permute.xlu0 %1367
      %1369 = vrot.lane.b32.xlu0 %v1349, 24
      %v1370 = vpop.permute.xlu0 %1369
      %1371 = vrot.lane.b32.xlu0 %v1350, 24
      %v1372 = vpop.permute.xlu0 %1371
      %1373 = vrot.lane.b32.xlu0 %v1351, 24
      %v1374 = vpop.permute.xlu0 %1373
      %1375 = vrot.lane.b32.xlu0 %v1352, 24
      %v1376 = vpop.permute.xlu0 %1375
      %vm1389 = vcmask 224448
      %1390 = vst.msk [vmem:[#allocation2] sm:$0xf] %vm1389, %v1354
      %1391 = vst.msk [vmem:[#allocation2 + $0x4] sm:$0xf] %vm1389, %v1356
      %1392 = vst.msk [vmem:[#allocation2 + $0x8] sm:$0xf] %vm1389, %v1358
      %1393 = vst.msk [vmem:[#allocation2 + $0xc] sm:$0xf] %vm1389, %v1360
      %1394 = vst.msk [vmem:[#allocation2 + $0x10] sm:$0xf] %vm1389, %v1362
      %1395 = vst.msk [vmem:[#allocation2 + $0x14] sm:$0xf] %vm1389, %v1364
      %1396 = vst.msk [vmem:[#allocation2 + $0x18] sm:$0xf] %vm1389, %v1366
      %1397 = vst.msk [vmem:[#allocation2 + $0x1c] sm:$0xf] %vm1389, %v1368
      %1398 = vst.msk [vmem:[#allocation2 + $0x20] sm:$0xf] %vm1389, %v1370
      %1399 = vst.msk [vmem:[#allocation2 + $0x24] sm:$0xf] %vm1389, %v1372
      %1400 = vst.msk [vmem:[#allocation2 + $0x28] sm:$0xf] %vm1389, %v1374
      %1401 = vst.msk [vmem:[#allocation2 + $0x2c] sm:$0xf] %vm1389, %v1376
      %v1402 = vld [vmem:[%s359] sm:$0xff]
      %v1403 = vld [vmem:[%s359 + $0x8] sm:$0xff]
      %v1404 = vld [vmem:[%s359 + $0x18] sm:$0xff]
      %v1405 = vld [vmem:[%s359 + $0x20] sm:$0xff]
      %v1406 = vld [vmem:[%s359 + $0x30] sm:$0xff]
      %v1407 = vld [vmem:[%s359 + $0x38] sm:$0xff]
      %v1408 = vld [vmem:[%s359 + $0x48] sm:$0xff]
      %v1409 = vld [vmem:[%s359 + $0x50] sm:$0xff]
      %v1410 = vpack.c.bf16 %v1403, %v1402
      %v1411 = vpack.c.bf16 %v1405, %v1404
      %v1412 = vpack.c.bf16 %v1407, %v1406
      %v1413 = vpack.c.bf16 %v1409, %v1408
      %v1418 = vunpack.c.l.b16 %v1410
      %v1419 = vunpack.c.h.b16 %v1410
      %v1420 = vunpack.c.l.b16 %v1411
      %v1421 = vunpack.c.h.b16 %v1411
      %v1422 = vunpack.c.l.b16 %v1412
      %v1423 = vunpack.c.h.b16 %v1412
      %v1424 = vunpack.c.l.b16 %v1413
      %v1425 = vunpack.c.h.b16 %v1413
      %v1426 = vpack.c.b16 %v1418, %v1418
      %v1427 = vpack.c.b16 %v1419, %v1419
      %v1428 = vpack.c.b16 %v1420, %v1420
      %v1429 = vpack.c.b16 %v1421, %v1421
      %v1430 = vpack.c.b16 %v1422, %v1422
      %v1431 = vpack.c.b16 %v1423, %v1423
      %v1432 = vpack.c.b16 %v1424, %v1424
      %v1433 = vpack.c.b16 %v1425, %v1425
      %1434 = vrot.lane.b32.xlu0 %v1426, 24
      %v1435 = vpop.permute.xlu0 %1434
      %1436 = vrot.lane.b32.xlu0 %v1427, 24
      %v1437 = vpop.permute.xlu0 %1436
      %1438 = vrot.lane.b32.xlu0 %v1428, 24
      %v1439 = vpop.permute.xlu0 %1438
      %1440 = vrot.lane.b32.xlu0 %v1429, 24
      %v1441 = vpop.permute.xlu0 %1440
      %1442 = vrot.lane.b32.xlu0 %v1430, 24
      %v1443 = vpop.permute.xlu0 %1442
      %1444 = vrot.lane.b32.xlu0 %v1431, 24
      %v1445 = vpop.permute.xlu0 %1444
      %1446 = vrot.lane.b32.xlu0 %v1432, 24
      %v1447 = vpop.permute.xlu0 %1446
      %1448 = vrot.lane.b32.xlu0 %v1433, 24
      %v1449 = vpop.permute.xlu0 %1448
      %s1458 = scalar_lea.vmem [#allocation2], 48
      %1459 = vst.msk [vmem:[%s1458] sm:$0xf] %vm1389, %v1435
      %1460 = vst.msk [vmem:[%s1458 + $0x4] sm:$0xf] %vm1389, %v1437
      %1461 = vst.msk [vmem:[%s1458 + $0x8] sm:$0xf] %vm1389, %v1439
      %1462 = vst.msk [vmem:[%s1458 + $0xc] sm:$0xf] %vm1389, %v1441
      %1463 = vst.msk [vmem:[%s1458 + $0x10] sm:$0xf] %vm1389, %v1443
      %1464 = vst.msk [vmem:[%s1458 + $0x14] sm:$0xf] %vm1389, %v1445
      %1465 = vst.msk [vmem:[%s1458 + $0x18] sm:$0xf] %vm1389, %v1447
      %1466 = vst.msk [vmem:[%s1458 + $0x1c] sm:$0xf] %vm1389, %v1449
      %v1467 = vld [vmem:[%s1304 + $0x1] sm:$0xff]
      %v1468 = vld [vmem:[%s1304 + $0x9] sm:$0xff]
      %v1469 = vld [vmem:[%s1304 + $0x19] sm:$0xff]
      %v1470 = vld [vmem:[%s1304 + $0x21] sm:$0xff]
      %v1471 = vld [vmem:[%s1304 + $0x31] sm:$0xff]
      %v1472 = vld [vmem:[%s1304 + $0x39] sm:$0xff]
      %v1473 = vld [vmem:[%s1304 + $0x49] sm:$0xff]
      %v1474 = vld [vmem:[%s1304 + $0x51] sm:$0xff]
      %v1475 = vld [vmem:[%s1304 + $0x61] sm:$0xff]
      %v1476 = vld [vmem:[%s1304 + $0x69] sm:$0xff]
      %v1477 = vld [vmem:[%s1304 + $0x79] sm:$0xff]
      %v1478 = vld [vmem:[%s1304 + $0x81] sm:$0xff]
      %v1479 = vpack.c.bf16 %v1468, %v1467
      %v1480 = vpack.c.bf16 %v1470, %v1469
      %v1481 = vpack.c.bf16 %v1472, %v1471
      %v1482 = vpack.c.bf16 %v1474, %v1473
      %v1483 = vpack.c.bf16 %v1476, %v1475
      %v1484 = vpack.c.bf16 %v1478, %v1477
      %v1491 = vunpack.c.l.b16 %v1479
      %v1492 = vunpack.c.h.b16 %v1479
      %v1493 = vunpack.c.l.b16 %v1480
      %v1494 = vunpack.c.h.b16 %v1480
      %v1495 = vunpack.c.l.b16 %v1481
      %v1496 = vunpack.c.h.b16 %v1481
      %v1497 = vunpack.c.l.b16 %v1482
      %v1498 = vunpack.c.h.b16 %v1482
      %v1499 = vunpack.c.l.b16 %v1483
      %v1500 = vunpack.c.h.b16 %v1483
      %v1501 = vunpack.c.l.b16 %v1484
      %v1502 = vunpack.c.h.b16 %v1484
      %v1503 = vpack.c.b16 %v1491, %v1491
      %v1504 = vpack.c.b16 %v1492, %v1492
      %v1505 = vpack.c.b16 %v1493, %v1493
      %v1506 = vpack.c.b16 %v1494, %v1494
      %v1507 = vpack.c.b16 %v1495, %v1495
      %v1508 = vpack.c.b16 %v1496, %v1496
      %v1509 = vpack.c.b16 %v1497, %v1497
      %v1510 = vpack.c.b16 %v1498, %v1498
      %v1511 = vpack.c.b16 %v1499, %v1499
      %v1512 = vpack.c.b16 %v1500, %v1500
      %v1513 = vpack.c.b16 %v1501, %v1501
      %v1514 = vpack.c.b16 %v1502, %v1502
      %1515 = vrot.lane.b32.xlu0 %v1503, 28
      %v1516 = vpop.permute.xlu0 %1515
      %1517 = vrot.lane.b32.xlu0 %v1504, 28
      %v1518 = vpop.permute.xlu0 %1517
      %1519 = vrot.lane.b32.xlu0 %v1505, 28
      %v1520 = vpop.permute.xlu0 %1519
      %1521 = vrot.lane.b32.xlu0 %v1506, 28
      %v1522 = vpop.permute.xlu0 %1521
      %1523 = vrot.lane.b32.xlu0 %v1507, 28
      %v1524 = vpop.permute.xlu0 %1523
      %1525 = vrot.lane.b32.xlu0 %v1508, 28
      %v1526 = vpop.permute.xlu0 %1525
      %1527 = vrot.lane.b32.xlu0 %v1509, 28
      %v1528 = vpop.permute.xlu0 %1527
      %1529 = vrot.lane.b32.xlu0 %v1510, 28
      %v1530 = vpop.permute.xlu0 %1529
      %1531 = vrot.lane.b32.xlu0 %v1511, 28
      %v1532 = vpop.permute.xlu0 %1531
      %1533 = vrot.lane.b32.xlu0 %v1512, 28
      %v1534 = vpop.permute.xlu0 %1533
      %1535 = vrot.lane.b32.xlu0 %v1513, 28
      %v1536 = vpop.permute.xlu0 %1535
      %1537 = vrot.lane.b32.xlu0 %v1514, 28
      %v1538 = vpop.permute.xlu0 %1537
      %vm1551 = vcmask 257248
      %1552 = vst.msk [vmem:[#allocation2] sm:$0xf] %vm1551, %v1516
      %1553 = vst.msk [vmem:[#allocation2 + $0x4] sm:$0xf] %vm1551, %v1518
      %1554 = vst.msk [vmem:[#allocation2 + $0x8] sm:$0xf] %vm1551, %v1520
      %1555 = vst.msk [vmem:[#allocation2 + $0xc] sm:$0xf] %vm1551, %v1522
      %1556 = vst.msk [vmem:[#allocation2 + $0x10] sm:$0xf] %vm1551, %v1524
      %1557 = vst.msk [vmem:[#allocation2 + $0x14] sm:$0xf] %vm1551, %v1526
      %1558 = vst.msk [vmem:[#allocation2 + $0x18] sm:$0xf] %vm1551, %v1528
      %1559 = vst.msk [vmem:[#allocation2 + $0x1c] sm:$0xf] %vm1551, %v1530
      %1560 = vst.msk [vmem:[#allocation2 + $0x20] sm:$0xf] %vm1551, %v1532
      %1561 = vst.msk [vmem:[#allocation2 + $0x24] sm:$0xf] %vm1551, %v1534
      %1562 = vst.msk [vmem:[#allocation2 + $0x28] sm:$0xf] %vm1551, %v1536
      %1563 = vst.msk [vmem:[#allocation2 + $0x2c] sm:$0xf] %vm1551, %v1538
      %v1564 = vld [vmem:[%s359 + $0x1] sm:$0xff]
      %v1565 = vld [vmem:[%s359 + $0x9] sm:$0xff]
      %v1566 = vld [vmem:[%s359 + $0x19] sm:$0xff]
      %v1567 = vld [vmem:[%s359 + $0x21] sm:$0xff]
      %v1568 = vld [vmem:[%s359 + $0x31] sm:$0xff]
      %v1569 = vld [vmem:[%s359 + $0x39] sm:$0xff]
      %v1570 = vld [vmem:[%s359 + $0x49] sm:$0xff]
      %v1571 = vld [vmem:[%s359 + $0x51] sm:$0xff]
      %v1572 = vpack.c.bf16 %v1565, %v1564
      %v1573 = vpack.c.bf16 %v1567, %v1566
      %v1574 = vpack.c.bf16 %v1569, %v1568
      %v1575 = vpack.c.bf16 %v1571, %v1570
      %v1580 = vunpack.c.l.b16 %v1572
      %v1581 = vunpack.c.h.b16 %v1572
      %v1582 = vunpack.c.l.b16 %v1573
      %v1583 = vunpack.c.h.b16 %v1573
      %v1584 = vunpack.c.l.b16 %v1574
      %v1585 = vunpack.c.h.b16 %v1574
      %v1586 = vunpack.c.l.b16 %v1575
      %v1587 = vunpack.c.h.b16 %v1575
      %v1588 = vpack.c.b16 %v1580, %v1580
      %v1589 = vpack.c.b16 %v1581, %v1581
      %v1590 = vpack.c.b16 %v1582, %v1582
      %v1591 = vpack.c.b16 %v1583, %v1583
      %v1592 = vpack.c.b16 %v1584, %v1584
      %v1593 = vpack.c.b16 %v1585, %v1585
      %v1594 = vpack.c.b16 %v1586, %v1586
      %v1595 = vpack.c.b16 %v1587, %v1587
      %1596 = vrot.lane.b32.xlu0 %v1588, 28
      %v1597 = vpop.permute.xlu0 %1596
      %1598 = vrot.lane.b32.xlu0 %v1589, 28
      %v1599 = vpop.permute.xlu0 %1598
      %1600 = vrot.lane.b32.xlu0 %v1590, 28
      %v1601 = vpop.permute.xlu0 %1600
      %1602 = vrot.lane.b32.xlu0 %v1591, 28
      %v1603 = vpop.permute.xlu0 %1602
      %1604 = vrot.lane.b32.xlu0 %v1592, 28
      %v1605 = vpop.permute.xlu0 %1604
      %1606 = vrot.lane.b32.xlu0 %v1593, 28
      %v1607 = vpop.permute.xlu0 %1606
      %1608 = vrot.lane.b32.xlu0 %v1594, 28
      %v1609 = vpop.permute.xlu0 %1608
      %1610 = vrot.lane.b32.xlu0 %v1595, 28
      %v1611 = vpop.permute.xlu0 %1610
      %1620 = vst.msk [vmem:[%s1458] sm:$0xf] %vm1551, %v1597
      %1621 = vst.msk [vmem:[%s1458 + $0x4] sm:$0xf] %vm1551, %v1599
      %1622 = vst.msk [vmem:[%s1458 + $0x8] sm:$0xf] %vm1551, %v1601
      %1623 = vst.msk [vmem:[%s1458 + $0xc] sm:$0xf] %vm1551, %v1603
      %1624 = vst.msk [vmem:[%s1458 + $0x10] sm:$0xf] %vm1551, %v1605
      %1625 = vst.msk [vmem:[%s1458 + $0x14] sm:$0xf] %vm1551, %v1607
      %1626 = vst.msk [vmem:[%s1458 + $0x18] sm:$0xf] %vm1551, %v1609
      %1627 = vst.msk [vmem:[%s1458 + $0x1c] sm:$0xf] %vm1551, %v1611
      %v1628 = vld [vmem:[%s1304 + $0x2] sm:$0xff]
      %v1629 = vld [vmem:[%s1304 + $0xa] sm:$0xff]
      %v1630 = vld [vmem:[%s1304 + $0x1a] sm:$0xff]
      %v1631 = vld [vmem:[%s1304 + $0x22] sm:$0xff]
      %v1632 = vld [vmem:[%s1304 + $0x32] sm:$0xff]
      %v1633 = vld [vmem:[%s1304 + $0x3a] sm:$0xff]
      %v1634 = vld [vmem:[%s1304 + $0x4a] sm:$0xff]
      %v1635 = vld [vmem:[%s1304 + $0x52] sm:$0xff]
      %v1636 = vld [vmem:[%s1304 + $0x62] sm:$0xff]
      %v1637 = vld [vmem:[%s1304 + $0x6a] sm:$0xff]
      %v1638 = vld [vmem:[%s1304 + $0x7a] sm:$0xff]
      %v1639 = vld [vmem:[%s1304 + $0x82] sm:$0xff]
      %v1640 = vpack.c.bf16 %v1629, %v1628
      %v1641 = vpack.c.bf16 %v1631, %v1630
      %v1642 = vpack.c.bf16 %v1633, %v1632
      %v1643 = vpack.c.bf16 %v1635, %v1634
      %v1644 = vpack.c.bf16 %v1637, %v1636
      %v1645 = vpack.c.bf16 %v1639, %v1638
      %v1652 = vunpack.c.l.b16 %v1640
      %v1653 = vunpack.c.h.b16 %v1640
      %v1654 = vunpack.c.l.b16 %v1641
      %v1655 = vunpack.c.h.b16 %v1641
      %v1656 = vunpack.c.l.b16 %v1642
      %v1657 = vunpack.c.h.b16 %v1642
      %v1658 = vunpack.c.l.b16 %v1643
      %v1659 = vunpack.c.h.b16 %v1643
      %v1660 = vunpack.c.l.b16 %v1644
      %v1661 = vunpack.c.h.b16 %v1644
      %v1662 = vunpack.c.l.b16 %v1645
      %v1663 = vunpack.c.h.b16 %v1645
      %v1664 = vpack.c.b16 %v1652, %v1652
      %v1665 = vpack.c.b16 %v1653, %v1653
      %v1666 = vpack.c.b16 %v1654, %v1654
      %v1667 = vpack.c.b16 %v1655, %v1655
      %v1668 = vpack.c.b16 %v1656, %v1656
      %v1669 = vpack.c.b16 %v1657, %v1657
      %v1670 = vpack.c.b16 %v1658, %v1658
      %v1671 = vpack.c.b16 %v1659, %v1659
      %v1672 = vpack.c.b16 %v1660, %v1660
      %v1673 = vpack.c.b16 %v1661, %v1661
      %v1674 = vpack.c.b16 %v1662, %v1662
      %v1675 = vpack.c.b16 %v1663, %v1663
      %1676 = vrot.lane.b32.xlu0 %v1664, 32
      %v1677 = vpop.permute.xlu0 %1676
      %1678 = vrot.lane.b32.xlu0 %v1665, 32
      %v1679 = vpop.permute.xlu0 %1678
      %1680 = vrot.lane.b32.xlu0 %v1666, 32
      %v1681 = vpop.permute.xlu0 %1680
      %1682 = vrot.lane.b32.xlu0 %v1667, 32
      %v1683 = vpop.permute.xlu0 %1682
      %1684 = vrot.lane.b32.xlu0 %v1668, 32
      %v1685 = vpop.permute.xlu0 %1684
      %1686 = vrot.lane.b32.xlu0 %v1669, 32
      %v1687 = vpop.permute.xlu0 %1686
      %1688 = vrot.lane.b32.xlu0 %v1670, 32
      %v1689 = vpop.permute.xlu0 %1688
      %1690 = vrot.lane.b32.xlu0 %v1671, 32
      %v1691 = vpop.permute.xlu0 %1690
      %1692 = vrot.lane.b32.xlu0 %v1672, 32
      %v1693 = vpop.permute.xlu0 %1692
      %1694 = vrot.lane.b32.xlu0 %v1673, 32
      %v1695 = vpop.permute.xlu0 %1694
      %1696 = vrot.lane.b32.xlu0 %v1674, 32
      %v1697 = vpop.permute.xlu0 %1696
      %1698 = vrot.lane.b32.xlu0 %v1675, 32
      %v1699 = vpop.permute.xlu0 %1698
      %vm1712 = vcmask 290048
      %1713 = vst.msk [vmem:[#allocation2] sm:$0xf] %vm1712, %v1677
      %1714 = vst.msk [vmem:[#allocation2 + $0x4] sm:$0xf] %vm1712, %v1679
      %1715 = vst.msk [vmem:[#allocation2 + $0x8] sm:$0xf] %vm1712, %v1681
      %1716 = vst.msk [vmem:[#allocation2 + $0xc] sm:$0xf] %vm1712, %v1683
      %1717 = vst.msk [vmem:[#allocation2 + $0x10] sm:$0xf] %vm1712, %v1685
      %1718 = vst.msk [vmem:[#allocation2 + $0x14] sm:$0xf] %vm1712, %v1687
      %1719 = vst.msk [vmem:[#allocation2 + $0x18] sm:$0xf] %vm1712, %v1689
      %1720 = vst.msk [vmem:[#allocation2 + $0x1c] sm:$0xf] %vm1712, %v1691
      %1721 = vst.msk [vmem:[#allocation2 + $0x20] sm:$0xf] %vm1712, %v1693
      %1722 = vst.msk [vmem:[#allocation2 + $0x24] sm:$0xf] %vm1712, %v1695
      %1723 = vst.msk [vmem:[#allocation2 + $0x28] sm:$0xf] %vm1712, %v1697
      %1724 = vst.msk [vmem:[#allocation2 + $0x2c] sm:$0xf] %vm1712, %v1699
      %v1725 = vld [vmem:[%s359 + $0x2] sm:$0xff]
      %v1726 = vld [vmem:[%s359 + $0xa] sm:$0xff]
      %v1727 = vld [vmem:[%s359 + $0x1a] sm:$0xff]
      %v1728 = vld [vmem:[%s359 + $0x22] sm:$0xff]
      %v1729 = vld [vmem:[%s359 + $0x32] sm:$0xff]
      %v1730 = vld [vmem:[%s359 + $0x3a] sm:$0xff]
      %v1731 = vld [vmem:[%s359 + $0x4a] sm:$0xff]
      %v1732 = vld [vmem:[%s359 + $0x52] sm:$0xff]
      %v1733 = vpack.c.bf16 %v1726, %v1725
      %v1734 = vpack.c.bf16 %v1728, %v1727
      %v1735 = vpack.c.bf16 %v1730, %v1729
      %v1736 = vpack.c.bf16 %v1732, %v1731
      %v1741 = vunpack.c.l.b16 %v1733
      %v1742 = vunpack.c.h.b16 %v1733
      %v1743 = vunpack.c.l.b16 %v1734
      %v1744 = vunpack.c.h.b16 %v1734
      %v1745 = vunpack.c.l.b16 %v1735
      %v1746 = vunpack.c.h.b16 %v1735
      %v1747 = vunpack.c.l.b16 %v1736
      %v1748 = vunpack.c.h.b16 %v1736
      %v1749 = vpack.c.b16 %v1741, %v1741
      %v1750 = vpack.c.b16 %v1742, %v1742
      %v1751 = vpack.c.b16 %v1743, %v1743
      %v1752 = vpack.c.b16 %v1744, %v1744
      %v1753 = vpack.c.b16 %v1745, %v1745
      %v1754 = vpack.c.b16 %v1746, %v1746
      %v1755 = vpack.c.b16 %v1747, %v1747
      %v1756 = vpack.c.b16 %v1748, %v1748
      %1757 = vrot.lane.b32.xlu0 %v1749, 32
      %v1758 = vpop.permute.xlu0 %1757
      %1759 = vrot.lane.b32.xlu0 %v1750, 32
      %v1760 = vpop.permute.xlu0 %1759
      %1761 = vrot.lane.b32.xlu0 %v1751, 32
      %v1762 = vpop.permute.xlu0 %1761
      %1763 = vrot.lane.b32.xlu0 %v1752, 32
      %v1764 = vpop.permute.xlu0 %1763
      %1765 = vrot.lane.b32.xlu0 %v1753, 32
      %v1766 = vpop.permute.xlu0 %1765
      %1767 = vrot.lane.b32.xlu0 %v1754, 32
      %v1768 = vpop.permute.xlu0 %1767
      %1769 = vrot.lane.b32.xlu0 %v1755, 32
      %v1770 = vpop.permute.xlu0 %1769
      %1771 = vrot.lane.b32.xlu0 %v1756, 32
      %v1772 = vpop.permute.xlu0 %1771
      %1781 = vst.msk [vmem:[%s1458] sm:$0xf] %vm1712, %v1758
      %1782 = vst.msk [vmem:[%s1458 + $0x4] sm:$0xf] %vm1712, %v1760
      %1783 = vst.msk [vmem:[%s1458 + $0x8] sm:$0xf] %vm1712, %v1762
      %1784 = vst.msk [vmem:[%s1458 + $0xc] sm:$0xf] %vm1712, %v1764
      %1785 = vst.msk [vmem:[%s1458 + $0x10] sm:$0xf] %vm1712, %v1766
      %1786 = vst.msk [vmem:[%s1458 + $0x14] sm:$0xf] %vm1712, %v1768
      %1787 = vst.msk [vmem:[%s1458 + $0x18] sm:$0xf] %vm1712, %v1770
      %1788 = vst.msk [vmem:[%s1458 + $0x1c] sm:$0xf] %vm1712, %v1772
      %v1789 = vld [vmem:[#allocation2] sm:$0xf]
      %v1790 = vld [vmem:[#allocation2 + $0x4] sm:$0xf]
      %v1791 = vld [vmem:[#allocation2 + $0x8] sm:$0xf]
      %v1792 = vld [vmem:[#allocation2 + $0xc] sm:$0xf]
      %v1793 = vld [vmem:[#allocation2 + $0x10] sm:$0xf]
      %v1794 = vld [vmem:[#allocation2 + $0x14] sm:$0xf]
      %v1795 = vld [vmem:[#allocation2 + $0x18] sm:$0xf]
      %v1796 = vld [vmem:[#allocation2 + $0x1c] sm:$0xf]
      %v1797 = vld [vmem:[#allocation2 + $0x20] sm:$0xf]
      %v1798 = vld [vmem:[#allocation2 + $0x24] sm:$0xf]
      %v1799 = vld [vmem:[#allocation2 + $0x28] sm:$0xf]
      %v1800 = vld [vmem:[#allocation2 + $0x2c] sm:$0xf]
      %v1801 = vld [vmem:[#allocation2 + $0x30] sm:$0xf]
      %v1802 = vld [vmem:[#allocation2 + $0x34] sm:$0xf]
      %v1803 = vld [vmem:[#allocation2 + $0x38] sm:$0xf]
      %v1804 = vld [vmem:[#allocation2 + $0x3c] sm:$0xf]
      %v1805 = vld [vmem:[#allocation2 + $0x40] sm:$0xf]
      %v1806 = vld [vmem:[#allocation2 + $0x44] sm:$0xf]
      %v1807 = vld [vmem:[#allocation2 + $0x48] sm:$0xf]
      %v1808 = vld [vmem:[#allocation2 + $0x4c] sm:$0xf]
      %v1809 = vld [vmem:[%s2] sm:$0xf]
      %v1810 = vld [vmem:[%s2 + $0x4] sm:$0xf]
      %v1811 = vld [vmem:[%s2 + $0x8] sm:$0xf]
      %v1812 = vld [vmem:[%s2 + $0xc] sm:$0xf]
      %v1813 = vld [vmem:[%s2 + $0x10] sm:$0x3]
      %v1834 = vunpack.c.l.b16 %v1789
      %v1835 = vunpack.c.l.b16 %v1790
      %v1836 = vunpack.c.l.b16 %v1791
      %v1837 = vunpack.c.l.b16 %v1792
      %v1838 = vunpack.c.l.b16 %v1793
      %v1839 = vunpack.c.l.b16 %v1794
      %v1840 = vunpack.c.l.b16 %v1795
      %v1841 = vunpack.c.l.b16 %v1796
      %v1842 = vunpack.c.l.b16 %v1797
      %v1843 = vunpack.c.l.b16 %v1798
      %v1844 = vunpack.c.l.b16 %v1799
      %v1845 = vunpack.c.l.b16 %v1800
      %v1846 = vunpack.c.l.b16 %v1801
      %v1847 = vunpack.c.l.b16 %v1802
      %v1848 = vunpack.c.l.b16 %v1803
      %v1849 = vunpack.c.l.b16 %v1804
      %v1850 = vunpack.c.l.b16 %v1805
      %v1851 = vunpack.c.l.b16 %v1806
      %v1852 = vunpack.c.l.b16 %v1807
      %v1853 = vunpack.c.l.b16 %v1808
      %v1854 = vpack.c.b16 %v1835, %v1834
      %v1855 = vpack.c.b16 %v1837, %v1836
      %v1856 = vpack.c.b16 %v1839, %v1838
      %v1857 = vpack.c.b16 %v1841, %v1840
      %v1858 = vpack.c.b16 %v1843, %v1842
      %v1859 = vpack.c.b16 %v1845, %v1844
      %v1860 = vpack.c.b16 %v1847, %v1846
      %v1861 = vpack.c.b16 %v1849, %v1848
      %v1862 = vpack.c.b16 %v1851, %v1850
      %v1863 = vpack.c.b16 %v1853, %v1852
      %v1869 = vunpack.c.l.b16 %v1809
      %v1870 = vunpack.c.l.b16 %v1810
      %v1871 = vunpack.c.l.b16 %v1811
      %v1872 = vunpack.c.l.b16 %v1812
      %v1873 = vunpack.c.l.b16 %v1813
      %v1874 = vpack.c.b16 %v1870, %v1869
      %v1875 = vpack.c.b16 %v1872, %v1871
      %v1876 = vpack.c.b16 %v1873, %v1873
      %vm1879 = vcmask 293888
      %v1881 = vsel %vm1879, %v1854, 0
      %v1884 = vsel %vm1879, %v1855, 0
      %v1887 = vsel %vm1879, %v1856, 0
      %v1890 = vsel %vm1879, %v1857, 0
      %v1893 = vsel %vm1879, %v1858, 0
      %v1896 = vsel %vm1879, %v1859, 0
      %v1899 = vsel %vm1879, %v1860, 0
      %v1902 = vsel %vm1879, %v1861, 0
      %v1905 = vsel %vm1879, %v1862, 0
      %v1908 = vsel %vm1879, %v1863, 0
      %vm1910 = vcmask 1041408
      %v1912 = vsel %vm1910, %v1876, 0
      %1914 = vmatprep.subr.bf16.mxu0 0
      %1915 = vmatpush1.bf16.msra.mxu0 0
      %1916 = vmatprep.subr.bf16.mxu0 0
      %1917 = vmatpush1.bf16.msra.mxu0 0
      %1918 = vmatprep.subr.bf16.mxu0 0
      %1919 = vmatpush1.bf16.msra.mxu0 0
      %1920 = vmatprep.subr.bf16.mxu0 0
      %1921 = vmatpush1.bf16.msra.mxu0 0
      %1922 = vmatprep.subr.bf16.mxu0 0
      %1923 = vmatpush1.bf16.msra.mxu0 0
      %1924 = vmatprep.subr.bf16.mxu0 0
      %1925 = vmatpush1.bf16.msra.mxu0 %v1912
      %1926 = vmatprep.subr.bf16.mxu0 0
      %1927 = vmatpush1.bf16.msra.mxu0 %v1875
      %1928 = vmatprep.subr.bf16.mxu0 0
      %1929 = vmatpush1.bf16.msra.mxu0 %v1874
      %1930 = vmatprep.subr.bf16.mxu0 0
      %1931 = vmatpush2.bf16.msra.mxu0 0
      %1932 = vmatprep.subr.bf16.mxu0 0
      %1933 = vmatpush2.bf16.msra.mxu0 0
      %1934 = vmatprep.subr.bf16.mxu0 0
      %1935 = vmatpush2.bf16.msra.mxu0 0
      %1936 = vmatprep.subr.bf16.mxu0 0
      %1937 = vmatpush2.bf16.msra.mxu0 0
      %1938 = vmatprep.subr.bf16.mxu0 0
      %1939 = vmatpush2.bf16.msra.mxu0 0
      %1940 = vmatprep.subr.bf16.mxu0 0
      %1941 = vmatpush2.bf16.msra.mxu0 0
      %1942 = vmatprep.subr.bf16.mxu0 0
      %1943 = vmatpush2.bf16.msra.mxu0 0
      %1944 = vmatprep.subr.bf16.mxu0 0
      %1945 = vmatpush2.bf16.msra.mxu0 0
      %1946 = vmatprep.mubr.bf16.mxu0 0
      %1947 = vmatmul.mubr.bf16.gmra.mxu0 %v1881
      %v1948 = vpop.f32.mrf.mxu0
      %v1949 = vadd.f32 0.0, %v1948
      %v1950 = vpop.f32.mrf.mxu0
      %v1951 = vpop.f32.mrf.mxu0
      %v1952 = vadd.f32 0.0, %v1951
      %v1953 = vpop.f32.mrf.mxu0
      %1954 = vmatprep.mubr.bf16.mxu0 0
      %1955 = vmatmul.mubr.bf16.gmra.mxu0 %v1884
      %v1956 = vpop.f32.mrf.mxu0
      %v1957 = vadd.f32 0.0, %v1956
      %v1958 = vpop.f32.mrf.mxu0
      %v1959 = vpop.f32.mrf.mxu0
      %v1960 = vadd.f32 0.0, %v1959
      %v1961 = vpop.f32.mrf.mxu0
      %1962 = vmatprep.mubr.bf16.mxu0 0
      %1963 = vmatmul.mubr.bf16.gmra.mxu0 %v1887
      %v1964 = vpop.f32.mrf.mxu0
      %v1965 = vadd.f32 0.0, %v1964
      %v1966 = vpop.f32.mrf.mxu0
      %v1967 = vpop.f32.mrf.mxu0
      %v1968 = vadd.f32 0.0, %v1967
      %v1969 = vpop.f32.mrf.mxu0
      %1970 = vmatprep.mubr.bf16.mxu0 0
      %1971 = vmatmul.mubr.bf16.gmra.mxu0 %v1890
      %v1972 = vpop.f32.mrf.mxu0
      %v1973 = vadd.f32 0.0, %v1972
      %v1974 = vpop.f32.mrf.mxu0
      %v1975 = vpop.f32.mrf.mxu0
      %v1976 = vadd.f32 0.0, %v1975
      %v1977 = vpop.f32.mrf.mxu0
      %1978 = vmatprep.mubr.bf16.mxu0 0
      %1979 = vmatmul.mubr.bf16.gmra.mxu0 %v1893
      %v1980 = vpop.f32.mrf.mxu0
      %v1981 = vadd.f32 0.0, %v1980
      %v1982 = vpop.f32.mrf.mxu0
      %v1983 = vpop.f32.mrf.mxu0
      %v1984 = vadd.f32 0.0, %v1983
      %v1985 = vpop.f32.mrf.mxu0
      %1986 = vmatprep.mubr.bf16.mxu0 0
      %1987 = vmatmul.mubr.bf16.gmra.mxu0 %v1896
      %v1988 = vpop.f32.mrf.mxu0
      %v1989 = vadd.f32 0.0, %v1988
      %v1990 = vpop.f32.mrf.mxu0
      %v1991 = vpop.f32.mrf.mxu0
      %v1992 = vadd.f32 0.0, %v1991
      %v1993 = vpop.f32.mrf.mxu0
      %1994 = vmatprep.mubr.bf16.mxu0 0
      %1995 = vmatmul.mubr.bf16.gmra.mxu0 %v1899
      %v1996 = vpop.f32.mrf.mxu0
      %v1997 = vadd.f32 0.0, %v1996
      %v1998 = vpop.f32.mrf.mxu0
      %v1999 = vpop.f32.mrf.mxu0
      %v2000 = vadd.f32 0.0, %v1999
      %v2001 = vpop.f32.mrf.mxu0
      %2002 = vmatprep.mubr.bf16.mxu0 0
      %2003 = vmatmul.mubr.bf16.gmra.mxu0 %v1902
      %v2004 = vpop.f32.mrf.mxu0
      %v2005 = vadd.f32 0.0, %v2004
      %v2006 = vpop.f32.mrf.mxu0
      %v2007 = vpop.f32.mrf.mxu0
      %v2008 = vadd.f32 0.0, %v2007
      %v2009 = vpop.f32.mrf.mxu0
      %2010 = vmatprep.mubr.bf16.mxu0 0
      %2011 = vmatmul.mubr.bf16.gmra.mxu0 %v1905
      %v2012 = vpop.f32.mrf.mxu0
      %v2013 = vadd.f32 0.0, %v2012
      %v2014 = vpop.f32.mrf.mxu0
      %v2015 = vpop.f32.mrf.mxu0
      %v2016 = vadd.f32 0.0, %v2015
      %v2017 = vpop.f32.mrf.mxu0
      %2018 = vmatprep.mubr.bf16.mxu0 0
      %2019 = vmatmul.mubr.bf16.gmra.mxu0 %v1908
      %v2020 = vpop.f32.mrf.mxu0
      %v2021 = vadd.f32 0.0, %v2020
      %v2022 = vpop.f32.mrf.mxu0
      %v2023 = vpop.f32.mrf.mxu0
      %v2024 = vadd.f32 0.0, %v2023
      %v2025 = vpop.f32.mrf.mxu0
      %2026 = vdwg.mxu0
      %v2027 = vld [vmem:[%s3] sm:$0x1]
      %v2029 = vlaneseq
      %v2030 = vshrl.u32 %v2029, 7
      %v2031 = vsub.s32 0, %v2030
      %v2032 = vrot.slane %v2027, %v2031
      %v2034 = vadd.f32 %v1949, %v2032
      %v2035 = vadd.f32 %v1952, %v2032
      %v2036 = vadd.f32 %v1957, %v2032
      %v2037 = vadd.f32 %v1960, %v2032
      %v2038 = vadd.f32 %v1965, %v2032
      %v2039 = vadd.f32 %v1968, %v2032
      %v2040 = vadd.f32 %v1973, %v2032
      %v2041 = vadd.f32 %v1976, %v2032
      %v2042 = vadd.f32 %v1981, %v2032
      %v2043 = vadd.f32 %v1984, %v2032
      %v2044 = vadd.f32 %v1989, %v2032
      %v2045 = vadd.f32 %v1992, %v2032
      %v2046 = vadd.f32 %v1997, %v2032
      %v2047 = vadd.f32 %v2000, %v2032
      %v2048 = vadd.f32 %v2005, %v2032
      %v2049 = vadd.f32 %v2008, %v2032
      %v2050 = vadd.f32 %v2013, %v2032
      %v2051 = vadd.f32 %v2016, %v2032
      %v2052 = vadd.f32 %v2021, %v2032
      %v2053 = vadd.f32 %v2024, %v2032
      %v2054 = vmax.f32 %v2034, 0.0
      %v2055 = vmax.f32 %v2035, 0.0
      %v2056 = vmax.f32 %v2036, 0.0
      %v2057 = vmax.f32 %v2037, 0.0
      %v2058 = vmax.f32 %v2038, 0.0
      %v2059 = vmax.f32 %v2039, 0.0
      %v2060 = vmax.f32 %v2040, 0.0
      %v2061 = vmax.f32 %v2041, 0.0
      %v2062 = vmax.f32 %v2042, 0.0
      %v2063 = vmax.f32 %v2043, 0.0
      %v2064 = vmax.f32 %v2044, 0.0
      %v2065 = vmax.f32 %v2045, 0.0
      %v2066 = vmax.f32 %v2046, 0.0
      %v2067 = vmax.f32 %v2047, 0.0
      %v2068 = vmax.f32 %v2048, 0.0
      %v2069 = vmax.f32 %v2049, 0.0
      %v2070 = vmax.f32 %v2050, 0.0
      %v2071 = vmax.f32 %v2051, 0.0
      %v2072 = vmax.f32 %v2052, 0.0
      %v2073 = vmax.f32 %v2053, 0.0
      %v2074 = vpack.c.bf16 %v2055, %v2054
      %v2075 = vpack.c.bf16 %v2057, %v2056
      %v2076 = vpack.c.bf16 %v2059, %v2058
      %v2077 = vpack.c.bf16 %v2061, %v2060
      %v2078 = vpack.c.bf16 %v2063, %v2062
      %v2079 = vpack.c.bf16 %v2065, %v2064
      %v2080 = vpack.c.bf16 %v2067, %v2066
      %v2081 = vpack.c.bf16 %v2069, %v2068
      %v2082 = vpack.c.bf16 %v2071, %v2070
      %v2083 = vpack.c.bf16 %v2073, %v2072
      %v2094 = vunpack.c.l.b16 %v2074
      %v2095 = vunpack.c.h.b16 %v2074
      %v2096 = vunpack.c.l.b16 %v2075
      %v2097 = vunpack.c.h.b16 %v2075
      %v2098 = vunpack.c.l.b16 %v2076
      %v2099 = vunpack.c.h.b16 %v2076
      %v2100 = vunpack.c.l.b16 %v2077
      %v2101 = vunpack.c.h.b16 %v2077
      %v2102 = vunpack.c.l.b16 %v2078
      %v2103 = vunpack.c.h.b16 %v2078
      %v2104 = vunpack.c.l.b16 %v2079
      %v2105 = vunpack.c.h.b16 %v2079
      %v2106 = vunpack.c.l.b16 %v2080
      %v2107 = vunpack.c.h.b16 %v2080
      %v2108 = vunpack.c.l.b16 %v2081
      %v2109 = vunpack.c.h.b16 %v2081
      %v2110 = vunpack.c.l.b16 %v2082
      %v2111 = vunpack.c.h.b16 %v2082
      %v2112 = vunpack.c.l.b16 %v2083
      %v2113 = vunpack.c.h.b16 %v2083
      %v2114 = vpack.c.b16 %v2094, %v2094
      %v2115 = vpack.c.b16 %v2095, %v2095
      %v2116 = vpack.c.b16 %v2096, %v2096
      %v2117 = vpack.c.b16 %v2097, %v2097
      %v2118 = vpack.c.b16 %v2098, %v2098
      %v2119 = vpack.c.b16 %v2099, %v2099
      %v2120 = vpack.c.b16 %v2100, %v2100
      %v2121 = vpack.c.b16 %v2101, %v2101
      %v2122 = vpack.c.b16 %v2102, %v2102
      %v2123 = vpack.c.b16 %v2103, %v2103
      %v2124 = vpack.c.b16 %v2104, %v2104
      %v2125 = vpack.c.b16 %v2105, %v2105
      %v2126 = vpack.c.b16 %v2106, %v2106
      %v2127 = vpack.c.b16 %v2107, %v2107
      %v2128 = vpack.c.b16 %v2108, %v2108
      %v2129 = vpack.c.b16 %v2109, %v2109
      %v2130 = vpack.c.b16 %v2110, %v2110
      %v2131 = vpack.c.b16 %v2111, %v2111
      %v2132 = vpack.c.b16 %v2112, %v2112
      %v2133 = vpack.c.b16 %v2113, %v2113
      %vm2134 = vsmask.f32 256
      %vm2135 = vsmask.f32 4368
      %vm2136 = vmor %vm2134, %vm2135
      %v2138 = vshrl.u32 %v2114, 16
      %v2140 = vrot.slane %v2138, 7
      %v2141 = vshll.u32 %v2114, 16
      %v2143 = vor.u32 %v2140, %v2141
      %v2144 = vrot.slane %v2140, 4
      %v2146 = vshrl.u32 %v2115, 16
      %v2148 = vrot.slane %v2146, 7
      %v2149 = vshll.u32 %v2115, 16
      %v2151 = vor.u32 %v2148, %v2149
      %v2152 = vsel %vm2136, %v2144, %v2151
      %v2153 = vrot.slane %v2148, 4
      %v2155 = vshrl.u32 %v2116, 16
      %v2157 = vrot.slane %v2155, 7
      %v2158 = vshll.u32 %v2116, 16
      %v2160 = vor.u32 %v2157, %v2158
      %v2161 = vrot.slane %v2157, 4
      %v2163 = vshrl.u32 %v2117, 16
      %v2165 = vrot.slane %v2163, 7
      %v2166 = vshll.u32 %v2117, 16
      %v2168 = vor.u32 %v2165, %v2166
      %v2169 = vsel %vm2136, %v2161, %v2168
      %v2170 = vrot.slane %v2165, 4
      %v2172 = vshrl.u32 %v2118, 16
      %v2174 = vrot.slane %v2172, 7
      %v2175 = vshll.u32 %v2118, 16
      %v2177 = vor.u32 %v2174, %v2175
      %v2178 = vrot.slane %v2174, 4
      %v2180 = vshrl.u32 %v2119, 16
      %v2182 = vrot.slane %v2180, 7
      %v2183 = vshll.u32 %v2119, 16
      %v2185 = vor.u32 %v2182, %v2183
      %v2186 = vsel %vm2136, %v2178, %v2185
      %v2187 = vrot.slane %v2182, 4
      %v2189 = vshrl.u32 %v2120, 16
      %v2191 = vrot.slane %v2189, 7
      %v2192 = vshll.u32 %v2120, 16
      %v2194 = vor.u32 %v2191, %v2192
      %v2195 = vrot.slane %v2191, 4
      %v2197 = vshrl.u32 %v2121, 16
      %v2199 = vrot.slane %v2197, 7
      %v2200 = vshll.u32 %v2121, 16
      %v2202 = vor.u32 %v2199, %v2200
      %v2203 = vsel %vm2136, %v2195, %v2202
      %v2204 = vrot.slane %v2199, 4
      %v2206 = vshrl.u32 %v2122, 16
      %v2208 = vrot.slane %v2206, 7
      %v2209 = vshll.u32 %v2122, 16
      %v2211 = vor.u32 %v2208, %v2209
      %v2212 = vrot.slane %v2208, 4
      %v2214 = vshrl.u32 %v2123, 16
      %v2216 = vrot.slane %v2214, 7
      %v2217 = vshll.u32 %v2123, 16
      %v2219 = vor.u32 %v2216, %v2217
      %v2220 = vsel %vm2136, %v2212, %v2219
      %v2221 = vrot.slane %v2216, 4
      %v2223 = vshrl.u32 %v2124, 16
      %v2225 = vrot.slane %v2223, 7
      %v2226 = vshll.u32 %v2124, 16
      %v2228 = vor.u32 %v2225, %v2226
      %v2229 = vrot.slane %v2225, 4
      %v2231 = vshrl.u32 %v2125, 16
      %v2233 = vrot.slane %v2231, 7
      %v2234 = vshll.u32 %v2125, 16
      %v2236 = vor.u32 %v2233, %v2234
      %v2237 = vsel %vm2136, %v2229, %v2236
      %v2238 = vrot.slane %v2233, 4
      %v2240 = vshrl.u32 %v2126, 16
      %v2242 = vrot.slane %v2240, 7
      %v2243 = vshll.u32 %v2126, 16
      %v2245 = vor.u32 %v2242, %v2243
      %v2246 = vrot.slane %v2242, 4
      %v2248 = vshrl.u32 %v2127, 16
      %v2250 = vrot.slane %v2248, 7
      %v2251 = vshll.u32 %v2127, 16
      %v2253 = vor.u32 %v2250, %v2251
      %v2254 = vsel %vm2136, %v2246, %v2253
      %v2255 = vrot.slane %v2250, 4
      %v2257 = vshrl.u32 %v2128, 16
      %v2259 = vrot.slane %v2257, 7
      %v2260 = vshll.u32 %v2128, 16
      %v2262 = vor.u32 %v2259, %v2260
      %v2263 = vrot.slane %v2259, 4
      %v2265 = vshrl.u32 %v2129, 16
      %v2267 = vrot.slane %v2265, 7
      %v2268 = vshll.u32 %v2129, 16
      %v2270 = vor.u32 %v2267, %v2268
      %v2271 = vsel %vm2136, %v2263, %v2270
      %v2272 = vrot.slane %v2267, 4
      %v2274 = vshrl.u32 %v2130, 16
      %v2276 = vrot.slane %v2274, 7
      %v2277 = vshll.u32 %v2130, 16
      %v2279 = vor.u32 %v2276, %v2277
      %v2280 = vrot.slane %v2276, 4
      %v2282 = vshrl.u32 %v2131, 16
      %v2284 = vrot.slane %v2282, 7
      %v2285 = vshll.u32 %v2131, 16
      %v2287 = vor.u32 %v2284, %v2285
      %v2288 = vsel %vm2136, %v2280, %v2287
      %v2289 = vrot.slane %v2284, 4
      %v2291 = vshrl.u32 %v2132, 16
      %v2293 = vrot.slane %v2291, 7
      %v2294 = vshll.u32 %v2132, 16
      %v2296 = vor.u32 %v2293, %v2294
      %v2297 = vrot.slane %v2293, 4
      %v2299 = vshrl.u32 %v2133, 16
      %v2301 = vrot.slane %v2299, 7
      %v2302 = vshll.u32 %v2133, 16
      %v2304 = vor.u32 %v2301, %v2302
      %v2305 = vsel %vm2136, %v2297, %v2304
      %v2306 = vrot.slane %v2301, 4
      %vm2337 = vcmask 27648
      %vm2338 = vsmask.f32 7938
      %vm2339 = vmand %vm2337, %vm2338
      %v2340 = vld [vmem:[#allocation3] sm:$0xf]
      %v2341 = vsel %vm2339, %v2143, %v2340
      %2342 = vst [vmem:[#allocation3] sm:$0xf] %v2341
      %2343 = vst.msk [vmem:[#allocation3 + $0x4] sm:$0xf] %vm455, %v2152
      %vm2344 = vcmask 24576
      %vm2345 = vmand %vm2344, %vm2134
      %v2346 = vld [vmem:[#allocation3 + $0x8] sm:$0x1]
      %v2347 = vsel %vm2345, %v2153, %v2346
      %2348 = vst [vmem:[#allocation3 + $0x8] sm:$0x1] %v2347
      %v2349 = vld [vmem:[#allocation3 + $0xc] sm:$0xf]
      %v2350 = vsel %vm2339, %v2160, %v2349
      %2351 = vst [vmem:[#allocation3 + $0xc] sm:$0xf] %v2350
      %2352 = vst.msk [vmem:[#allocation3 + $0x10] sm:$0xf] %vm455, %v2169
      %v2353 = vld [vmem:[#allocation3 + $0x14] sm:$0x1]
      %v2354 = vsel %vm2345, %v2170, %v2353
      %2355 = vst [vmem:[#allocation3 + $0x14] sm:$0x1] %v2354
      %v2356 = vld [vmem:[#allocation3 + $0x18] sm:$0xf]
      %v2357 = vsel %vm2339, %v2177, %v2356
      %2358 = vst [vmem:[#allocation3 + $0x18] sm:$0xf] %v2357
      %2359 = vst.msk [vmem:[#allocation3 + $0x1c] sm:$0xf] %vm455, %v2186
      %v2360 = vld [vmem:[#allocation3 + $0x20] sm:$0x1]
      %v2361 = vsel %vm2345, %v2187, %v2360
      %2362 = vst [vmem:[#allocation3 + $0x20] sm:$0x1] %v2361
      %v2363 = vld [vmem:[#allocation3 + $0x24] sm:$0xf]
      %v2364 = vsel %vm2339, %v2194, %v2363
      %2365 = vst [vmem:[#allocation3 + $0x24] sm:$0xf] %v2364
      %2366 = vst.msk [vmem:[#allocation3 + $0x28] sm:$0xf] %vm455, %v2203
      %v2367 = vld [vmem:[#allocation3 + $0x2c] sm:$0x1]
      %v2368 = vsel %vm2345, %v2204, %v2367
      %2369 = vst [vmem:[#allocation3 + $0x2c] sm:$0x1] %v2368
      %v2370 = vld [vmem:[#allocation3 + $0x30] sm:$0xf]
      %v2371 = vsel %vm2339, %v2211, %v2370
      %2372 = vst [vmem:[#allocation3 + $0x30] sm:$0xf] %v2371
      %2373 = vst.msk [vmem:[#allocation3 + $0x34] sm:$0xf] %vm455, %v2220
      %v2374 = vld [vmem:[#allocation3 + $0x38] sm:$0x1]
      %v2375 = vsel %vm2345, %v2221, %v2374
      %2376 = vst [vmem:[#allocation3 + $0x38] sm:$0x1] %v2375
      %v2377 = vld [vmem:[#allocation3 + $0x3c] sm:$0xf]
      %v2378 = vsel %vm2339, %v2228, %v2377
      %2379 = vst [vmem:[#allocation3 + $0x3c] sm:$0xf] %v2378
      %2380 = vst.msk [vmem:[#allocation3 + $0x40] sm:$0xf] %vm455, %v2237
      %v2381 = vld [vmem:[#allocation3 + $0x44] sm:$0x1]
      %v2382 = vsel %vm2345, %v2238, %v2381
      %2383 = vst [vmem:[#allocation3 + $0x44] sm:$0x1] %v2382
      %v2384 = vld [vmem:[#allocation3 + $0x48] sm:$0xf]
      %v2385 = vsel %vm2339, %v2245, %v2384
      %2386 = vst [vmem:[#allocation3 + $0x48] sm:$0xf] %v2385
      %2387 = vst.msk [vmem:[#allocation3 + $0x4c] sm:$0xf] %vm455, %v2254
      %v2388 = vld [vmem:[#allocation3 + $0x50] sm:$0x1]
      %v2389 = vsel %vm2345, %v2255, %v2388
      %2390 = vst [vmem:[#allocation3 + $0x50] sm:$0x1] %v2389
      %v2391 = vld [vmem:[#allocation3 + $0x54] sm:$0xf]
      %v2392 = vsel %vm2339, %v2262, %v2391
      %2393 = vst [vmem:[#allocation3 + $0x54] sm:$0xf] %v2392
      %2394 = vst.msk [vmem:[#allocation3 + $0x58] sm:$0xf] %vm455, %v2271
      %v2395 = vld [vmem:[#allocation3 + $0x5c] sm:$0x1]
      %v2396 = vsel %vm2345, %v2272, %v2395
      %2397 = vst [vmem:[#allocation3 + $0x5c] sm:$0x1] %v2396
      %v2398 = vld [vmem:[#allocation3 + $0x60] sm:$0xf]
      %v2399 = vsel %vm2339, %v2279, %v2398
      %2400 = vst [vmem:[#allocation3 + $0x60] sm:$0xf] %v2399
      %2401 = vst.msk [vmem:[#allocation3 + $0x64] sm:$0xf] %vm455, %v2288
      %v2402 = vld [vmem:[#allocation3 + $0x68] sm:$0x1]
      %v2403 = vsel %vm2345, %v2289, %v2402
      %2404 = vst [vmem:[#allocation3 + $0x68] sm:$0x1] %v2403
      %v2405 = vld [vmem:[#allocation3 + $0x6c] sm:$0xf]
      %v2406 = vsel %vm2339, %v2296, %v2405
      %2407 = vst [vmem:[#allocation3 + $0x6c] sm:$0xf] %v2406
      %2408 = vst.msk [vmem:[#allocation3 + $0x70] sm:$0xf] %vm455, %v2305
      %v2409 = vld [vmem:[#allocation3 + $0x74] sm:$0x1]
      %v2410 = vsel %vm2345, %v2306, %v2409
      %2411 = vst [vmem:[#allocation3 + $0x74] sm:$0x1] %v2410
      %v2412 = vld [vmem:[#allocation3] sm:$0x1]
      %v2413 = vsel %vm2345, 0, %v2412
      %2414 = vst [vmem:[#allocation3] sm:$0x1] %v2413
      %v2415 = vld [vmem:[#allocation3 + $0xc] sm:$0x1]
      %v2416 = vsel %vm2345, 0, %v2415
      %2417 = vst [vmem:[#allocation3 + $0xc] sm:$0x1] %v2416
      %v2418 = vld [vmem:[#allocation3 + $0x18] sm:$0x1]
      %v2419 = vsel %vm2345, 0, %v2418
      %2420 = vst [vmem:[#allocation3 + $0x18] sm:$0x1] %v2419
      %v2421 = vld [vmem:[#allocation3 + $0x24] sm:$0x1]
      %v2422 = vsel %vm2345, 0, %v2421
      %2423 = vst [vmem:[#allocation3 + $0x24] sm:$0x1] %v2422
      %v2424 = vld [vmem:[#allocation3 + $0x30] sm:$0x1]
      %v2425 = vsel %vm2345, 0, %v2424
      %2426 = vst [vmem:[#allocation3 + $0x30] sm:$0x1] %v2425
      %v2427 = vld [vmem:[#allocation3 + $0x3c] sm:$0x1]
      %v2428 = vsel %vm2345, 0, %v2427
      %2429 = vst [vmem:[#allocation3 + $0x3c] sm:$0x1] %v2428
      %v2430 = vld [vmem:[#allocation3 + $0x48] sm:$0x1]
      %v2431 = vsel %vm2345, 0, %v2430
      %2432 = vst [vmem:[#allocation3 + $0x48] sm:$0x1] %v2431
      %v2433 = vld [vmem:[#allocation3 + $0x54] sm:$0x1]
      %v2434 = vsel %vm2345, 0, %v2433
      %2435 = vst [vmem:[#allocation3 + $0x54] sm:$0x1] %v2434
      %v2436 = vld [vmem:[#allocation3 + $0x60] sm:$0x1]
      %v2437 = vsel %vm2345, 0, %v2436
      %2438 = vst [vmem:[#allocation3 + $0x60] sm:$0x1] %v2437
      %v2439 = vld [vmem:[#allocation3 + $0x6c] sm:$0x1]
      %v2440 = vsel %vm2345, 0, %v2439
      %2441 = vst [vmem:[#allocation3 + $0x6c] sm:$0x1] %v2440
      %vm2442 = vmand %vm2344, %vm2338
      %v2443 = vld [vmem:[#allocation3 + $0x8] sm:$0x1]
      %v2444 = vsel %vm2442, 0, %v2443
      %2445 = vst [vmem:[#allocation3 + $0x8] sm:$0x1] %v2444
      %v2446 = vld [vmem:[#allocation3 + $0x14] sm:$0x1]
      %v2447 = vsel %vm2442, 0, %v2446
      %2448 = vst [vmem:[#allocation3 + $0x14] sm:$0x1] %v2447
      %v2449 = vld [vmem:[#allocation3 + $0x20] sm:$0x1]
      %v2450 = vsel %vm2442, 0, %v2449
      %2451 = vst [vmem:[#allocation3 + $0x20] sm:$0x1] %v2450
      %v2452 = vld [vmem:[#allocation3 + $0x2c] sm:$0x1]
      %v2453 = vsel %vm2442, 0, %v2452
      %2454 = vst [vmem:[#allocation3 + $0x2c] sm:$0x1] %v2453
      %v2455 = vld [vmem:[#allocation3 + $0x38] sm:$0x1]
      %v2456 = vsel %vm2442, 0, %v2455
      %2457 = vst [vmem:[#allocation3 + $0x38] sm:$0x1] %v2456
      %v2458 = vld [vmem:[#allocation3 + $0x44] sm:$0x1]
      %v2459 = vsel %vm2442, 0, %v2458
      %2460 = vst [vmem:[#allocation3 + $0x44] sm:$0x1] %v2459
      %v2461 = vld [vmem:[#allocation3 + $0x50] sm:$0x1]
      %v2462 = vsel %vm2442, 0, %v2461
      %2463 = vst [vmem:[#allocation3 + $0x50] sm:$0x1] %v2462
      %v2464 = vld [vmem:[#allocation3 + $0x5c] sm:$0x1]
      %v2465 = vsel %vm2442, 0, %v2464
      %2466 = vst [vmem:[#allocation3 + $0x5c] sm:$0x1] %v2465
      %v2467 = vld [vmem:[#allocation3 + $0x68] sm:$0x1]
      %v2468 = vsel %vm2442, 0, %v2467
      %2469 = vst [vmem:[#allocation3 + $0x68] sm:$0x1] %v2468
      %v2470 = vld [vmem:[#allocation3 + $0x74] sm:$0x1]
      %v2471 = vsel %vm2442, 0, %v2470
      %2472 = vst [vmem:[#allocation3 + $0x74] sm:$0x1] %v2471
      %p2473 = scmp.eq.s32.totalorder %s22, 0
      // Predicated region
      $region45: #{tpu_custom_call.1} parent=43 // pred_check
        %p2474 = pneg %p2473
      $region46: #{tpu_custom_call.1} parent=43 // pred_check_branch
        %2476 = sbr.rel (%p2474) target = $region48
      $region47: #{tpu_custom_call.1} parent=43 // pred_region
        %2477 = vst.msk [vmem:[#allocation3] sm:$0xf] %vm455, 0
        %2478 = vst.msk [vmem:[#allocation3 + $0x4] sm:$0xf] %vm455, 0
        %vm2479 = vcmask 24576
        %2480 = vst.msk [vmem:[#allocation3 + $0x8] sm:$0x1] %vm2479, 0
      $region48: #{tpu_custom_call.1} parent=43 // pred_fallthru
        _
      %p2481 = scmp.eq.s32.totalorder %s22, 1
      // Predicated region
      $region49: #{tpu_custom_call.1} parent=43 // pred_check
        %p2482 = pneg %p2481
      $region50: #{tpu_custom_call.1} parent=43 // pred_check_branch
        %2484 = sbr.rel (%p2482) target = $region52
      $region51: #{tpu_custom_call.1} parent=43 // pred_region
        %s2485 = scalar_lea.vmem [#allocation3], 108
        %2486 = vst.msk [vmem:[%s2485] sm:$0xf] %vm455, 0
        %2487 = vst.msk [vmem:[%s2485 + $0x4] sm:$0xf] %vm455, 0
        %vm2488 = vcmask 24576
        %2489 = vst.msk [vmem:[%s2485 + $0x8] sm:$0x1] %vm2488, 0
      $region52: #{tpu_custom_call.1} parent=43 // pred_fallthru
        _
      %v2490 = vld [vmem:[#allocation3] sm:$0xf]
      %v2491 = vld [vmem:[#allocation3 + $0x4] sm:$0xf]
      %v2492 = vld [vmem:[#allocation3 + $0xc] sm:$0xf]
      %v2493 = vld [vmem:[#allocation3 + $0x10] sm:$0xf]
      %v2494 = vld [vmem:[#allocation3 + $0x18] sm:$0xf]
      %v2495 = vld [vmem:[#allocation3 + $0x1c] sm:$0xf]
      %v2496 = vld [vmem:[#allocation3 + $0x24] sm:$0xf]
      %v2497 = vld [vmem:[#allocation3 + $0x28] sm:$0xf]
      %v2498 = vld [vmem:[#allocation3 + $0x30] sm:$0xf]
      %v2499 = vld [vmem:[#allocation3 + $0x34] sm:$0xf]
      %v2500 = vld [vmem:[#allocation3 + $0x3c] sm:$0xf]
      %v2501 = vld [vmem:[#allocation3 + $0x40] sm:$0xf]
      %v2502 = vld [vmem:[#allocation3 + $0x48] sm:$0xf]
      %v2503 = vld [vmem:[#allocation3 + $0x4c] sm:$0xf]
      %v2504 = vld [vmem:[#allocation3 + $0x54] sm:$0xf]
      %v2505 = vld [vmem:[#allocation3 + $0x58] sm:$0xf]
      %2506 = vst.msk [vmem:[#allocation2] sm:$0xf] %vm455, %v2490
      %2507 = vst.msk [vmem:[#allocation2 + $0x4] sm:$0xf] %vm455, %v2491
      %2508 = vst.msk [vmem:[#allocation2 + $0x8] sm:$0xf] %vm455, %v2492
      %2509 = vst.msk [vmem:[#allocation2 + $0xc] sm:$0xf] %vm455, %v2493
      %2510 = vst.msk [vmem:[#allocation2 + $0x10] sm:$0xf] %vm455, %v2494
      %2511 = vst.msk [vmem:[#allocation2 + $0x14] sm:$0xf] %vm455, %v2495
      %2512 = vst.msk [vmem:[#allocation2 + $0x18] sm:$0xf] %vm455, %v2496
      %2513 = vst.msk [vmem:[#allocation2 + $0x1c] sm:$0xf] %vm455, %v2497
      %2514 = vst.msk [vmem:[#allocation2 + $0x20] sm:$0xf] %vm455, %v2498
      %2515 = vst.msk [vmem:[#allocation2 + $0x24] sm:$0xf] %vm455, %v2499
      %2516 = vst.msk [vmem:[#allocation2 + $0x28] sm:$0xf] %vm455, %v2500
      %2517 = vst.msk [vmem:[#allocation2 + $0x2c] sm:$0xf] %vm455, %v2501
      %2518 = vst.msk [vmem:[#allocation2 + $0x30] sm:$0xf] %vm455, %v2502
      %2519 = vst.msk [vmem:[#allocation2 + $0x34] sm:$0xf] %vm455, %v2503
      %2520 = vst.msk [vmem:[#allocation2 + $0x38] sm:$0xf] %vm455, %v2504
      %2521 = vst.msk [vmem:[#allocation2 + $0x3c] sm:$0xf] %vm455, %v2505
      %v2522 = vld [vmem:[#allocation3] sm:$0xf]
      %v2523 = vld [vmem:[#allocation3 + $0x4] sm:$0xf]
      %v2524 = vld [vmem:[#allocation3 + $0x8] sm:$0x1]
      %v2525 = vld [vmem:[#allocation3 + $0xc] sm:$0xf]
      %v2526 = vld [vmem:[#allocation3 + $0x10] sm:$0xf]
      %v2527 = vld [vmem:[#allocation3 + $0x14] sm:$0x1]
      %v2528 = vld [vmem:[#allocation3 + $0x18] sm:$0xf]
      %v2529 = vld [vmem:[#allocation3 + $0x1c] sm:$0xf]
      %v2530 = vld [vmem:[#allocation3 + $0x20] sm:$0x1]
      %v2531 = vld [vmem:[#allocation3 + $0x24] sm:$0xf]
      %v2532 = vld [vmem:[#allocation3 + $0x28] sm:$0xf]
      %v2533 = vld [vmem:[#allocation3 + $0x2c] sm:$0x1]
      %v2534 = vld [vmem:[#allocation3 + $0x30] sm:$0xf]
      %v2535 = vld [vmem:[#allocation3 + $0x34] sm:$0xf]
      %v2536 = vld [vmem:[#allocation3 + $0x38] sm:$0x1]
      %v2537 = vld [vmem:[#allocation3 + $0x3c] sm:$0xf]
      %v2538 = vld [vmem:[#allocation3 + $0x40] sm:$0xf]
      %v2539 = vld [vmem:[#allocation3 + $0x44] sm:$0x1]
      %v2540 = vld [vmem:[#allocation3 + $0x48] sm:$0xf]
      %v2541 = vld [vmem:[#allocation3 + $0x4c] sm:$0xf]
      %v2542 = vld [vmem:[#allocation3 + $0x50] sm:$0x1]
      %v2543 = vld [vmem:[#allocation3 + $0x54] sm:$0xf]
      %v2544 = vld [vmem:[#allocation3 + $0x58] sm:$0xf]
      %v2545 = vld [vmem:[#allocation3 + $0x5c] sm:$0x1]
      %vm2546 = vsmask.f32 3328
      %vm2547 = vsmask.f32 7440
      %vm2548 = vmor %vm2546, %vm2547
      %v2550 = vshrl.u32 %v2522, 16
      %v2552 = vrot.slane %v2550, 4
      %v2553 = vshll.u32 %v2522, 16
      %v2555 = vrot.slane %v2553, 5
      %v2556 = vor.u32 %v2552, %v2555
      %v2557 = vrot.slane %v2556, 4
      %v2559 = vshll.u32 %v2523, 16
      %v2561 = vrot.slane %v2559, 5
      %v2562 = vsel %vm2548, %v2557, %v2561
      %v2563 = vshrl.u32 %v2523, 16
      %v2565 = vrot.slane %v2563, 4
      %v2566 = vor.u32 %v2565, %v2561
      %v2567 = vrot.slane %v2566, 4
      %v2569 = vshll.u32 %v2524, 16
      %v2571 = vrot.slane %v2569, 5
      %v2572 = vsel %vm2548, %v2567, %v2571
      %v2574 = vshrl.u32 %v2525, 16
      %v2576 = vrot.slane %v2574, 4
      %v2577 = vshll.u32 %v2525, 16
      %v2579 = vrot.slane %v2577, 5
      %v2580 = vor.u32 %v2576, %v2579
      %v2581 = vrot.slane %v2580, 4
      %v2583 = vshll.u32 %v2526, 16
      %v2585 = vrot.slane %v2583, 5
      %v2586 = vsel %vm2548, %v2581, %v2585
      %v2587 = vshrl.u32 %v2526, 16
      %v2589 = vrot.slane %v2587, 4
      %v2590 = vor.u32 %v2589, %v2585
      %v2591 = vrot.slane %v2590, 4
      %v2593 = vshll.u32 %v2527, 16
      %v2595 = vrot.slane %v2593, 5
      %v2596 = vsel %vm2548, %v2591, %v2595
      %v2598 = vshrl.u32 %v2528, 16
      %v2600 = vrot.slane %v2598, 4
      %v2601 = vshll.u32 %v2528, 16
      %v2603 = vrot.slane %v2601, 5
      %v2604 = vor.u32 %v2600, %v2603
      %v2605 = vrot.slane %v2604, 4
      %v2607 = vshll.u32 %v2529, 16
      %v2609 = vrot.slane %v2607, 5
      %v2610 = vsel %vm2548, %v2605, %v2609
      %v2611 = vshrl.u32 %v2529, 16
      %v2613 = vrot.slane %v2611, 4
      %v2614 = vor.u32 %v2613, %v2609
      %v2615 = vrot.slane %v2614, 4
      %v2617 = vshll.u32 %v2530, 16
      %v2619 = vrot.slane %v2617, 5
      %v2620 = vsel %vm2548, %v2615, %v2619
      %v2622 = vshrl.u32 %v2531, 16
      %v2624 = vrot.slane %v2622, 4
      %v2625 = vshll.u32 %v2531, 16
      %v2627 = vrot.slane %v2625, 5
      %v2628 = vor.u32 %v2624, %v2627
      %v2629 = vrot.slane %v2628, 4
      %v2631 = vshll.u32 %v2532, 16
      %v2633 = vrot.slane %v2631, 5
      %v2634 = vsel %vm2548, %v2629, %v2633
      %v2635 = vshrl.u32 %v2532, 16
      %v2637 = vrot.slane %v2635, 4
      %v2638 = vor.u32 %v2637, %v2633
      %v2639 = vrot.slane %v2638, 4
      %v2641 = vshll.u32 %v2533, 16
      %v2643 = vrot.slane %v2641, 5
      %v2644 = vsel %vm2548, %v2639, %v2643
      %v2646 = vshrl.u32 %v2534, 16
      %v2648 = vrot.slane %v2646, 4
      %v2649 = vshll.u32 %v2534, 16
      %v2651 = vrot.slane %v2649, 5
      %v2652 = vor.u32 %v2648, %v2651
      %v2653 = vrot.slane %v2652, 4
      %v2655 = vshll.u32 %v2535, 16
      %v2657 = vrot.slane %v2655, 5
      %v2658 = vsel %vm2548, %v2653, %v2657
      %v2659 = vshrl.u32 %v2535, 16
      %v2661 = vrot.slane %v2659, 4
      %v2662 = vor.u32 %v2661, %v2657
      %v2663 = vrot.slane %v2662, 4
      %v2665 = vshll.u32 %v2536, 16
      %v2667 = vrot.slane %v2665, 5
      %v2668 = vsel %vm2548, %v2663, %v2667
      %v2670 = vshrl.u32 %v2537, 16
      %v2672 = vrot.slane %v2670, 4
      %v2673 = vshll.u32 %v2537, 16
      %v2675 = vrot.slane %v2673, 5
      %v2676 = vor.u32 %v2672, %v2675
      %v2677 = vrot.slane %v2676, 4
      %v2679 = vshll.u32 %v2538, 16
      %v2681 = vrot.slane %v2679, 5
      %v2682 = vsel %vm2548, %v2677, %v2681
      %v2683 = vshrl.u32 %v2538, 16
      %v2685 = vrot.slane %v2683, 4
      %v2686 = vor.u32 %v2685, %v2681
      %v2687 = vrot.slane %v2686, 4
      %v2689 = vshll.u32 %v2539, 16
      %v2691 = vrot.slane %v2689, 5
      %v2692 = vsel %vm2548, %v2687, %v2691
      %v2694 = vshrl.u32 %v2540, 16
      %v2696 = vrot.slane %v2694, 4
      %v2697 = vshll.u32 %v2540, 16
      %v2699 = vrot.slane %v2697, 5
      %v2700 = vor.u32 %v2696, %v2699
      %v2701 = vrot.slane %v2700, 4
      %v2703 = vshll.u32 %v2541, 16
      %v2705 = vrot.slane %v2703, 5
      %v2706 = vsel %vm2548, %v2701, %v2705
      %v2707 = vshrl.u32 %v2541, 16
      %v2709 = vrot.slane %v2707, 4
      %v2710 = vor.u32 %v2709, %v2705
      %v2711 = vrot.slane %v2710, 4
      %v2713 = vshll.u32 %v2542, 16
      %v2715 = vrot.slane %v2713, 5
      %v2716 = vsel %vm2548, %v2711, %v2715
      %v2718 = vshrl.u32 %v2543, 16
      %v2720 = vrot.slane %v2718, 4
      %v2721 = vshll.u32 %v2543, 16
      %v2723 = vrot.slane %v2721, 5
      %v2724 = vor.u32 %v2720, %v2723
      %v2725 = vrot.slane %v2724, 4
      %v2727 = vshll.u32 %v2544, 16
      %v2729 = vrot.slane %v2727, 5
      %v2730 = vsel %vm2548, %v2725, %v2729
      %v2731 = vshrl.u32 %v2544, 16
      %v2733 = vrot.slane %v2731, 4
      %v2734 = vor.u32 %v2733, %v2729
      %v2735 = vrot.slane %v2734, 4
      %v2737 = vshll.u32 %v2545, 16
      %v2739 = vrot.slane %v2737, 5
      %v2740 = vsel %vm2548, %v2735, %v2739
      %2741 = vrot.lane.b32.xlu0 %v2562, 4
      %v2742 = vpop.permute.xlu0 %2741
      %2743 = vrot.lane.b32.xlu0 %v2572, 4
      %v2744 = vpop.permute.xlu0 %2743
      %2745 = vrot.lane.b32.xlu0 %v2586, 4
      %v2746 = vpop.permute.xlu0 %2745
      %2747 = vrot.lane.b32.xlu0 %v2596, 4
      %v2748 = vpop.permute.xlu0 %2747
      %2749 = vrot.lane.b32.xlu0 %v2610, 4
      %v2750 = vpop.permute.xlu0 %2749
      %2751 = vrot.lane.b32.xlu0 %v2620, 4
      %v2752 = vpop.permute.xlu0 %2751
      %2753 = vrot.lane.b32.xlu0 %v2634, 4
      %v2754 = vpop.permute.xlu0 %2753
      %2755 = vrot.lane.b32.xlu0 %v2644, 4
      %v2756 = vpop.permute.xlu0 %2755
      %2757 = vrot.lane.b32.xlu0 %v2658, 4
      %v2758 = vpop.permute.xlu0 %2757
      %2759 = vrot.lane.b32.xlu0 %v2668, 4
      %v2760 = vpop.permute.xlu0 %2759
      %2761 = vrot.lane.b32.xlu0 %v2682, 4
      %v2762 = vpop.permute.xlu0 %2761
      %2763 = vrot.lane.b32.xlu0 %v2692, 4
      %v2764 = vpop.permute.xlu0 %2763
      %2765 = vrot.lane.b32.xlu0 %v2706, 4
      %v2766 = vpop.permute.xlu0 %2765
      %2767 = vrot.lane.b32.xlu0 %v2716, 4
      %v2768 = vpop.permute.xlu0 %2767
      %2769 = vrot.lane.b32.xlu0 %v2730, 4
      %v2770 = vpop.permute.xlu0 %2769
      %2771 = vrot.lane.b32.xlu0 %v2740, 4
      %v2772 = vpop.permute.xlu0 %2771
      %2789 = vst.msk [vmem:[#allocation2] sm:$0xf] %vm609, %v2742
      %2790 = vst.msk [vmem:[#allocation2 + $0x4] sm:$0xf] %vm609, %v2744
      %2791 = vst.msk [vmem:[#allocation2 + $0x8] sm:$0xf] %vm609, %v2746
      %2792 = vst.msk [vmem:[#allocation2 + $0xc] sm:$0xf] %vm609, %v2748
      %2793 = vst.msk [vmem:[#allocation2 + $0x10] sm:$0xf] %vm609, %v2750
      %2794 = vst.msk [vmem:[#allocation2 + $0x14] sm:$0xf] %vm609, %v2752
      %2795 = vst.msk [vmem:[#allocation2 + $0x18] sm:$0xf] %vm609, %v2754
      %2796 = vst.msk [vmem:[#allocation2 + $0x1c] sm:$0xf] %vm609, %v2756
      %2797 = vst.msk [vmem:[#allocation2 + $0x20] sm:$0xf] %vm609, %v2758
      %2798 = vst.msk [vmem:[#allocation2 + $0x24] sm:$0xf] %vm609, %v2760
      %2799 = vst.msk [vmem:[#allocation2 + $0x28] sm:$0xf] %vm609, %v2762
      %2800 = vst.msk [vmem:[#allocation2 + $0x2c] sm:$0xf] %vm609, %v2764
      %2801 = vst.msk [vmem:[#allocation2 + $0x30] sm:$0xf] %vm609, %v2766
      %2802 = vst.msk [vmem:[#allocation2 + $0x34] sm:$0xf] %vm609, %v2768
      %2803 = vst.msk [vmem:[#allocation2 + $0x38] sm:$0xf] %vm609, %v2770
      %2804 = vst.msk [vmem:[#allocation2 + $0x3c] sm:$0xf] %vm609, %v2772
      %v2805 = vld [vmem:[#allocation3] sm:$0xe]
      %v2806 = vld [vmem:[#allocation3 + $0x4] sm:$0xf]
      %v2807 = vld [vmem:[#allocation3 + $0x8] sm:$0x1]
      %v2808 = vld [vmem:[#allocation3 + $0xc] sm:$0xe]
      %v2809 = vld [vmem:[#allocation3 + $0x10] sm:$0xf]
      %v2810 = vld [vmem:[#allocation3 + $0x14] sm:$0x1]
      %v2811 = vld [vmem:[#allocation3 + $0x18] sm:$0xe]
      %v2812 = vld [vmem:[#allocation3 + $0x1c] sm:$0xf]
      %v2813 = vld [vmem:[#allocation3 + $0x20] sm:$0x1]
      %v2814 = vld [vmem:[#allocation3 + $0x24] sm:$0xe]
      %v2815 = vld [vmem:[#allocation3 + $0x28] sm:$0xf]
      %v2816 = vld [vmem:[#allocation3 + $0x2c] sm:$0x1]
      %v2817 = vld [vmem:[#allocation3 + $0x30] sm:$0xe]
      %v2818 = vld [vmem:[#allocation3 + $0x34] sm:$0xf]
      %v2819 = vld [vmem:[#allocation3 + $0x38] sm:$0x1]
      %v2820 = vld [vmem:[#allocation3 + $0x3c] sm:$0xe]
      %v2821 = vld [vmem:[#allocation3 + $0x40] sm:$0xf]
      %v2822 = vld [vmem:[#allocation3 + $0x44] sm:$0x1]
      %v2823 = vld [vmem:[#allocation3 + $0x48] sm:$0xe]
      %v2824 = vld [vmem:[#allocation3 + $0x4c] sm:$0xf]
      %v2825 = vld [vmem:[#allocation3 + $0x50] sm:$0x1]
      %v2826 = vld [vmem:[#allocation3 + $0x54] sm:$0xe]
      %v2827 = vld [vmem:[#allocation3 + $0x58] sm:$0xf]
      %v2828 = vld [vmem:[#allocation3 + $0x5c] sm:$0x1]
      %vm2853 = vcmask 1042432
      %vm2854 = vcmask 1046532
      %vm2855 = vmor %vm2853, %vm2854
      %v2856 = vrot.slane %v2805, 5
      %v2857 = vrot.slane %v2856, 4
      %v2858 = vrot.slane %v2806, 5
      %v2859 = vsel %vm2855, %v2857, %v2858
      %v2860 = vrot.slane %v2858, 4
      %v2861 = vrot.slane %v2807, 5
      %v2862 = vsel %vm2855, %v2860, %v2861
      %v2863 = vrot.slane %v2808, 5
      %v2864 = vrot.slane %v2863, 4
      %v2865 = vrot.slane %v2809, 5
      %v2866 = vsel %vm2855, %v2864, %v2865
      %v2867 = vrot.slane %v2865, 4
      %v2868 = vrot.slane %v2810, 5
      %v2869 = vsel %vm2855, %v2867, %v2868
      %v2870 = vrot.slane %v2811, 5
      %v2871 = vrot.slane %v2870, 4
      %v2872 = vrot.slane %v2812, 5
      %v2873 = vsel %vm2855, %v2871, %v2872
      %v2874 = vrot.slane %v2872, 4
      %v2875 = vrot.slane %v2813, 5
      %v2876 = vsel %vm2855, %v2874, %v2875
      %v2877 = vrot.slane %v2814, 5
      %v2878 = vrot.slane %v2877, 4
      %v2879 = vrot.slane %v2815, 5
      %v2880 = vsel %vm2855, %v2878, %v2879
      %v2881 = vrot.slane %v2879, 4
      %v2882 = vrot.slane %v2816, 5
      %v2883 = vsel %vm2855, %v2881, %v2882
      %v2884 = vrot.slane %v2817, 5
      %v2885 = vrot.slane %v2884, 4
      %v2886 = vrot.slane %v2818, 5
      %v2887 = vsel %vm2855, %v2885, %v2886
      %v2888 = vrot.slane %v2886, 4
      %v2889 = vrot.slane %v2819, 5
      %v2890 = vsel %vm2855, %v2888, %v2889
      %v2891 = vrot.slane %v2820, 5
      %v2892 = vrot.slane %v2891, 4
      %v2893 = vrot.slane %v2821, 5
      %v2894 = vsel %vm2855, %v2892, %v2893
      %v2895 = vrot.slane %v2893, 4
      %v2896 = vrot.slane %v2822, 5
      %v2897 = vsel %vm2855, %v2895, %v2896
      %v2898 = vrot.slane %v2823, 5
      %v2899 = vrot.slane %v2898, 4
      %v2900 = vrot.slane %v2824, 5
      %v2901 = vsel %vm2855, %v2899, %v2900
      %v2902 = vrot.slane %v2900, 4
      %v2903 = vrot.slane %v2825, 5
      %v2904 = vsel %vm2855, %v2902, %v2903
      %v2905 = vrot.slane %v2826, 5
      %v2906 = vrot.slane %v2905, 4
      %v2907 = vrot.slane %v2827, 5
      %v2908 = vsel %vm2855, %v2906, %v2907
      %v2909 = vrot.slane %v2907, 4
      %v2910 = vrot.slane %v2828, 5
      %v2911 = vsel %vm2855, %v2909, %v2910
      %2912 = vrot.lane.b32.xlu0 %v2859, 8
      %v2913 = vpop.permute.xlu0 %2912
      %2914 = vrot.lane.b32.xlu0 %v2862, 8
      %v2915 = vpop.permute.xlu0 %2914
      %2916 = vrot.lane.b32.xlu0 %v2866, 8
      %v2917 = vpop.permute.xlu0 %2916
      %2918 = vrot.lane.b32.xlu0 %v2869, 8
      %v2919 = vpop.permute.xlu0 %2918
      %2920 = vrot.lane.b32.xlu0 %v2873, 8
      %v2921 = vpop.permute.xlu0 %2920
      %2922 = vrot.lane.b32.xlu0 %v2876, 8
      %v2923 = vpop.permute.xlu0 %2922
      %2924 = vrot.lane.b32.xlu0 %v2880, 8
      %v2925 = vpop.permute.xlu0 %2924
      %2926 = vrot.lane.b32.xlu0 %v2883, 8
      %v2927 = vpop.permute.xlu0 %2926
      %2928 = vrot.lane.b32.xlu0 %v2887, 8
      %v2929 = vpop.permute.xlu0 %2928
      %2930 = vrot.lane.b32.xlu0 %v2890, 8
      %v2931 = vpop.permute.xlu0 %2930
      %2932 = vrot.lane.b32.xlu0 %v2894, 8
      %v2933 = vpop.permute.xlu0 %2932
      %2934 = vrot.lane.b32.xlu0 %v2897, 8
      %v2935 = vpop.permute.xlu0 %2934
      %2936 = vrot.lane.b32.xlu0 %v2901, 8
      %v2937 = vpop.permute.xlu0 %2936
      %2938 = vrot.lane.b32.xlu0 %v2904, 8
      %v2939 = vpop.permute.xlu0 %2938
      %2940 = vrot.lane.b32.xlu0 %v2908, 8
      %v2941 = vpop.permute.xlu0 %2940
      %2942 = vrot.lane.b32.xlu0 %v2911, 8
      %v2943 = vpop.permute.xlu0 %2942
      %2960 = vst.msk [vmem:[#allocation2] sm:$0xf] %vm770, %v2913
      %2961 = vst.msk [vmem:[#allocation2 + $0x4] sm:$0xf] %vm770, %v2915
      %2962 = vst.msk [vmem:[#allocation2 + $0x8] sm:$0xf] %vm770, %v2917
      %2963 = vst.msk [vmem:[#allocation2 + $0xc] sm:$0xf] %vm770, %v2919
      %2964 = vst.msk [vmem:[#allocation2 + $0x10] sm:$0xf] %vm770, %v2921
      %2965 = vst.msk [vmem:[#allocation2 + $0x14] sm:$0xf] %vm770, %v2923
      %2966 = vst.msk [vmem:[#allocation2 + $0x18] sm:$0xf] %vm770, %v2925
      %2967 = vst.msk [vmem:[#allocation2 + $0x1c] sm:$0xf] %vm770, %v2927
      %2968 = vst.msk [vmem:[#allocation2 + $0x20] sm:$0xf] %vm770, %v2929
      %2969 = vst.msk [vmem:[#allocation2 + $0x24] sm:$0xf] %vm770, %v2931
      %2970 = vst.msk [vmem:[#allocation2 + $0x28] sm:$0xf] %vm770, %v2933
      %2971 = vst.msk [vmem:[#allocation2 + $0x2c] sm:$0xf] %vm770, %v2935
      %2972 = vst.msk [vmem:[#allocation2 + $0x30] sm:$0xf] %vm770, %v2937
      %2973 = vst.msk [vmem:[#allocation2 + $0x34] sm:$0xf] %vm770, %v2939
      %2974 = vst.msk [vmem:[#allocation2 + $0x38] sm:$0xf] %vm770, %v2941
      %2975 = vst.msk [vmem:[#allocation2 + $0x3c] sm:$0xf] %vm770, %v2943
      %s2976 = scalar_lea.vmem [#allocation3], 12
      %v2977 = vld [vmem:[%s2976] sm:$0xf]
      %v2978 = vld [vmem:[%s2976 + $0x4] sm:$0xf]
      %v2979 = vld [vmem:[%s2976 + $0xc] sm:$0xf]
      %v2980 = vld [vmem:[%s2976 + $0x10] sm:$0xf]
      %v2981 = vld [vmem:[%s2976 + $0x18] sm:$0xf]
      %v2982 = vld [vmem:[%s2976 + $0x1c] sm:$0xf]
      %v2983 = vld [vmem:[%s2976 + $0x24] sm:$0xf]
      %v2984 = vld [vmem:[%s2976 + $0x28] sm:$0xf]
      %v2985 = vld [vmem:[%s2976 + $0x30] sm:$0xf]
      %v2986 = vld [vmem:[%s2976 + $0x34] sm:$0xf]
      %v2987 = vld [vmem:[%s2976 + $0x3c] sm:$0xf]
      %v2988 = vld [vmem:[%s2976 + $0x40] sm:$0xf]
      %v2989 = vld [vmem:[%s2976 + $0x48] sm:$0xf]
      %v2990 = vld [vmem:[%s2976 + $0x4c] sm:$0xf]
      %v2991 = vld [vmem:[%s2976 + $0x54] sm:$0xf]
      %v2992 = vld [vmem:[%s2976 + $0x58] sm:$0xf]
      %3009 = vrot.lane.b32.xlu0 %v2977, 12
      %v3010 = vpop.permute.xlu0 %3009
      %3011 = vrot.lane.b32.xlu0 %v2978, 12
      %v3012 = vpop.permute.xlu0 %3011
      %3013 = vrot.lane.b32.xlu0 %v2979, 12
      %v3014 = vpop.permute.xlu0 %3013
      %3015 = vrot.lane.b32.xlu0 %v2980, 12
      %v3016 = vpop.permute.xlu0 %3015
      %3017 = vrot.lane.b32.xlu0 %v2981, 12
      %v3018 = vpop.permute.xlu0 %3017
      %3019 = vrot.lane.b32.xlu0 %v2982, 12
      %v3020 = vpop.permute.xlu0 %3019
      %3021 = vrot.lane.b32.xlu0 %v2983, 12
      %v3022 = vpop.permute.xlu0 %3021
      %3023 = vrot.lane.b32.xlu0 %v2984, 12
      %v3024 = vpop.permute.xlu0 %3023
      %3025 = vrot.lane.b32.xlu0 %v2985, 12
      %v3026 = vpop.permute.xlu0 %3025
      %3027 = vrot.lane.b32.xlu0 %v2986, 12
      %v3028 = vpop.permute.xlu0 %3027
      %3029 = vrot.lane.b32.xlu0 %v2987, 12
      %v3030 = vpop.permute.xlu0 %3029
      %3031 = vrot.lane.b32.xlu0 %v2988, 12
      %v3032 = vpop.permute.xlu0 %3031
      %3033 = vrot.lane.b32.xlu0 %v2989, 12
      %v3034 = vpop.permute.xlu0 %3033
      %3035 = vrot.lane.b32.xlu0 %v2990, 12
      %v3036 = vpop.permute.xlu0 %3035
      %3037 = vrot.lane.b32.xlu0 %v2991, 12
      %v3038 = vpop.permute.xlu0 %3037
      %3039 = vrot.lane.b32.xlu0 %v2992, 12
      %v3040 = vpop.permute.xlu0 %3039
      %3057 = vst.msk [vmem:[#allocation2] sm:$0xf] %vm918, %v3010
      %3058 = vst.msk [vmem:[#allocation2 + $0x4] sm:$0xf] %vm918, %v3012
      %3059 = vst.msk [vmem:[#allocation2 + $0x8] sm:$0xf] %vm918, %v3014
      %3060 = vst.msk [vmem:[#allocation2 + $0xc] sm:$0xf] %vm918, %v3016
      %3061 = vst.msk [vmem:[#allocation2 + $0x10] sm:$0xf] %vm918, %v3018
      %3062 = vst.msk [vmem:[#allocation2 + $0x14] sm:$0xf] %vm918, %v3020
      %3063 = vst.msk [vmem:[#allocation2 + $0x18] sm:$0xf] %vm918, %v3022
      %3064 = vst.msk [vmem:[#allocation2 + $0x1c] sm:$0xf] %vm918, %v3024
      %3065 = vst.msk [vmem:[#allocation2 + $0x20] sm:$0xf] %vm918, %v3026
      %3066 = vst.msk [vmem:[#allocation2 + $0x24] sm:$0xf] %vm918, %v3028
      %3067 = vst.msk [vmem:[#allocation2 + $0x28] sm:$0xf] %vm918, %v3030
      %3068 = vst.msk [vmem:[#allocation2 + $0x2c] sm:$0xf] %vm918, %v3032
      %3069 = vst.msk [vmem:[#allocation2 + $0x30] sm:$0xf] %vm918, %v3034
      %3070 = vst.msk [vmem:[#allocation2 + $0x34] sm:$0xf] %vm918, %v3036
      %3071 = vst.msk [vmem:[#allocation2 + $0x38] sm:$0xf] %vm918, %v3038
      %3072 = vst.msk [vmem:[#allocation2 + $0x3c] sm:$0xf] %vm918, %v3040
      %v3073 = vld [vmem:[%s2976] sm:$0xf]
      %v3074 = vld [vmem:[%s2976 + $0x4] sm:$0xf]
      %v3075 = vld [vmem:[%s2976 + $0x8] sm:$0x1]
      %v3076 = vld [vmem:[%s2976 + $0xc] sm:$0xf]
      %v3077 = vld [vmem:[%s2976 + $0x10] sm:$0xf]
      %v3078 = vld [vmem:[%s2976 + $0x14] sm:$0x1]
      %v3079 = vld [vmem:[%s2976 + $0x18] sm:$0xf]
      %v3080 = vld [vmem:[%s2976 + $0x1c] sm:$0xf]
      %v3081 = vld [vmem:[%s2976 + $0x20] sm:$0x1]
      %v3082 = vld [vmem:[%s2976 + $0x24] sm:$0xf]
      %v3083 = vld [vmem:[%s2976 + $0x28] sm:$0xf]
      %v3084 = vld [vmem:[%s2976 + $0x2c] sm:$0x1]
      %v3085 = vld [vmem:[%s2976 + $0x30] sm:$0xf]
      %v3086 = vld [vmem:[%s2976 + $0x34] sm:$0xf]
      %v3087 = vld [vmem:[%s2976 + $0x38] sm:$0x1]
      %v3088 = vld [vmem:[%s2976 + $0x3c] sm:$0xf]
      %v3089 = vld [vmem:[%s2976 + $0x40] sm:$0xf]
      %v3090 = vld [vmem:[%s2976 + $0x44] sm:$0x1]
      %v3091 = vld [vmem:[%s2976 + $0x48] sm:$0xf]
      %v3092 = vld [vmem:[%s2976 + $0x4c] sm:$0xf]
      %v3093 = vld [vmem:[%s2976 + $0x50] sm:$0x1]
      %v3094 = vld [vmem:[%s2976 + $0x54] sm:$0xf]
      %v3095 = vld [vmem:[%s2976 + $0x58] sm:$0xf]
      %v3096 = vld [vmem:[%s2976 + $0x5c] sm:$0x1]
      %v3098 = vshrl.u32 %v3073, 16
      %v3100 = vrot.slane %v3098, 4
      %v3101 = vshll.u32 %v3073, 16
      %v3103 = vrot.slane %v3101, 5
      %v3104 = vor.u32 %v3100, %v3103
      %v3105 = vrot.slane %v3104, 4
      %v3107 = vshll.u32 %v3074, 16
      %v3109 = vrot.slane %v3107, 5
      %v3110 = vsel %vm2548, %v3105, %v3109
      %v3111 = vshrl.u32 %v3074, 16
      %v3113 = vrot.slane %v3111, 4
      %v3114 = vor.u32 %v3113, %v3109
      %v3115 = vrot.slane %v3114, 4
      %v3117 = vshll.u32 %v3075, 16
      %v3119 = vrot.slane %v3117, 5
      %v3120 = vsel %vm2548, %v3115, %v3119
      %v3122 = vshrl.u32 %v3076, 16
      %v3124 = vrot.slane %v3122, 4
      %v3125 = vshll.u32 %v3076, 16
      %v3127 = vrot.slane %v3125, 5
      %v3128 = vor.u32 %v3124, %v3127
      %v3129 = vrot.slane %v3128, 4
      %v3131 = vshll.u32 %v3077, 16
      %v3133 = vrot.slane %v3131, 5
      %v3134 = vsel %vm2548, %v3129, %v3133
      %v3135 = vshrl.u32 %v3077, 16
      %v3137 = vrot.slane %v3135, 4
      %v3138 = vor.u32 %v3137, %v3133
      %v3139 = vrot.slane %v3138, 4
      %v3141 = vshll.u32 %v3078, 16
      %v3143 = vrot.slane %v3141, 5
      %v3144 = vsel %vm2548, %v3139, %v3143
      %v3146 = vshrl.u32 %v3079, 16
      %v3148 = vrot.slane %v3146, 4
      %v3149 = vshll.u32 %v3079, 16
      %v3151 = vrot.slane %v3149, 5
      %v3152 = vor.u32 %v3148, %v3151
      %v3153 = vrot.slane %v3152, 4
      %v3155 = vshll.u32 %v3080, 16
      %v3157 = vrot.slane %v3155, 5
      %v3158 = vsel %vm2548, %v3153, %v3157
      %v3159 = vshrl.u32 %v3080, 16
      %v3161 = vrot.slane %v3159, 4
      %v3162 = vor.u32 %v3161, %v3157
      %v3163 = vrot.slane %v3162, 4
      %v3165 = vshll.u32 %v3081, 16
      %v3167 = vrot.slane %v3165, 5
      %v3168 = vsel %vm2548, %v3163, %v3167
      %v3170 = vshrl.u32 %v3082, 16
      %v3172 = vrot.slane %v3170, 4
      %v3173 = vshll.u32 %v3082, 16
      %v3175 = vrot.slane %v3173, 5
      %v3176 = vor.u32 %v3172, %v3175
      %v3177 = vrot.slane %v3176, 4
      %v3179 = vshll.u32 %v3083, 16
      %v3181 = vrot.slane %v3179, 5
      %v3182 = vsel %vm2548, %v3177, %v3181
      %v3183 = vshrl.u32 %v3083, 16
      %v3185 = vrot.slane %v3183, 4
      %v3186 = vor.u32 %v3185, %v3181
      %v3187 = vrot.slane %v3186, 4
      %v3189 = vshll.u32 %v3084, 16
      %v3191 = vrot.slane %v3189, 5
      %v3192 = vsel %vm2548, %v3187, %v3191
      %v3194 = vshrl.u32 %v3085, 16
      %v3196 = vrot.slane %v3194, 4
      %v3197 = vshll.u32 %v3085, 16
      %v3199 = vrot.slane %v3197, 5
      %v3200 = vor.u32 %v3196, %v3199
      %v3201 = vrot.slane %v3200, 4
      %v3203 = vshll.u32 %v3086, 16
      %v3205 = vrot.slane %v3203, 5
      %v3206 = vsel %vm2548, %v3201, %v3205
      %v3207 = vshrl.u32 %v3086, 16
      %v3209 = vrot.slane %v3207, 4
      %v3210 = vor.u32 %v3209, %v3205
      %v3211 = vrot.slane %v3210, 4
      %v3213 = vshll.u32 %v3087, 16
      %v3215 = vrot.slane %v3213, 5
      %v3216 = vsel %vm2548, %v3211, %v3215
      %v3218 = vshrl.u32 %v3088, 16
      %v3220 = vrot.slane %v3218, 4
      %v3221 = vshll.u32 %v3088, 16
      %v3223 = vrot.slane %v3221, 5
      %v3224 = vor.u32 %v3220, %v3223
      %v3225 = vrot.slane %v3224, 4
      %v3227 = vshll.u32 %v3089, 16
      %v3229 = vrot.slane %v3227, 5
      %v3230 = vsel %vm2548, %v3225, %v3229
      %v3231 = vshrl.u32 %v3089, 16
      %v3233 = vrot.slane %v3231, 4
      %v3234 = vor.u32 %v3233, %v3229
      %v3235 = vrot.slane %v3234, 4
      %v3237 = vshll.u32 %v3090, 16
      %v3239 = vrot.slane %v3237, 5
      %v3240 = vsel %vm2548, %v3235, %v3239
      %v3242 = vshrl.u32 %v3091, 16
      %v3244 = vrot.slane %v3242, 4
      %v3245 = vshll.u32 %v3091, 16
      %v3247 = vrot.slane %v3245, 5
      %v3248 = vor.u32 %v3244, %v3247
      %v3249 = vrot.slane %v3248, 4
      %v3251 = vshll.u32 %v3092, 16
      %v3253 = vrot.slane %v3251, 5
      %v3254 = vsel %vm2548, %v3249, %v3253
      %v3255 = vshrl.u32 %v3092, 16
      %v3257 = vrot.slane %v3255, 4
      %v3258 = vor.u32 %v3257, %v3253
      %v3259 = vrot.slane %v3258, 4
      %v3261 = vshll.u32 %v3093, 16
      %v3263 = vrot.slane %v3261, 5
      %v3264 = vsel %vm2548, %v3259, %v3263
      %v3266 = vshrl.u32 %v3094, 16
      %v3268 = vrot.slane %v3266, 4
      %v3269 = vshll.u32 %v3094, 16
      %v3271 = vrot.slane %v3269, 5
      %v3272 = vor.u32 %v3268, %v3271
      %v3273 = vrot.slane %v3272, 4
      %v3275 = vshll.u32 %v3095, 16
      %v3277 = vrot.slane %v3275, 5
      %v3278 = vsel %vm2548, %v3273, %v3277
      %v3279 = vshrl.u32 %v3095, 16
      %v3281 = vrot.slane %v3279, 4
      %v3282 = vor.u32 %v3281, %v3277
      %v3283 = vrot.slane %v3282, 4
      %v3285 = vshll.u32 %v3096, 16
      %v3287 = vrot.slane %v3285, 5
      %v3288 = vsel %vm2548, %v3283, %v3287
      %3289 = vrot.lane.b32.xlu0 %v3110, 16
      %v3290 = vpop.permute.xlu0 %3289
      %3291 = vrot.lane.b32.xlu0 %v3120, 16
      %v3292 = vpop.permute.xlu0 %3291
      %3293 = vrot.lane.b32.xlu0 %v3134, 16
      %v3294 = vpop.permute.xlu0 %3293
      %3295 = vrot.lane.b32.xlu0 %v3144, 16
      %v3296 = vpop.permute.xlu0 %3295
      %3297 = vrot.lane.b32.xlu0 %v3158, 16
      %v3298 = vpop.permute.xlu0 %3297
      %3299 = vrot.lane.b32.xlu0 %v3168, 16
      %v3300 = vpop.permute.xlu0 %3299
      %3301 = vrot.lane.b32.xlu0 %v3182, 16
      %v3302 = vpop.permute.xlu0 %3301
      %3303 = vrot.lane.b32.xlu0 %v3192, 16
      %v3304 = vpop.permute.xlu0 %3303
      %3305 = vrot.lane.b32.xlu0 %v3206, 16
      %v3306 = vpop.permute.xlu0 %3305
      %3307 = vrot.lane.b32.xlu0 %v3216, 16
      %v3308 = vpop.permute.xlu0 %3307
      %3309 = vrot.lane.b32.xlu0 %v3230, 16
      %v3310 = vpop.permute.xlu0 %3309
      %3311 = vrot.lane.b32.xlu0 %v3240, 16
      %v3312 = vpop.permute.xlu0 %3311
      %3313 = vrot.lane.b32.xlu0 %v3254, 16
      %v3314 = vpop.permute.xlu0 %3313
      %3315 = vrot.lane.b32.xlu0 %v3264, 16
      %v3316 = vpop.permute.xlu0 %3315
      %3317 = vrot.lane.b32.xlu0 %v3278, 16
      %v3318 = vpop.permute.xlu0 %3317
      %3319 = vrot.lane.b32.xlu0 %v3288, 16
      %v3320 = vpop.permute.xlu0 %3319
      %3337 = vst.msk [vmem:[#allocation2] sm:$0xf] %vm1080, %v3290
      %3338 = vst.msk [vmem:[#allocation2 + $0x4] sm:$0xf] %vm1080, %v3292
      %3339 = vst.msk [vmem:[#allocation2 + $0x8] sm:$0xf] %vm1080, %v3294
      %3340 = vst.msk [vmem:[#allocation2 + $0xc] sm:$0xf] %vm1080, %v3296
      %3341 = vst.msk [vmem:[#allocation2 + $0x10] sm:$0xf] %vm1080, %v3298
      %3342 = vst.msk [vmem:[#allocation2 + $0x14] sm:$0xf] %vm1080, %v3300
      %3343 = vst.msk [vmem:[#allocation2 + $0x18] sm:$0xf] %vm1080, %v3302
      %3344 = vst.msk [vmem:[#allocation2 + $0x1c] sm:$0xf] %vm1080, %v3304
      %3345 = vst.msk [vmem:[#allocation2 + $0x20] sm:$0xf] %vm1080, %v3306
      %3346 = vst.msk [vmem:[#allocation2 + $0x24] sm:$0xf] %vm1080, %v3308
      %3347 = vst.msk [vmem:[#allocation2 + $0x28] sm:$0xf] %vm1080, %v3310
      %3348 = vst.msk [vmem:[#allocation2 + $0x2c] sm:$0xf] %vm1080, %v3312
      %3349 = vst.msk [vmem:[#allocation2 + $0x30] sm:$0xf] %vm1080, %v3314
      %3350 = vst.msk [vmem:[#allocation2 + $0x34] sm:$0xf] %vm1080, %v3316
      %3351 = vst.msk [vmem:[#allocation2 + $0x38] sm:$0xf] %vm1080, %v3318
      %3352 = vst.msk [vmem:[#allocation2 + $0x3c] sm:$0xf] %vm1080, %v3320
      %v3353 = vld [vmem:[%s2976] sm:$0xe]
      %v3354 = vld [vmem:[%s2976 + $0x4] sm:$0xf]
      %v3355 = vld [vmem:[%s2976 + $0x8] sm:$0x1]
      %v3356 = vld [vmem:[%s2976 + $0xc] sm:$0xe]
      %v3357 = vld [vmem:[%s2976 + $0x10] sm:$0xf]
      %v3358 = vld [vmem:[%s2976 + $0x14] sm:$0x1]
      %v3359 = vld [vmem:[%s2976 + $0x18] sm:$0xe]
      %v3360 = vld [vmem:[%s2976 + $0x1c] sm:$0xf]
      %v3361 = vld [vmem:[%s2976 + $0x20] sm:$0x1]
      %v3362 = vld [vmem:[%s2976 + $0x24] sm:$0xe]
      %v3363 = vld [vmem:[%s2976 + $0x28] sm:$0xf]
      %v3364 = vld [vmem:[%s2976 + $0x2c] sm:$0x1]
      %v3365 = vld [vmem:[%s2976 + $0x30] sm:$0xe]
      %v3366 = vld [vmem:[%s2976 + $0x34] sm:$0xf]
      %v3367 = vld [vmem:[%s2976 + $0x38] sm:$0x1]
      %v3368 = vld [vmem:[%s2976 + $0x3c] sm:$0xe]
      %v3369 = vld [vmem:[%s2976 + $0x40] sm:$0xf]
      %v3370 = vld [vmem:[%s2976 + $0x44] sm:$0x1]
      %v3371 = vld [vmem:[%s2976 + $0x48] sm:$0xe]
      %v3372 = vld [vmem:[%s2976 + $0x4c] sm:$0xf]
      %v3373 = vld [vmem:[%s2976 + $0x50] sm:$0x1]
      %v3374 = vld [vmem:[%s2976 + $0x54] sm:$0xe]
      %v3375 = vld [vmem:[%s2976 + $0x58] sm:$0xf]
      %v3376 = vld [vmem:[%s2976 + $0x5c] sm:$0x1]
      %v3401 = vrot.slane %v3353, 5
      %v3402 = vrot.slane %v3401, 4
      %v3403 = vrot.slane %v3354, 5
      %v3404 = vsel %vm2855, %v3402, %v3403
      %v3405 = vrot.slane %v3403, 4
      %v3406 = vrot.slane %v3355, 5
      %v3407 = vsel %vm2855, %v3405, %v3406
      %v3408 = vrot.slane %v3356, 5
      %v3409 = vrot.slane %v3408, 4
      %v3410 = vrot.slane %v3357, 5
      %v3411 = vsel %vm2855, %v3409, %v3410
      %v3412 = vrot.slane %v3410, 4
      %v3413 = vrot.slane %v3358, 5
      %v3414 = vsel %vm2855, %v3412, %v3413
      %v3415 = vrot.slane %v3359, 5
      %v3416 = vrot.slane %v3415, 4
      %v3417 = vrot.slane %v3360, 5
      %v3418 = vsel %vm2855, %v3416, %v3417
      %v3419 = vrot.slane %v3417, 4
      %v3420 = vrot.slane %v3361, 5
      %v3421 = vsel %vm2855, %v3419, %v3420
      %v3422 = vrot.slane %v3362, 5
      %v3423 = vrot.slane %v3422, 4
      %v3424 = vrot.slane %v3363, 5
      %v3425 = vsel %vm2855, %v3423, %v3424
      %v3426 = vrot.slane %v3424, 4
      %v3427 = vrot.slane %v3364, 5
      %v3428 = vsel %vm2855, %v3426, %v3427
      %v3429 = vrot.slane %v3365, 5
      %v3430 = vrot.slane %v3429, 4
      %v3431 = vrot.slane %v3366, 5
      %v3432 = vsel %vm2855, %v3430, %v3431
      %v3433 = vrot.slane %v3431, 4
      %v3434 = vrot.slane %v3367, 5
      %v3435 = vsel %vm2855, %v3433, %v3434
      %v3436 = vrot.slane %v3368, 5
      %v3437 = vrot.slane %v3436, 4
      %v3438 = vrot.slane %v3369, 5
      %v3439 = vsel %vm2855, %v3437, %v3438
      %v3440 = vrot.slane %v3438, 4
      %v3441 = vrot.slane %v3370, 5
      %v3442 = vsel %vm2855, %v3440, %v3441
      %v3443 = vrot.slane %v3371, 5
      %v3444 = vrot.slane %v3443, 4
      %v3445 = vrot.slane %v3372, 5
      %v3446 = vsel %vm2855, %v3444, %v3445
      %v3447 = vrot.slane %v3445, 4
      %v3448 = vrot.slane %v3373, 5
      %v3449 = vsel %vm2855, %v3447, %v3448
      %v3450 = vrot.slane %v3374, 5
      %v3451 = vrot.slane %v3450, 4
      %v3452 = vrot.slane %v3375, 5
      %v3453 = vsel %vm2855, %v3451, %v3452
      %v3454 = vrot.slane %v3452, 4
      %v3455 = vrot.slane %v3376, 5
      %v3456 = vsel %vm2855, %v3454, %v3455
      %3457 = vrot.lane.b32.xlu0 %v3404, 20
      %v3458 = vpop.permute.xlu0 %3457
      %3459 = vrot.lane.b32.xlu0 %v3407, 20
      %v3460 = vpop.permute.xlu0 %3459
      %3461 = vrot.lane.b32.xlu0 %v3411, 20
      %v3462 = vpop.permute.xlu0 %3461
      %3463 = vrot.lane.b32.xlu0 %v3414, 20
      %v3464 = vpop.permute.xlu0 %3463
      %3465 = vrot.lane.b32.xlu0 %v3418, 20
      %v3466 = vpop.permute.xlu0 %3465
      %3467 = vrot.lane.b32.xlu0 %v3421, 20
      %v3468 = vpop.permute.xlu0 %3467
      %3469 = vrot.lane.b32.xlu0 %v3425, 20
      %v3470 = vpop.permute.xlu0 %3469
      %3471 = vrot.lane.b32.xlu0 %v3428, 20
      %v3472 = vpop.permute.xlu0 %3471
      %3473 = vrot.lane.b32.xlu0 %v3432, 20
      %v3474 = vpop.permute.xlu0 %3473
      %3475 = vrot.lane.b32.xlu0 %v3435, 20
      %v3476 = vpop.permute.xlu0 %3475
      %3477 = vrot.lane.b32.xlu0 %v3439, 20
      %v3478 = vpop.permute.xlu0 %3477
      %3479 = vrot.lane.b32.xlu0 %v3442, 20
      %v3480 = vpop.permute.xlu0 %3479
      %3481 = vrot.lane.b32.xlu0 %v3446, 20
      %v3482 = vpop.permute.xlu0 %3481
      %3483 = vrot.lane.b32.xlu0 %v3449, 20
      %v3484 = vpop.permute.xlu0 %3483
      %3485 = vrot.lane.b32.xlu0 %v3453, 20
      %v3486 = vpop.permute.xlu0 %3485
      %3487 = vrot.lane.b32.xlu0 %v3456, 20
      %v3488 = vpop.permute.xlu0 %3487
      %3505 = vst.msk [vmem:[#allocation2] sm:$0xf] %vm1241, %v3458
      %3506 = vst.msk [vmem:[#allocation2 + $0x4] sm:$0xf] %vm1241, %v3460
      %3507 = vst.msk [vmem:[#allocation2 + $0x8] sm:$0xf] %vm1241, %v3462
      %3508 = vst.msk [vmem:[#allocation2 + $0xc] sm:$0xf] %vm1241, %v3464
      %3509 = vst.msk [vmem:[#allocation2 + $0x10] sm:$0xf] %vm1241, %v3466
      %3510 = vst.msk [vmem:[#allocation2 + $0x14] sm:$0xf] %vm1241, %v3468
      %3511 = vst.msk [vmem:[#allocation2 + $0x18] sm:$0xf] %vm1241, %v3470
      %3512 = vst.msk [vmem:[#allocation2 + $0x1c] sm:$0xf] %vm1241, %v3472
      %3513 = vst.msk [vmem:[#allocation2 + $0x20] sm:$0xf] %vm1241, %v3474
      %3514 = vst.msk [vmem:[#allocation2 + $0x24] sm:$0xf] %vm1241, %v3476
      %3515 = vst.msk [vmem:[#allocation2 + $0x28] sm:$0xf] %vm1241, %v3478
      %3516 = vst.msk [vmem:[#allocation2 + $0x2c] sm:$0xf] %vm1241, %v3480
      %3517 = vst.msk [vmem:[#allocation2 + $0x30] sm:$0xf] %vm1241, %v3482
      %3518 = vst.msk [vmem:[#allocation2 + $0x34] sm:$0xf] %vm1241, %v3484
      %3519 = vst.msk [vmem:[#allocation2 + $0x38] sm:$0xf] %vm1241, %v3486
      %3520 = vst.msk [vmem:[#allocation2 + $0x3c] sm:$0xf] %vm1241, %v3488
      %s3521 = scalar_lea.vmem [#allocation3], 24
      %v3522 = vld [vmem:[%s3521] sm:$0xf]
      %v3523 = vld [vmem:[%s3521 + $0x4] sm:$0xf]
      %v3524 = vld [vmem:[%s3521 + $0xc] sm:$0xf]
      %v3525 = vld [vmem:[%s3521 + $0x10] sm:$0xf]
      %v3526 = vld [vmem:[%s3521 + $0x18] sm:$0xf]
      %v3527 = vld [vmem:[%s3521 + $0x1c] sm:$0xf]
      %v3528 = vld [vmem:[%s3521 + $0x24] sm:$0xf]
      %v3529 = vld [vmem:[%s3521 + $0x28] sm:$0xf]
      %v3530 = vld [vmem:[%s3521 + $0x30] sm:$0xf]
      %v3531 = vld [vmem:[%s3521 + $0x34] sm:$0xf]
      %v3532 = vld [vmem:[%s3521 + $0x3c] sm:$0xf]
      %v3533 = vld [vmem:[%s3521 + $0x40] sm:$0xf]
      %v3534 = vld [vmem:[%s3521 + $0x48] sm:$0xf]
      %v3535 = vld [vmem:[%s3521 + $0x4c] sm:$0xf]
      %v3536 = vld [vmem:[%s3521 + $0x54] sm:$0xf]
      %v3537 = vld [vmem:[%s3521 + $0x58] sm:$0xf]
      %3554 = vrot.lane.b32.xlu0 %v3522, 24
      %v3555 = vpop.permute.xlu0 %3554
      %3556 = vrot.lane.b32.xlu0 %v3523, 24
      %v3557 = vpop.permute.xlu0 %3556
      %3558 = vrot.lane.b32.xlu0 %v3524, 24
      %v3559 = vpop.permute.xlu0 %3558
      %3560 = vrot.lane.b32.xlu0 %v3525, 24
      %v3561 = vpop.permute.xlu0 %3560
      %3562 = vrot.lane.b32.xlu0 %v3526, 24
      %v3563 = vpop.permute.xlu0 %3562
      %3564 = vrot.lane.b32.xlu0 %v3527, 24
      %v3565 = vpop.permute.xlu0 %3564
      %3566 = vrot.lane.b32.xlu0 %v3528, 24
      %v3567 = vpop.permute.xlu0 %3566
      %3568 = vrot.lane.b32.xlu0 %v3529, 24
      %v3569 = vpop.permute.xlu0 %3568
      %3570 = vrot.lane.b32.xlu0 %v3530, 24
      %v3571 = vpop.permute.xlu0 %3570
      %3572 = vrot.lane.b32.xlu0 %v3531, 24
      %v3573 = vpop.permute.xlu0 %3572
      %3574 = vrot.lane.b32.xlu0 %v3532, 24
      %v3575 = vpop.permute.xlu0 %3574
      %3576 = vrot.lane.b32.xlu0 %v3533, 24
      %v3577 = vpop.permute.xlu0 %3576
      %3578 = vrot.lane.b32.xlu0 %v3534, 24
      %v3579 = vpop.permute.xlu0 %3578
      %3580 = vrot.lane.b32.xlu0 %v3535, 24
      %v3581 = vpop.permute.xlu0 %3580
      %3582 = vrot.lane.b32.xlu0 %v3536, 24
      %v3583 = vpop.permute.xlu0 %3582
      %3584 = vrot.lane.b32.xlu0 %v3537, 24
      %v3585 = vpop.permute.xlu0 %3584
      %3602 = vst.msk [vmem:[#allocation2] sm:$0xf] %vm1389, %v3555
      %3603 = vst.msk [vmem:[#allocation2 + $0x4] sm:$0xf] %vm1389, %v3557
      %3604 = vst.msk [vmem:[#allocation2 + $0x8] sm:$0xf] %vm1389, %v3559
      %3605 = vst.msk [vmem:[#allocation2 + $0xc] sm:$0xf] %vm1389, %v3561
      %3606 = vst.msk [vmem:[#allocation2 + $0x10] sm:$0xf] %vm1389, %v3563
      %3607 = vst.msk [vmem:[#allocation2 + $0x14] sm:$0xf] %vm1389, %v3565
      %3608 = vst.msk [vmem:[#allocation2 + $0x18] sm:$0xf] %vm1389, %v3567
      %3609 = vst.msk [vmem:[#allocation2 + $0x1c] sm:$0xf] %vm1389, %v3569
      %3610 = vst.msk [vmem:[#allocation2 + $0x20] sm:$0xf] %vm1389, %v3571
      %3611 = vst.msk [vmem:[#allocation2 + $0x24] sm:$0xf] %vm1389, %v3573
      %3612 = vst.msk [vmem:[#allocation2 + $0x28] sm:$0xf] %vm1389, %v3575
      %3613 = vst.msk [vmem:[#allocation2 + $0x2c] sm:$0xf] %vm1389, %v3577
      %3614 = vst.msk [vmem:[#allocation2 + $0x30] sm:$0xf] %vm1389, %v3579
      %3615 = vst.msk [vmem:[#allocation2 + $0x34] sm:$0xf] %vm1389, %v3581
      %3616 = vst.msk [vmem:[#allocation2 + $0x38] sm:$0xf] %vm1389, %v3583
      %3617 = vst.msk [vmem:[#allocation2 + $0x3c] sm:$0xf] %vm1389, %v3585
      %v3618 = vld [vmem:[%s3521] sm:$0xf]
      %v3619 = vld [vmem:[%s3521 + $0x4] sm:$0xf]
      %v3620 = vld [vmem:[%s3521 + $0x8] sm:$0x1]
      %v3621 = vld [vmem:[%s3521 + $0xc] sm:$0xf]
      %v3622 = vld [vmem:[%s3521 + $0x10] sm:$0xf]
      %v3623 = vld [vmem:[%s3521 + $0x14] sm:$0x1]
      %v3624 = vld [vmem:[%s3521 + $0x18] sm:$0xf]
      %v3625 = vld [vmem:[%s3521 + $0x1c] sm:$0xf]
      %v3626 = vld [vmem:[%s3521 + $0x20] sm:$0x1]
      %v3627 = vld [vmem:[%s3521 + $0x24] sm:$0xf]
      %v3628 = vld [vmem:[%s3521 + $0x28] sm:$0xf]
      %v3629 = vld [vmem:[%s3521 + $0x2c] sm:$0x1]
      %v3630 = vld [vmem:[%s3521 + $0x30] sm:$0xf]
      %v3631 = vld [vmem:[%s3521 + $0x34] sm:$0xf]
      %v3632 = vld [vmem:[%s3521 + $0x38] sm:$0x1]
      %v3633 = vld [vmem:[%s3521 + $0x3c] sm:$0xf]
      %v3634 = vld [vmem:[%s3521 + $0x40] sm:$0xf]
      %v3635 = vld [vmem:[%s3521 + $0x44] sm:$0x1]
      %v3636 = vld [vmem:[%s3521 + $0x48] sm:$0xf]
      %v3637 = vld [vmem:[%s3521 + $0x4c] sm:$0xf]
      %v3638 = vld [vmem:[%s3521 + $0x50] sm:$0x1]
      %v3639 = vld [vmem:[%s3521 + $0x54] sm:$0xf]
      %v3640 = vld [vmem:[%s3521 + $0x58] sm:$0xf]
      %v3641 = vld [vmem:[%s3521 + $0x5c] sm:$0x1]
      %v3643 = vshrl.u32 %v3618, 16
      %v3645 = vrot.slane %v3643, 4
      %v3646 = vshll.u32 %v3618, 16
      %v3648 = vrot.slane %v3646, 5
      %v3649 = vor.u32 %v3645, %v3648
      %v3650 = vrot.slane %v3649, 4
      %v3652 = vshll.u32 %v3619, 16
      %v3654 = vrot.slane %v3652, 5
      %v3655 = vsel %vm2548, %v3650, %v3654
      %v3656 = vshrl.u32 %v3619, 16
      %v3658 = vrot.slane %v3656, 4
      %v3659 = vor.u32 %v3658, %v3654
      %v3660 = vrot.slane %v3659, 4
      %v3662 = vshll.u32 %v3620, 16
      %v3664 = vrot.slane %v3662, 5
      %v3665 = vsel %vm2548, %v3660, %v3664
      %v3667 = vshrl.u32 %v3621, 16
      %v3669 = vrot.slane %v3667, 4
      %v3670 = vshll.u32 %v3621, 16
      %v3672 = vrot.slane %v3670, 5
      %v3673 = vor.u32 %v3669, %v3672
      %v3674 = vrot.slane %v3673, 4
      %v3676 = vshll.u32 %v3622, 16
      %v3678 = vrot.slane %v3676, 5
      %v3679 = vsel %vm2548, %v3674, %v3678
      %v3680 = vshrl.u32 %v3622, 16
      %v3682 = vrot.slane %v3680, 4
      %v3683 = vor.u32 %v3682, %v3678
      %v3684 = vrot.slane %v3683, 4
      %v3686 = vshll.u32 %v3623, 16
      %v3688 = vrot.slane %v3686, 5
      %v3689 = vsel %vm2548, %v3684, %v3688
      %v3691 = vshrl.u32 %v3624, 16
      %v3693 = vrot.slane %v3691, 4
      %v3694 = vshll.u32 %v3624, 16
      %v3696 = vrot.slane %v3694, 5
      %v3697 = vor.u32 %v3693, %v3696
      %v3698 = vrot.slane %v3697, 4
      %v3700 = vshll.u32 %v3625, 16
      %v3702 = vrot.slane %v3700, 5
      %v3703 = vsel %vm2548, %v3698, %v3702
      %v3704 = vshrl.u32 %v3625, 16
      %v3706 = vrot.slane %v3704, 4
      %v3707 = vor.u32 %v3706, %v3702
      %v3708 = vrot.slane %v3707, 4
      %v3710 = vshll.u32 %v3626, 16
      %v3712 = vrot.slane %v3710, 5
      %v3713 = vsel %vm2548, %v3708, %v3712
      %v3715 = vshrl.u32 %v3627, 16
      %v3717 = vrot.slane %v3715, 4
      %v3718 = vshll.u32 %v3627, 16
      %v3720 = vrot.slane %v3718, 5
      %v3721 = vor.u32 %v3717, %v3720
      %v3722 = vrot.slane %v3721, 4
      %v3724 = vshll.u32 %v3628, 16
      %v3726 = vrot.slane %v3724, 5
      %v3727 = vsel %vm2548, %v3722, %v3726
      %v3728 = vshrl.u32 %v3628, 16
      %v3730 = vrot.slane %v3728, 4
      %v3731 = vor.u32 %v3730, %v3726
      %v3732 = vrot.slane %v3731, 4
      %v3734 = vshll.u32 %v3629, 16
      %v3736 = vrot.slane %v3734, 5
      %v3737 = vsel %vm2548, %v3732, %v3736
      %v3739 = vshrl.u32 %v3630, 16
      %v3741 = vrot.slane %v3739, 4
      %v3742 = vshll.u32 %v3630, 16
      %v3744 = vrot.slane %v3742, 5
      %v3745 = vor.u32 %v3741, %v3744
      %v3746 = vrot.slane %v3745, 4
      %v3748 = vshll.u32 %v3631, 16
      %v3750 = vrot.slane %v3748, 5
      %v3751 = vsel %vm2548, %v3746, %v3750
      %v3752 = vshrl.u32 %v3631, 16
      %v3754 = vrot.slane %v3752, 4
      %v3755 = vor.u32 %v3754, %v3750
      %v3756 = vrot.slane %v3755, 4
      %v3758 = vshll.u32 %v3632, 16
      %v3760 = vrot.slane %v3758, 5
      %v3761 = vsel %vm2548, %v3756, %v3760
      %v3763 = vshrl.u32 %v3633, 16
      %v3765 = vrot.slane %v3763, 4
      %v3766 = vshll.u32 %v3633, 16
      %v3768 = vrot.slane %v3766, 5
      %v3769 = vor.u32 %v3765, %v3768
      %v3770 = vrot.slane %v3769, 4
      %v3772 = vshll.u32 %v3634, 16
      %v3774 = vrot.slane %v3772, 5
      %v3775 = vsel %vm2548, %v3770, %v3774
      %v3776 = vshrl.u32 %v3634, 16
      %v3778 = vrot.slane %v3776, 4
      %v3779 = vor.u32 %v3778, %v3774
      %v3780 = vrot.slane %v3779, 4
      %v3782 = vshll.u32 %v3635, 16
      %v3784 = vrot.slane %v3782, 5
      %v3785 = vsel %vm2548, %v3780, %v3784
      %v3787 = vshrl.u32 %v3636, 16
      %v3789 = vrot.slane %v3787, 4
      %v3790 = vshll.u32 %v3636, 16
      %v3792 = vrot.slane %v3790, 5
      %v3793 = vor.u32 %v3789, %v3792
      %v3794 = vrot.slane %v3793, 4
      %v3796 = vshll.u32 %v3637, 16
      %v3798 = vrot.slane %v3796, 5
      %v3799 = vsel %vm2548, %v3794, %v3798
      %v3800 = vshrl.u32 %v3637, 16
      %v3802 = vrot.slane %v3800, 4
      %v3803 = vor.u32 %v3802, %v3798
      %v3804 = vrot.slane %v3803, 4
      %v3806 = vshll.u32 %v3638, 16
      %v3808 = vrot.slane %v3806, 5
      %v3809 = vsel %vm2548, %v3804, %v3808
      %v3811 = vshrl.u32 %v3639, 16
      %v3813 = vrot.slane %v3811, 4
      %v3814 = vshll.u32 %v3639, 16
      %v3816 = vrot.slane %v3814, 5
      %v3817 = vor.u32 %v3813, %v3816
      %v3818 = vrot.slane %v3817, 4
      %v3820 = vshll.u32 %v3640, 16
      %v3822 = vrot.slane %v3820, 5
      %v3823 = vsel %vm2548, %v3818, %v3822
      %v3824 = vshrl.u32 %v3640, 16
      %v3826 = vrot.slane %v3824, 4
      %v3827 = vor.u32 %v3826, %v3822
      %v3828 = vrot.slane %v3827, 4
      %v3830 = vshll.u32 %v3641, 16
      %v3832 = vrot.slane %v3830, 5
      %v3833 = vsel %vm2548, %v3828, %v3832
      %3834 = vrot.lane.b32.xlu0 %v3655, 28
      %v3835 = vpop.permute.xlu0 %3834
      %3836 = vrot.lane.b32.xlu0 %v3665, 28
      %v3837 = vpop.permute.xlu0 %3836
      %3838 = vrot.lane.b32.xlu0 %v3679, 28
      %v3839 = vpop.permute.xlu0 %3838
      %3840 = vrot.lane.b32.xlu0 %v3689, 28
      %v3841 = vpop.permute.xlu0 %3840
      %3842 = vrot.lane.b32.xlu0 %v3703, 28
      %v3843 = vpop.permute.xlu0 %3842
      %3844 = vrot.lane.b32.xlu0 %v3713, 28
      %v3845 = vpop.permute.xlu0 %3844
      %3846 = vrot.lane.b32.xlu0 %v3727, 28
      %v3847 = vpop.permute.xlu0 %3846
      %3848 = vrot.lane.b32.xlu0 %v3737, 28
      %v3849 = vpop.permute.xlu0 %3848
      %3850 = vrot.lane.b32.xlu0 %v3751, 28
      %v3851 = vpop.permute.xlu0 %3850
      %3852 = vrot.lane.b32.xlu0 %v3761, 28
      %v3853 = vpop.permute.xlu0 %3852
      %3854 = vrot.lane.b32.xlu0 %v3775, 28
      %v3855 = vpop.permute.xlu0 %3854
      %3856 = vrot.lane.b32.xlu0 %v3785, 28
      %v3857 = vpop.permute.xlu0 %3856
      %3858 = vrot.lane.b32.xlu0 %v3799, 28
      %v3859 = vpop.permute.xlu0 %3858
      %3860 = vrot.lane.b32.xlu0 %v3809, 28
      %v3861 = vpop.permute.xlu0 %3860
      %3862 = vrot.lane.b32.xlu0 %v3823, 28
      %v3863 = vpop.permute.xlu0 %3862
      %3864 = vrot.lane.b32.xlu0 %v3833, 28
      %v3865 = vpop.permute.xlu0 %3864
      %3882 = vst.msk [vmem:[#allocation2] sm:$0xf] %vm1551, %v3835
      %3883 = vst.msk [vmem:[#allocation2 + $0x4] sm:$0xf] %vm1551, %v3837
      %3884 = vst.msk [vmem:[#allocation2 + $0x8] sm:$0xf] %vm1551, %v3839
      %3885 = vst.msk [vmem:[#allocation2 + $0xc] sm:$0xf] %vm1551, %v3841
      %3886 = vst.msk [vmem:[#allocation2 + $0x10] sm:$0xf] %vm1551, %v3843
      %3887 = vst.msk [vmem:[#allocation2 + $0x14] sm:$0xf] %vm1551, %v3845
      %3888 = vst.msk [vmem:[#allocation2 + $0x18] sm:$0xf] %vm1551, %v3847
      %3889 = vst.msk [vmem:[#allocation2 + $0x1c] sm:$0xf] %vm1551, %v3849
      %3890 = vst.msk [vmem:[#allocation2 + $0x20] sm:$0xf] %vm1551, %v3851
      %3891 = vst.msk [vmem:[#allocation2 + $0x24] sm:$0xf] %vm1551, %v3853
      %3892 = vst.msk [vmem:[#allocation2 + $0x28] sm:$0xf] %vm1551, %v3855
      %3893 = vst.msk [vmem:[#allocation2 + $0x2c] sm:$0xf] %vm1551, %v3857
      %3894 = vst.msk [vmem:[#allocation2 + $0x30] sm:$0xf] %vm1551, %v3859
      %3895 = vst.msk [vmem:[#allocation2 + $0x34] sm:$0xf] %vm1551, %v3861
      %3896 = vst.msk [vmem:[#allocation2 + $0x38] sm:$0xf] %vm1551, %v3863
      %3897 = vst.msk [vmem:[#allocation2 + $0x3c] sm:$0xf] %vm1551, %v3865
      %v3898 = vld [vmem:[%s3521] sm:$0xe]
      %v3899 = vld [vmem:[%s3521 + $0x4] sm:$0xf]
      %v3900 = vld [vmem:[%s3521 + $0x8] sm:$0x1]
      %v3901 = vld [vmem:[%s3521 + $0xc] sm:$0xe]
      %v3902 = vld [vmem:[%s3521 + $0x10] sm:$0xf]
      %v3903 = vld [vmem:[%s3521 + $0x14] sm:$0x1]
      %v3904 = vld [vmem:[%s3521 + $0x18] sm:$0xe]
      %v3905 = vld [vmem:[%s3521 + $0x1c] sm:$0xf]
      %v3906 = vld [vmem:[%s3521 + $0x20] sm:$0x1]
      %v3907 = vld [vmem:[%s3521 + $0x24] sm:$0xe]
      %v3908 = vld [vmem:[%s3521 + $0x28] sm:$0xf]
      %v3909 = vld [vmem:[%s3521 + $0x2c] sm:$0x1]
      %v3910 = vld [vmem:[%s3521 + $0x30] sm:$0xe]
      %v3911 = vld [vmem:[%s3521 + $0x34] sm:$0xf]
      %v3912 = vld [vmem:[%s3521 + $0x38] sm:$0x1]
      %v3913 = vld [vmem:[%s3521 + $0x3c] sm:$0xe]
      %v3914 = vld [vmem:[%s3521 + $0x40] sm:$0xf]
      %v3915 = vld [vmem:[%s3521 + $0x44] sm:$0x1]
      %v3916 = vld [vmem:[%s3521 + $0x48] sm:$0xe]
      %v3917 = vld [vmem:[%s3521 + $0x4c] sm:$0xf]
      %v3918 = vld [vmem:[%s3521 + $0x50] sm:$0x1]
      %v3919 = vld [vmem:[%s3521 + $0x54] sm:$0xe]
      %v3920 = vld [vmem:[%s3521 + $0x58] sm:$0xf]
      %v3921 = vld [vmem:[%s3521 + $0x5c] sm:$0x1]
      %v3946 = vrot.slane %v3898, 5
      %v3947 = vrot.slane %v3946, 4
      %v3948 = vrot.slane %v3899, 5
      %v3949 = vsel %vm2855, %v3947, %v3948
      %v3950 = vrot.slane %v3948, 4
      %v3951 = vrot.slane %v3900, 5
      %v3952 = vsel %vm2855, %v3950, %v3951
      %v3953 = vrot.slane %v3901, 5
      %v3954 = vrot.slane %v3953, 4
      %v3955 = vrot.slane %v3902, 5
      %v3956 = vsel %vm2855, %v3954, %v3955
      %v3957 = vrot.slane %v3955, 4
      %v3958 = vrot.slane %v3903, 5
      %v3959 = vsel %vm2855, %v3957, %v3958
      %v3960 = vrot.slane %v3904, 5
      %v3961 = vrot.slane %v3960, 4
      %v3962 = vrot.slane %v3905, 5
      %v3963 = vsel %vm2855, %v3961, %v3962
      %v3964 = vrot.slane %v3962, 4
      %v3965 = vrot.slane %v3906, 5
      %v3966 = vsel %vm2855, %v3964, %v3965
      %v3967 = vrot.slane %v3907, 5
      %v3968 = vrot.slane %v3967, 4
      %v3969 = vrot.slane %v3908, 5
      %v3970 = vsel %vm2855, %v3968, %v3969
      %v3971 = vrot.slane %v3969, 4
      %v3972 = vrot.slane %v3909, 5
      %v3973 = vsel %vm2855, %v3971, %v3972
      %v3974 = vrot.slane %v3910, 5
      %v3975 = vrot.slane %v3974, 4
      %v3976 = vrot.slane %v3911, 5
      %v3977 = vsel %vm2855, %v3975, %v3976
      %v3978 = vrot.slane %v3976, 4
      %v3979 = vrot.slane %v3912, 5
      %v3980 = vsel %vm2855, %v3978, %v3979
      %v3981 = vrot.slane %v3913, 5
      %v3982 = vrot.slane %v3981, 4
      %v3983 = vrot.slane %v3914, 5
      %v3984 = vsel %vm2855, %v3982, %v3983
      %v3985 = vrot.slane %v3983, 4
      %v3986 = vrot.slane %v3915, 5
      %v3987 = vsel %vm2855, %v3985, %v3986
      %v3988 = vrot.slane %v3916, 5
      %v3989 = vrot.slane %v3988, 4
      %v3990 = vrot.slane %v3917, 5
      %v3991 = vsel %vm2855, %v3989, %v3990
      %v3992 = vrot.slane %v3990, 4
      %v3993 = vrot.slane %v3918, 5
      %v3994 = vsel %vm2855, %v3992, %v3993
      %v3995 = vrot.slane %v3919, 5
      %v3996 = vrot.slane %v3995, 4
      %v3997 = vrot.slane %v3920, 5
      %v3998 = vsel %vm2855, %v3996, %v3997
      %v3999 = vrot.slane %v3997, 4
      %v4000 = vrot.slane %v3921, 5
      %v4001 = vsel %vm2855, %v3999, %v4000
      %4002 = vrot.lane.b32.xlu0 %v3949, 32
      %v4003 = vpop.permute.xlu0 %4002
      %4004 = vrot.lane.b32.xlu0 %v3952, 32
      %v4005 = vpop.permute.xlu0 %4004
      %4006 = vrot.lane.b32.xlu0 %v3956, 32
      %v4007 = vpop.permute.xlu0 %4006
      %4008 = vrot.lane.b32.xlu0 %v3959, 32
      %v4009 = vpop.permute.xlu0 %4008
      %4010 = vrot.lane.b32.xlu0 %v3963, 32
      %v4011 = vpop.permute.xlu0 %4010
      %4012 = vrot.lane.b32.xlu0 %v3966, 32
      %v4013 = vpop.permute.xlu0 %4012
      %4014 = vrot.lane.b32.xlu0 %v3970, 32
      %v4015 = vpop.permute.xlu0 %4014
      %4016 = vrot.lane.b32.xlu0 %v3973, 32
      %v4017 = vpop.permute.xlu0 %4016
      %4018 = vrot.lane.b32.xlu0 %v3977, 32
      %v4019 = vpop.permute.xlu0 %4018
      %4020 = vrot.lane.b32.xlu0 %v3980, 32
      %v4021 = vpop.permute.xlu0 %4020
      %4022 = vrot.lane.b32.xlu0 %v3984, 32
      %v4023 = vpop.permute.xlu0 %4022
      %4024 = vrot.lane.b32.xlu0 %v3987, 32
      %v4025 = vpop.permute.xlu0 %4024
      %4026 = vrot.lane.b32.xlu0 %v3991, 32
      %v4027 = vpop.permute.xlu0 %4026
      %4028 = vrot.lane.b32.xlu0 %v3994, 32
      %v4029 = vpop.permute.xlu0 %4028
      %4030 = vrot.lane.b32.xlu0 %v3998, 32
      %v4031 = vpop.permute.xlu0 %4030
      %4032 = vrot.lane.b32.xlu0 %v4001, 32
      %v4033 = vpop.permute.xlu0 %4032
      %4050 = vst.msk [vmem:[#allocation2] sm:$0xf] %vm1712, %v4003
      %4051 = vst.msk [vmem:[#allocation2 + $0x4] sm:$0xf] %vm1712, %v4005
      %4052 = vst.msk [vmem:[#allocation2 + $0x8] sm:$0xf] %vm1712, %v4007
      %4053 = vst.msk [vmem:[#allocation2 + $0xc] sm:$0xf] %vm1712, %v4009
      %4054 = vst.msk [vmem:[#allocation2 + $0x10] sm:$0xf] %vm1712, %v4011
      %4055 = vst.msk [vmem:[#allocation2 + $0x14] sm:$0xf] %vm1712, %v4013
      %4056 = vst.msk [vmem:[#allocation2 + $0x18] sm:$0xf] %vm1712, %v4015
      %4057 = vst.msk [vmem:[#allocation2 + $0x1c] sm:$0xf] %vm1712, %v4017
      %4058 = vst.msk [vmem:[#allocation2 + $0x20] sm:$0xf] %vm1712, %v4019
      %4059 = vst.msk [vmem:[#allocation2 + $0x24] sm:$0xf] %vm1712, %v4021
      %4060 = vst.msk [vmem:[#allocation2 + $0x28] sm:$0xf] %vm1712, %v4023
      %4061 = vst.msk [vmem:[#allocation2 + $0x2c] sm:$0xf] %vm1712, %v4025
      %4062 = vst.msk [vmem:[#allocation2 + $0x30] sm:$0xf] %vm1712, %v4027
      %4063 = vst.msk [vmem:[#allocation2 + $0x34] sm:$0xf] %vm1712, %v4029
      %4064 = vst.msk [vmem:[#allocation2 + $0x38] sm:$0xf] %vm1712, %v4031
      %4065 = vst.msk [vmem:[#allocation2 + $0x3c] sm:$0xf] %vm1712, %v4033
      %v4066 = vld [vmem:[#allocation2] sm:$0xf]
      %v4067 = vld [vmem:[#allocation2 + $0x4] sm:$0xf]
      %v4068 = vld [vmem:[#allocation2 + $0x8] sm:$0xf]
      %v4069 = vld [vmem:[#allocation2 + $0xc] sm:$0xf]
      %v4070 = vld [vmem:[#allocation2 + $0x10] sm:$0xf]
      %v4071 = vld [vmem:[#allocation2 + $0x14] sm:$0xf]
      %v4072 = vld [vmem:[#allocation2 + $0x18] sm:$0xf]
      %v4073 = vld [vmem:[#allocation2 + $0x1c] sm:$0xf]
      %v4074 = vld [vmem:[#allocation2 + $0x20] sm:$0xf]
      %v4075 = vld [vmem:[#allocation2 + $0x24] sm:$0xf]
      %v4076 = vld [vmem:[#allocation2 + $0x28] sm:$0xf]
      %v4077 = vld [vmem:[#allocation2 + $0x2c] sm:$0xf]
      %v4078 = vld [vmem:[#allocation2 + $0x30] sm:$0xf]
      %v4079 = vld [vmem:[#allocation2 + $0x34] sm:$0xf]
      %v4080 = vld [vmem:[#allocation2 + $0x38] sm:$0xf]
      %v4081 = vld [vmem:[#allocation2 + $0x3c] sm:$0xf]
      %v4082 = vld [vmem:[%s4] sm:$0xf]
      %v4083 = vld [vmem:[%s4 + $0x4] sm:$0xf]
      %v4084 = vld [vmem:[%s4 + $0x8] sm:$0xf]
      %v4085 = vld [vmem:[%s4 + $0xc] sm:$0xf]
      %v4086 = vld [vmem:[%s4 + $0x10] sm:$0x3]
      %v4103 = vunpack.c.l.b16 %v4066
      %v4104 = vunpack.c.l.b16 %v4067
      %v4105 = vunpack.c.l.b16 %v4068
      %v4106 = vunpack.c.l.b16 %v4069
      %v4107 = vunpack.c.l.b16 %v4070
      %v4108 = vunpack.c.l.b16 %v4071
      %v4109 = vunpack.c.l.b16 %v4072
      %v4110 = vunpack.c.l.b16 %v4073
      %v4111 = vunpack.c.l.b16 %v4074
      %v4112 = vunpack.c.l.b16 %v4075
      %v4113 = vunpack.c.l.b16 %v4076
      %v4114 = vunpack.c.l.b16 %v4077
      %v4115 = vunpack.c.l.b16 %v4078
      %v4116 = vunpack.c.l.b16 %v4079
      %v4117 = vunpack.c.l.b16 %v4080
      %v4118 = vunpack.c.l.b16 %v4081
      %v4119 = vpack.c.b16 %v4104, %v4103
      %v4120 = vpack.c.b16 %v4106, %v4105
      %v4121 = vpack.c.b16 %v4108, %v4107
      %v4122 = vpack.c.b16 %v4110, %v4109
      %v4123 = vpack.c.b16 %v4112, %v4111
      %v4124 = vpack.c.b16 %v4114, %v4113
      %v4125 = vpack.c.b16 %v4116, %v4115
      %v4126 = vpack.c.b16 %v4118, %v4117
      %v4132 = vunpack.c.l.b16 %v4082
      %v4133 = vunpack.c.l.b16 %v4083
      %v4134 = vunpack.c.l.b16 %v4084
      %v4135 = vunpack.c.l.b16 %v4085
      %v4136 = vunpack.c.l.b16 %v4086
      %v4137 = vpack.c.b16 %v4133, %v4132
      %v4138 = vpack.c.b16 %v4135, %v4134
      %v4139 = vpack.c.b16 %v4136, %v4136
      %v4143 = vsel %vm1879, %v4119, 0
      %v4146 = vsel %vm1879, %v4120, 0
      %v4149 = vsel %vm1879, %v4121, 0
      %v4152 = vsel %vm1879, %v4122, 0
      %v4155 = vsel %vm1879, %v4123, 0
      %v4158 = vsel %vm1879, %v4124, 0
      %v4161 = vsel %vm1879, %v4125, 0
      %v4164 = vsel %vm1879, %v4126, 0
      %v4167 = vsel %vm1910, %v4139, 0
      %4169 = vmatprep.subr.bf16.mxu0 0
      %4170 = vmatpush1.bf16.msra.mxu0 0
      %4171 = vmatprep.subr.bf16.mxu0 0
      %4172 = vmatpush1.bf16.msra.mxu0 0
      %4173 = vmatprep.subr.bf16.mxu0 0
      %4174 = vmatpush1.bf16.msra.mxu0 0
      %4175 = vmatprep.subr.bf16.mxu0 0
      %4176 = vmatpush1.bf16.msra.mxu0 0
      %4177 = vmatprep.subr.bf16.mxu0 0
      %4178 = vmatpush1.bf16.msra.mxu0 0
      %4179 = vmatprep.subr.bf16.mxu0 0
      %4180 = vmatpush1.bf16.msra.mxu0 %v4167
      %4181 = vmatprep.subr.bf16.mxu0 0
      %4182 = vmatpush1.bf16.msra.mxu0 %v4138
      %4183 = vmatprep.subr.bf16.mxu0 0
      %4184 = vmatpush1.bf16.msra.mxu0 %v4137
      %4185 = vmatprep.subr.bf16.mxu0 0
      %4186 = vmatpush2.bf16.msra.mxu0 0
      %4187 = vmatprep.subr.bf16.mxu0 0
      %4188 = vmatpush2.bf16.msra.mxu0 0
      %4189 = vmatprep.subr.bf16.mxu0 0
      %4190 = vmatpush2.bf16.msra.mxu0 0
      %4191 = vmatprep.subr.bf16.mxu0 0
      %4192 = vmatpush2.bf16.msra.mxu0 0
      %4193 = vmatprep.subr.bf16.mxu0 0
      %4194 = vmatpush2.bf16.msra.mxu0 0
      %4195 = vmatprep.subr.bf16.mxu0 0
      %4196 = vmatpush2.bf16.msra.mxu0 0
      %4197 = vmatprep.subr.bf16.mxu0 0
      %4198 = vmatpush2.bf16.msra.mxu0 0
      %4199 = vmatprep.subr.bf16.mxu0 0
      %4200 = vmatpush2.bf16.msra.mxu0 0
      %4201 = vmatprep.mubr.bf16.mxu0 0
      %4202 = vmatmul.mubr.bf16.gmra.mxu0 %v4143
      %v4203 = vpop.f32.mrf.mxu0
      %v4204 = vadd.f32 0.0, %v4203
      %v4205 = vpop.f32.mrf.mxu0
      %v4206 = vpop.f32.mrf.mxu0
      %v4207 = vadd.f32 0.0, %v4206
      %v4208 = vpop.f32.mrf.mxu0
      %4209 = vmatprep.mubr.bf16.mxu0 0
      %4210 = vmatmul.mubr.bf16.gmra.mxu0 %v4146
      %v4211 = vpop.f32.mrf.mxu0
      %v4212 = vadd.f32 0.0, %v4211
      %v4213 = vpop.f32.mrf.mxu0
      %v4214 = vpop.f32.mrf.mxu0
      %v4215 = vadd.f32 0.0, %v4214
      %v4216 = vpop.f32.mrf.mxu0
      %4217 = vmatprep.mubr.bf16.mxu0 0
      %4218 = vmatmul.mubr.bf16.gmra.mxu0 %v4149
      %v4219 = vpop.f32.mrf.mxu0
      %v4220 = vadd.f32 0.0, %v4219
      %v4221 = vpop.f32.mrf.mxu0
      %v4222 = vpop.f32.mrf.mxu0
      %v4223 = vadd.f32 0.0, %v4222
      %v4224 = vpop.f32.mrf.mxu0
      %4225 = vmatprep.mubr.bf16.mxu0 0
      %4226 = vmatmul.mubr.bf16.gmra.mxu0 %v4152
      %v4227 = vpop.f32.mrf.mxu0
      %v4228 = vadd.f32 0.0, %v4227
      %v4229 = vpop.f32.mrf.mxu0
      %v4230 = vpop.f32.mrf.mxu0
      %v4231 = vadd.f32 0.0, %v4230
      %v4232 = vpop.f32.mrf.mxu0
      %4233 = vmatprep.mubr.bf16.mxu0 0
      %4234 = vmatmul.mubr.bf16.gmra.mxu0 %v4155
      %v4235 = vpop.f32.mrf.mxu0
      %v4236 = vadd.f32 0.0, %v4235
      %v4237 = vpop.f32.mrf.mxu0
      %v4238 = vpop.f32.mrf.mxu0
      %v4239 = vadd.f32 0.0, %v4238
      %v4240 = vpop.f32.mrf.mxu0
      %4241 = vmatprep.mubr.bf16.mxu0 0
      %4242 = vmatmul.mubr.bf16.gmra.mxu0 %v4158
      %v4243 = vpop.f32.mrf.mxu0
      %v4244 = vadd.f32 0.0, %v4243
      %v4245 = vpop.f32.mrf.mxu0
      %v4246 = vpop.f32.mrf.mxu0
      %v4247 = vadd.f32 0.0, %v4246
      %v4248 = vpop.f32.mrf.mxu0
      %4249 = vmatprep.mubr.bf16.mxu0 0
      %4250 = vmatmul.mubr.bf16.gmra.mxu0 %v4161
      %v4251 = vpop.f32.mrf.mxu0
      %v4252 = vadd.f32 0.0, %v4251
      %v4253 = vpop.f32.mrf.mxu0
      %v4254 = vpop.f32.mrf.mxu0
      %v4255 = vadd.f32 0.0, %v4254
      %v4256 = vpop.f32.mrf.mxu0
      %4257 = vmatprep.mubr.bf16.mxu0 0
      %4258 = vmatmul.mubr.bf16.gmra.mxu0 %v4164
      %v4259 = vpop.f32.mrf.mxu0
      %v4260 = vadd.f32 0.0, %v4259
      %v4261 = vpop.f32.mrf.mxu0
      %v4262 = vpop.f32.mrf.mxu0
      %v4263 = vadd.f32 0.0, %v4262
      %v4264 = vpop.f32.mrf.mxu0
      %4265 = vdwg.mxu0
      %v4266 = vld [vmem:[%s5] sm:$0x1]
      %v4268 = vlaneseq
      %v4269 = vshrl.u32 %v4268, 7
      %v4270 = vsub.s32 0, %v4269
      %v4271 = vrot.slane %v4266, %v4270
      %v4273 = vadd.f32 %v4204, %v4271
      %v4274 = vadd.f32 %v4207, %v4271
      %v4275 = vadd.f32 %v4212, %v4271
      %v4276 = vadd.f32 %v4215, %v4271
      %v4277 = vadd.f32 %v4220, %v4271
      %v4278 = vadd.f32 %v4223, %v4271
      %v4279 = vadd.f32 %v4228, %v4271
      %v4280 = vadd.f32 %v4231, %v4271
      %v4281 = vadd.f32 %v4236, %v4271
      %v4282 = vadd.f32 %v4239, %v4271
      %v4283 = vadd.f32 %v4244, %v4271
      %v4284 = vadd.f32 %v4247, %v4271
      %v4285 = vadd.f32 %v4252, %v4271
      %v4286 = vadd.f32 %v4255, %v4271
      %v4287 = vadd.f32 %v4260, %v4271
      %v4288 = vadd.f32 %v4263, %v4271
      %v4289 = vld [vmem:[%s1304 + $0x1] sm:$0xff]
      %v4290 = vld [vmem:[%s1304 + $0x9] sm:$0xff]
      %v4291 = vld [vmem:[%s1304 + $0x19] sm:$0xff]
      %v4292 = vld [vmem:[%s1304 + $0x21] sm:$0xff]
      %v4293 = vld [vmem:[%s1304 + $0x31] sm:$0xff]
      %v4294 = vld [vmem:[%s1304 + $0x39] sm:$0xff]
      %v4295 = vld [vmem:[%s1304 + $0x49] sm:$0xff]
      %v4296 = vld [vmem:[%s1304 + $0x51] sm:$0xff]
      %v4297 = vld [vmem:[%s1304 + $0x61] sm:$0xff]
      %v4298 = vld [vmem:[%s1304 + $0x69] sm:$0xff]
      %v4299 = vld [vmem:[%s1304 + $0x79] sm:$0xff]
      %v4300 = vld [vmem:[%s1304 + $0x81] sm:$0xff]
      %v4301 = vadd.f32 %v4289, %v4273
      %v4302 = vadd.f32 %v4290, %v4274
      %v4303 = vadd.f32 %v4291, %v4275
      %v4304 = vadd.f32 %v4292, %v4276
      %v4305 = vadd.f32 %v4293, %v4277
      %v4306 = vadd.f32 %v4294, %v4278
      %v4307 = vadd.f32 %v4295, %v4279
      %v4308 = vadd.f32 %v4296, %v4280
      %v4309 = vadd.f32 %v4297, %v4281
      %v4310 = vadd.f32 %v4298, %v4282
      %v4311 = vadd.f32 %v4299, %v4283
      %v4312 = vadd.f32 %v4300, %v4284
      %vm4313 = vcmask 31744
      %4314 = vst.msk [vmem:[%s372] sm:$0xff] %vm4313, %v4301
      %4315 = vst.msk [vmem:[%s372 + $0x8] sm:$0xff] %vm4313, %v4302
      %4316 = vst.msk [vmem:[%s372 + $0x10] sm:$0xff] %vm4313, %v4303
      %4317 = vst.msk [vmem:[%s372 + $0x18] sm:$0xff] %vm4313, %v4304
      %4318 = vst.msk [vmem:[%s372 + $0x20] sm:$0xff] %vm4313, %v4305
      %4319 = vst.msk [vmem:[%s372 + $0x28] sm:$0xff] %vm4313, %v4306
      %4320 = vst.msk [vmem:[%s372 + $0x30] sm:$0xff] %vm4313, %v4307
      %4321 = vst.msk [vmem:[%s372 + $0x38] sm:$0xff] %vm4313, %v4308
      %4322 = vst.msk [vmem:[%s372 + $0x40] sm:$0xff] %vm4313, %v4309
      %4323 = vst.msk [vmem:[%s372 + $0x48] sm:$0xff] %vm4313, %v4310
      %4324 = vst.msk [vmem:[%s372 + $0x50] sm:$0xff] %vm4313, %v4311
      %4325 = vst.msk [vmem:[%s372 + $0x58] sm:$0xff] %vm4313, %v4312
      %v4326 = vld [vmem:[%s359 + $0x1] sm:$0xff]
      %v4327 = vld [vmem:[%s359 + $0x9] sm:$0xff]
      %v4328 = vld [vmem:[%s359 + $0x19] sm:$0xff]
      %v4329 = vld [vmem:[%s359 + $0x21] sm:$0xff]
      %v4330 = vadd.f32 %v4326, %v4285
      %v4331 = vadd.f32 %v4327, %v4286
      %v4332 = vadd.f32 %v4328, %v4287
      %v4333 = vadd.f32 %v4329, %v4288
      %s4334 = scalar_lea.vmem %s372, 96
      %4335 = vst.msk [vmem:[%s4334] sm:$0xff] %vm4313, %v4330
      %4336 = vst.msk [vmem:[%s4334 + $0x8] sm:$0xff] %vm4313, %v4331
      %4337 = vst.msk [vmem:[%s4334 + $0x10] sm:$0xff] %vm4313, %v4332
      %4338 = vst.msk [vmem:[%s4334 + $0x18] sm:$0xff] %vm4313, %v4333
      %s4339 = smul.u32 8, %s22
      %p4340 = scmp.lt.s32.totalorder %s21, 1
      %s4341 = scalar_select %p4340, %s21, 1
      %p4342 = scmp.lt.s32.totalorder %s4339, 15
      %s4343 = scalar_select %p4342, %s4339, 15
      %s4344 = smul.addr %s4343, 2
      %s4345 = smul.addr %s4341, 32
      %s4346 = sadd.s32 %s4344, %s4345
      %s4347 = smul.addr %s4346, 8
      %s4348 = scalar_lea.vmem %s6, %s4347
      // Predicated region
      $region53: #{tpu_custom_call.1} parent=43 // pred_check
        %p4349 = pneg %p193
      $region54: #{tpu_custom_call.1} parent=43 // pred_check_branch
        %4351 = sbr.rel (%p4349) target = $region56
      $region55: #{tpu_custom_call.1} parent=43 // pred_region
        %s4352 = smul.u32 8, %s22
      $region56: #{tpu_custom_call.1} parent=43 // pred_fallthru
        _
    $region44: #{tpu_custom_call.1} parent=5 // pred_fallthru
      _
    %p4353 = scmp.le.s32.totalorder 2, %s12
    // Predicated region
    $region57: #{tpu_custom_call.1} parent=5 // pred_check
      %p4354 = pneg %p4353
    $region58: #{tpu_custom_call.1} parent=5 // pred_check_branch
      %4356 = sbr.rel (%p4354) target = $region60
    $region59: #{tpu_custom_call.1} parent=5 // pred_region
      %s4357 = ssub.s32 %s12, 2
      // Predicated region
      $region61: #{tpu_custom_call.1} parent=59 // pred_check
        %p4358 = pneg %p199
      $region62: #{tpu_custom_call.1} parent=59 // pred_check_branch
        %4360 = sbr.rel (%p4358) target = $region64
      $region63: #{tpu_custom_call.1} parent=59 // pred_region
        %s4361 = smul.u32 8, %s24
        %p4362 = scmp.lt.s32.totalorder %s23, 1
        %s4363 = scalar_select %p4362, %s23, 1
        %p4364 = scmp.lt.s32.totalorder %s4361, 15
        %s4365 = scalar_select %p4364, %s4361, 15
        %s4366 = smul.addr %s4365, 2
        %s4367 = smul.addr %s4363, 32
        %s4368 = sadd.s32 %s4366, %s4367
        %s4369 = smul.addr %s4368, 8
        %s4370 = scalar_lea.vmem %s6, %s4369
      $region64: #{tpu_custom_call.1} parent=59 // pred_fallthru
        _
    $region60: #{tpu_custom_call.1} parent=5 // pred_fallthru
      _
  $region6: #{tpu_custom_call.1} parent=0 // loop_footer
    %s16 = sadd.s32 1, %s12
  $region7: #{tpu_custom_call.1} parent=0 // loop_footer_branch
    %11 = sbr.rel target = $region3
  $region8: #{tpu_custom_call.1} parent=0 // loop_exit
    _

</llo_original>
